<compile_context>
chip_gen: v7x
topology: tpu7x:2x2x1
jax: 0.10.0
libtpu: 0.0.40
codegen_flags: <defaults>
</compile_context>

<pallas_src>
import numpy as np
import jax
import jax.numpy as jnp
from jax.experimental import pallas as pl
from jax.experimental.pallas import tpu as pltpu


def _round_up(x, m):
    return ((x + m - 1) // m) * m


def _cdiv(a, b):
    return (a + b - 1) // b


# ----------------------------- Pallas kernel --------------------------------
def _make_rendering_kernel(n_mid):
    """Fused transposed-MLP kernel factory (activations are (channels, tile))."""
    f32, bf16 = jnp.float32, jnp.bfloat16

    def kernel(pts_ref, vd_ref, nrm_ref, feat_ref,
               w_pts_ref, w_vd_ref, w_nrm_ref, w_feat_ref, w_emb_ref, b0_ref,
               fmat_ref, phase_ref,
               w_mid_ref, b_mid_ref, w_last_ref, b_last_ref,
               out_ref):

        def mm(a, b):
            return jnp.dot(a, b, preferred_element_type=f32)

        # ---- transpose narrow row blocks to channel-major (N -> lanes) ----
        pts_t = pts_ref[...].astype(f32).T            # (3, tile)
        vd_t = vd_ref[...].astype(f32).T              # (3, tile), stays f32 for sin
        nrm_t = nrm_ref[...].astype(f32).T            # (3, tile)
        feat_t = feat_ref[...].astype(f32).T          # (F, tile)

        # ---- positional embedding, lane-dense, single transcendental pass ----
        # ang rows = [2^k * vd] interleaved so that sin(ang + phase) reproduces
        # [sin(2^0 vd), cos(2^0 vd), sin(2^1 vd), cos(2^1 vd), ...]  (cos = sin(x+pi/2))
        ang = jnp.dot(fmat_ref[...], vd_t,
                      preferred_element_type=f32,
                      precision=jax.lax.Precision.HIGHEST) + phase_ref[...]
        emb = jnp.sin(ang).astype(bf16)               # (6*oct, tile)

        # ---- layer 0, fused over the logical concat (5 MXU passes) ----
        acc = mm(w_feat_ref[...], feat_t.astype(bf16))
        acc = acc + mm(w_emb_ref[...], emb)
        acc = acc + mm(w_pts_ref[...], pts_t.astype(bf16))
        acc = acc + mm(w_vd_ref[...], vd_t.astype(bf16))
        acc = acc + mm(w_nrm_ref[...], nrm_t.astype(bf16))
        h = jnp.maximum(acc + b0_ref[...], 0.0)       # (H, tile) f32

        # ---- middle hidden layers (Linear + ReLU) ----
        for l in range(n_mid):
            h = jnp.maximum(mm(w_mid_ref[l], h.astype(bf16)) + b_mid_ref[l], 0.0)

        # ---- last layer + sigmoid; output stays transposed (d_out, tile) ----
        logits = mm(w_last_ref[...], h.astype(bf16)) + b_last_ref[...]
        out_ref[...] = jax.nn.sigmoid(logits).astype(out_ref.dtype)

    return kernel


# ----------------------------- wrapper ---------------------------------------
def rendering_mlp_pallas(points, view_dirs, normals, feature_vectors,
                         weights, biases, *, multires_view, tile_n=1024):
    """Fused RenderingNetwork forward (mode='idr', multires_view > 0).

    points/view_dirs/normals: (N, 3); feature_vectors: (N, F) float32.
    weights[l]: (dims[l], dims[l+1]); biases[l]: (1, dims[l+1]) float32.
    Returns (N, d_out) float32.
    """
    N = points.shape[0]
    F = feature_vectors.shape[1]
    H = weights[0].shape[1]
    d_out = weights[-1].shape[1]
    n_lin = len(weights)
    n_mid = n_lin - 2
    n_oct = multires_view
    f32, bf16 = jnp.float32, jnp.bfloat16

    # ---- one-time parameter prep (tiny): slice / transpose / cast W0 ----
    # W0 rows (input channels): [0:3]=pts, [3:6]=vd, [6:6+6*oct]=sin/cos per octave,
    # then [.. : ..+3]=normals, rest=features.
    w0 = weights[0]
    e0, e1 = 6, 6 + 6 * n_oct
    assert w0.shape[0] == e1 + 3 + F, "first-layer weight rows do not match input layout"
    w_pts = w0[0:3].T.astype(bf16)                    # (H, 3)
    w_vd = w0[3:6].T.astype(bf16)                     # (H, 3)
    w_emb = w0[e0:e1].T.astype(bf16)                  # (H, 6*oct)
    w_nrm = w0[e1:e1 + 3].T.astype(bf16)              # (H, 3)
    w_feat = w0[e1 + 3:].T.astype(bf16)               # (H, F)
    b0 = biases[0].reshape(H, 1).astype(f32)

    # frequency / phase tables: emb = sin(fmat @ vd_t + phase); row 6k+m selects
    # component m%3 at frequency 2^k, with phase pi/2 for the cos rows (m >= 3).
    rows = 6 * n_oct
    fmat = np.zeros((rows, 3), np.float32)
    phase = np.zeros((rows, 1), np.float32)
    for k in range(n_oct):
        for m in range(6):
            fmat[6 * k + m, m % 3] = float(2 ** k)
            phase[6 * k + m, 0] = 0.0 if m < 3 else np.pi / 2
    fmat = jnp.asarray(fmat)
    phase = jnp.asarray(phase)

    if n_mid > 0:
        w_mid = jnp.stack([weights[l].T for l in range(1, 1 + n_mid)]).astype(bf16)
        b_mid = jnp.stack([biases[l].reshape(H, 1) for l in range(1, 1 + n_mid)]).astype(f32)
    else:  # dummy (never indexed)
        w_mid = jnp.zeros((1, H, H), bf16)
        b_mid = jnp.zeros((1, H, 1), f32)
    w_last = weights[-1].T.astype(bf16)               # (d_out, H)
    b_last = biases[-1].reshape(d_out, 1).astype(f32)

    params = [w_pts, w_vd, w_nrm, w_feat, w_emb, b0, fmat, phase,
              w_mid, b_mid, w_last, b_last]

    # ---- tile / grid: aim for >= 8 steps (>= 4 per TensorCore on v7x) when N allows;
    #      per-step VMEM at tile=1024 is only a few MiB, far below every chip's limit.
    tile = max(128, min(tile_n, _round_up(_cdiv(N, 8), 128)))
    grid = (_cdiv(N, tile),)

    row_inputs = [points, view_dirs, normals, feature_vectors]
    in_specs = [pl.BlockSpec((tile, x.shape[1]), lambda i: (i, 0)) for x in row_inputs]
    in_specs += [pl.BlockSpec(p.shape, (lambda i, nd=p.ndim: (0,) * nd)) for p in params]
    out_spec = pl.BlockSpec((d_out, tile), lambda i: (0, i))   # N on lanes -> dense stores

    kernel = _make_rendering_kernel(n_mid)

    out_t = pl.pallas_call(
        kernel,
        out_shape=jax.ShapeDtypeStruct((d_out, N), jnp.float32),
        grid_spec=pltpu.PrefetchScalarGridSpec(
            num_scalar_prefetch=0,
            grid=grid,
            in_specs=in_specs,
            out_specs=out_spec,
        ),
        compiler_params=pltpu.CompilerParams(
            dimension_semantics=("parallel",)),
    )(*row_inputs, *params)

    return out_t.T                                    # back to (N, d_out)


# ----------------------------- JAX glue --------------------------------------
def positional_embed(x, multires):
    """NeRF embedder: [x, sin(2^0 x), cos(2^0 x), ..., sin(2^(m-1) x), cos(2^(m-1) x)]."""
    outs = [x]
    for k in range(multires):
        f = jnp.asarray(2.0 ** k, dtype=x.dtype)
        outs.append(jnp.sin(x * f))
        outs.append(jnp.cos(x * f))
    return jnp.concatenate(outs, axis=-1)


def weight_norm_weight(v, g):
    """PyTorch nn.utils.weight_norm (dim=0): w[o,:] = g[o] * v[o,:] / ||v[o,:]|| (no eps).
    v is in PyTorch layout (out, in); returns (in, out) for x @ w."""
    norm = jnp.sqrt(jnp.sum(v * v, axis=1, keepdims=True))
    return (g[:, None] * v / norm).T


def init_rendering_network_params(key, d_feature, d_in, d_out, d_hidden,
                                  n_layers, multires_view):
    input_ch = 3 + 3 * 2 * multires_view if multires_view > 0 else 3
    dims = [d_in + d_feature + (input_ch - 3 if multires_view > 0 else 0)]
    dims += [d_hidden] * n_layers + [d_out]

    weights, biases = [], []
    for l in range(len(dims) - 1):
        key, kv, kg, kb = jax.random.split(key, 4)
        fan_in, fan_out = dims[l], dims[l + 1]
        v = jax.random.normal(kv, (fan_out, fan_in), jnp.float32) * 0.1
        g = 1.0 + 0.05 * jax.random.normal(kg, (fan_out,), jnp.float32)
        b = 0.05 * jax.random.normal(kb, (fan_out,), jnp.float32)
        weights.append(weight_norm_weight(v, g))    # (in, out)
        biases.append(b[None, :])                   # (1, out)
    return weights, biases, dims


def rendering_network_forward(points, normals, view_dirs, feature_vectors,
                              weights, biases, *, mode="idr", multires_view=4,
                              tile_n=1024):
    if mode != "idr" or multires_view <= 0:
        # TODO(synk): 'no_view_dir' / 'no_normal' modes and multires_view==0 follow the
        # same fused structure (drop the corresponding weight slices); only the
        # 'idr' + embedded-view configuration used by NeuRIS is wired up here.
        raise NotImplementedError("only mode='idr' with multires_view>0 is fused")
    return rendering_mlp_pallas(points, view_dirs, normals, feature_vectors,
                                weights, biases,
                                multires_view=multires_view, tile_n=tile_n)


def rendering_network_forward_ref(points, normals, view_dirs, feature_vectors,
                                  weights, biases, *, mode="idr", multires_view=4):
    """Pure-JAX reference matching the PyTorch module's math."""
    if multires_view > 0:
        view_dirs = positional_embed(view_dirs, multires_view)
    if mode == "idr":
        x = jnp.concatenate([points, view_dirs, normals, feature_vectors], axis=-1)
    elif mode == "no_view_dir":
        x = jnp.concatenate([points, normals, feature_vectors], axis=-1)
    elif mode == "no_normal":
        x = jnp.concatenate([points, view_dirs, feature_vectors], axis=-1)
    else:
        raise ValueError(mode)
    n_lin = len(weights)
    for l in range(n_lin):
        x = x @ weights[l] + biases[l]
        if l < n_lin - 1:
            x = jnp.maximum(x, 0.0)
    return jax.nn.sigmoid(x)


# ----------------------------- main ------------------------------------------
if __name__ == "__main__":
    # Config consistent with RenderingNetwork (mode='idr', weight_norm, multires_view=4).
    d_feature, d_in, d_out, d_hidden, n_layers = 32, 9, 3, 64, 4
    multires_view = 4
    N = 1000  # deliberately NOT a multiple of the tile: exercises the ragged last block

    key = jax.random.PRNGKey(0)
    kp, kn, kv, kf, kparam = jax.random.split(key, 5)
    points = jax.random.normal(kp, (N, 3), jnp.float32)
    normals = jax.random.normal(kn, (N, 3), jnp.float32)
    view_dirs = jax.random.normal(kv, (N, 3), jnp.float32)
    feature_vectors = jax.random.normal(kf, (N, d_feature), jnp.float32)

    weights, biases, dims = init_rendering_network_params(
        kparam, d_feature, d_in, d_out, d_hidden, n_layers, multires_view)

    out = rendering_network_forward(points, normals, view_dirs, feature_vectors,
                                    weights, biases, mode="idr",
                                    multires_view=multires_view)
    out = jax.block_until_ready(out)
    assert out.shape == (N, d_out), out.shape

    # Reference: module-faithful f32 math on the raw f32 inputs, with the weights
    # rounded to bf16 (the kernel feeds bf16 operands to the MXU with f32 accumulation,
    # and keeps the embedding angles / transcendentals in f32).  Remaining discrepancy
    # is the in-kernel bf16 rounding of activations, ~1e-3 level, so 2e-2 is ample.
    rq = lambda a: a.astype(jnp.bfloat16).astype(jnp.float32)
    ref = rendering_network_forward_ref(
        points, normals, view_dirs, feature_vectors,
        [rq(w) for w in weights], biases,
        mode="idr", multires_view=multires_view)
    err = float(jnp.max(jnp.abs(out - ref)))
    assert err < 2e-2, f"mismatch vs JAX reference: max abs err = {err}"

    print("KERNEL_OK")
</pallas_src>

<mosaic_0001>
module attributes {stable_mosaic.version = 11 : i64} {
  func.func @kernel(%arg0: i32, %arg1: memref<128x3xf32, #tpu.memory_space<vmem>>, %arg2: memref<128x3xf32, #tpu.memory_space<vmem>>, %arg3: memref<128x3xf32, #tpu.memory_space<vmem>>, %arg4: memref<128x32xf32, #tpu.memory_space<vmem>>, %arg5: memref<64x3xbf16, #tpu.memory_space<vmem>>, %arg6: memref<64x3xbf16, #tpu.memory_space<vmem>>, %arg7: memref<64x3xbf16, #tpu.memory_space<vmem>>, %arg8: memref<64x32xbf16, #tpu.memory_space<vmem>>, %arg9: memref<64x24xbf16, #tpu.memory_space<vmem>>, %arg10: memref<64x1xf32, #tpu.memory_space<vmem>>, %arg11: memref<24x3xf32, #tpu.memory_space<vmem>>, %arg12: memref<24x1xf32, #tpu.memory_space<vmem>>, %arg13: memref<3x64x64xbf16, #tpu.memory_space<vmem>>, %arg14: memref<3x64x1xf32, #tpu.memory_space<vmem>>, %arg15: memref<3x64xbf16, #tpu.memory_space<vmem>>, %arg16: memref<3x1xf32, #tpu.memory_space<vmem>>, %arg17: memref<3x128xf32, #tpu.memory_space<vmem>>) attributes {dimension_semantics = [#tpu.dimension_semantics<parallel>], iteration_bounds = array<i64: 8>, scalar_prefetch = 0 : i64, scratch_operands = 0 : i64, tpu.core_type = #tpu.core_type<tc>, window_params = [{transform_indices = @transform_0, window_bounds = array<i64: 128, 3>}, {transform_indices = @transform_1, window_bounds = array<i64: 128, 3>}, {transform_indices = @transform_2, window_bounds = array<i64: 128, 3>}, {transform_indices = @transform_3, window_bounds = array<i64: 128, 32>}, {pipeline_mode = #tpu.pipeline_mode<synchronous>, transform_indices = @transform_4, window_bounds = array<i64: 64, 3>}, {pipeline_mode = #tpu.pipeline_mode<synchronous>, transform_indices = @transform_5, window_bounds = array<i64: 64, 3>}, {pipeline_mode = #tpu.pipeline_mode<synchronous>, transform_indices = @transform_6, window_bounds = array<i64: 64, 3>}, {pipeline_mode = #tpu.pipeline_mode<synchronous>, transform_indices = @transform_7, window_bounds = array<i64: 64, 32>}, {pipeline_mode = #tpu.pipeline_mode<synchronous>, transform_indices = @transform_8, window_bounds = array<i64: 64, 24>}, {pipeline_mode = #tpu.pipeline_mode<synchronous>, transform_indices = @transform_9, window_bounds = array<i64: 64, 1>}, {pipeline_mode = #tpu.pipeline_mode<synchronous>, transform_indices = @transform_10, window_bounds = array<i64: 24, 3>}, {pipeline_mode = #tpu.pipeline_mode<synchronous>, transform_indices = @transform_11, window_bounds = array<i64: 24, 1>}, {pipeline_mode = #tpu.pipeline_mode<synchronous>, transform_indices = @transform_12, window_bounds = array<i64: 3, 64, 64>}, {pipeline_mode = #tpu.pipeline_mode<synchronous>, transform_indices = @transform_13, window_bounds = array<i64: 3, 64, 1>}, {pipeline_mode = #tpu.pipeline_mode<synchronous>, transform_indices = @transform_14, window_bounds = array<i64: 3, 64>}, {pipeline_mode = #tpu.pipeline_mode<synchronous>, transform_indices = @transform_15, window_bounds = array<i64: 3, 1>}, {transform_indices = @transform_16, window_bounds = array<i64: 3, 128>}]} {
    %c0 = arith.constant 0 : index
    %c0_0 = arith.constant 0 : index
    %0 = vector.load %arg1[%c0, %c0_0] : memref<128x3xf32, #tpu.memory_space<vmem>>, vector<128x3xf32>
    %1 = tpu.transpose %0, [1, 0] : vector<128x3xf32> -> vector<3x128xf32>
    %c0_1 = arith.constant 0 : index
    %c0_2 = arith.constant 0 : index
    %2 = vector.load %arg2[%c0_1, %c0_2] : memref<128x3xf32, #tpu.memory_space<vmem>>, vector<128x3xf32>
    %3 = tpu.transpose %2, [1, 0] : vector<128x3xf32> -> vector<3x128xf32>
    %c0_3 = arith.constant 0 : index
    %c0_4 = arith.constant 0 : index
    %4 = vector.load %arg3[%c0_3, %c0_4] : memref<128x3xf32, #tpu.memory_space<vmem>>, vector<128x3xf32>
    %5 = tpu.transpose %4, [1, 0] : vector<128x3xf32> -> vector<3x128xf32>
    %c0_5 = arith.constant 0 : index
    %c0_6 = arith.constant 0 : index
    %6 = vector.load %arg4[%c0_5, %c0_6] : memref<128x32xf32, #tpu.memory_space<vmem>>, vector<128x32xf32>
    %7 = tpu.transpose %6, [1, 0] : vector<128x32xf32> -> vector<32x128xf32>
    %c0_7 = arith.constant 0 : index
    %c0_8 = arith.constant 0 : index
    %8 = vector.load %arg11[%c0_7, %c0_8] : memref<24x3xf32, #tpu.memory_space<vmem>>, vector<24x3xf32>
    %cst = arith.constant dense<0.000000e+00> : vector<24x128xf32>
    %9 = tpu.matmul %8, %3, %cst {dimension_numbers = #tpu.dot_dimension_numbers<[1], [0], [0], [1], [0, 0, 1, 1], [], []>, precision = #tpu.contract_precision<fp32>} : vector<24x3xf32>, vector<3x128xf32>, vector<24x128xf32> -> vector<24x128xf32>
    %c0_9 = arith.constant 0 : index
    %c0_10 = arith.constant 0 : index
    %10 = vector.load %arg12[%c0_9, %c0_10] : memref<24x1xf32, #tpu.memory_space<vmem>>, vector<24x1xf32>
    %11 = vector.broadcast %10 : vector<24x1xf32> to vector<24x128xf32>
    %12 = arith.addf %9, %11 : vector<24x128xf32>
    %13 = math.sin %12 : vector<24x128xf32>
    %14 = arith.truncf %13 : vector<24x128xf32> to vector<24x128xbf16>
    %c0_11 = arith.constant 0 : index
    %c0_12 = arith.constant 0 : index
    %15 = vector.load %arg8[%c0_11, %c0_12] : memref<64x32xbf16, #tpu.memory_space<vmem>>, vector<64x32xbf16>
    %16 = arith.truncf %7 : vector<32x128xf32> to vector<32x128xbf16>
    %cst_13 = arith.constant dense<0.000000e+00> : vector<64x128xf32>
    %17 = tpu.matmul %15, %16, %cst_13 {dimension_numbers = #tpu.dot_dimension_numbers<[1], [0], [0], [1], [0, 0, 1, 1], [], []>} : vector<64x32xbf16>, vector<32x128xbf16>, vector<64x128xf32> -> vector<64x128xf32>
    %c0_14 = arith.constant 0 : index
    %c0_15 = arith.constant 0 : index
    %18 = vector.load %arg9[%c0_14, %c0_15] : memref<64x24xbf16, #tpu.memory_space<vmem>>, vector<64x24xbf16>
    %cst_16 = arith.constant dense<0.000000e+00> : vector<64x128xf32>
    %19 = tpu.matmul %18, %14, %cst_16 {dimension_numbers = #tpu.dot_dimension_numbers<[1], [0], [0], [1], [0, 0, 1, 1], [], []>} : vector<64x24xbf16>, vector<24x128xbf16>, vector<64x128xf32> -> vector<64x128xf32>
    %20 = arith.addf %17, %19 : vector<64x128xf32>
    %c0_17 = arith.constant 0 : index
    %c0_18 = arith.constant 0 : index
    %21 = vector.load %arg5[%c0_17, %c0_18] : memref<64x3xbf16, #tpu.memory_space<vmem>>, vector<64x3xbf16>
    %22 = arith.truncf %1 : vector<3x128xf32> to vector<3x128xbf16>
    %cst_19 = arith.constant dense<0.000000e+00> : vector<64x128xf32>
    %23 = tpu.matmul %21, %22, %cst_19 {dimension_numbers = #tpu.dot_dimension_numbers<[1], [0], [0], [1], [0, 0, 1, 1], [], []>} : vector<64x3xbf16>, vector<3x128xbf16>, vector<64x128xf32> -> vector<64x128xf32>
    %24 = arith.addf %20, %23 : vector<64x128xf32>
    %c0_20 = arith.constant 0 : index
    %c0_21 = arith.constant 0 : index
    %25 = vector.load %arg6[%c0_20, %c0_21] : memref<64x3xbf16, #tpu.memory_space<vmem>>, vector<64x3xbf16>
    %26 = arith.truncf %3 : vector<3x128xf32> to vector<3x128xbf16>
    %cst_22 = arith.constant dense<0.000000e+00> : vector<64x128xf32>
    %27 = tpu.matmul %25, %26, %cst_22 {dimension_numbers = #tpu.dot_dimension_numbers<[1], [0], [0], [1], [0, 0, 1, 1], [], []>} : vector<64x3xbf16>, vector<3x128xbf16>, vector<64x128xf32> -> vector<64x128xf32>
    %28 = arith.addf %24, %27 : vector<64x128xf32>
    %c0_23 = arith.constant 0 : index
    %c0_24 = arith.constant 0 : index
    %29 = vector.load %arg7[%c0_23, %c0_24] : memref<64x3xbf16, #tpu.memory_space<vmem>>, vector<64x3xbf16>
    %30 = arith.truncf %5 : vector<3x128xf32> to vector<3x128xbf16>
    %cst_25 = arith.constant dense<0.000000e+00> : vector<64x128xf32>
    %31 = tpu.matmul %29, %30, %cst_25 {dimension_numbers = #tpu.dot_dimension_numbers<[1], [0], [0], [1], [0, 0, 1, 1], [], []>} : vector<64x3xbf16>, vector<3x128xbf16>, vector<64x128xf32> -> vector<64x128xf32>
    %32 = arith.addf %28, %31 : vector<64x128xf32>
    %c0_26 = arith.constant 0 : index
    %c0_27 = arith.constant 0 : index
    %33 = vector.load %arg10[%c0_26, %c0_27] : memref<64x1xf32, #tpu.memory_space<vmem>>, vector<64x1xf32>
    %34 = vector.broadcast %33 : vector<64x1xf32> to vector<64x128xf32>
    %35 = arith.addf %32, %34 : vector<64x128xf32>
    %cst_28 = arith.constant 0.000000e+00 : f32
    %36 = vector.broadcast %cst_28 : f32 to vector<64x128xf32>
    %37 = arith.maximumf %35, %36 : vector<64x128xf32>
    %c0_29 = arith.constant 0 : index
    %c0_30 = arith.constant 0 : index
    %c0_31 = arith.constant 0 : index
    %38 = vector.load %arg13[%c0_29, %c0_30, %c0_31] : memref<3x64x64xbf16, #tpu.memory_space<vmem>>, vector<1x64x64xbf16>
    %39 = vector.shape_cast %38 : vector<1x64x64xbf16> to vector<64x64xbf16>
    %40 = arith.truncf %37 : vector<64x128xf32> to vector<64x128xbf16>
    %cst_32 = arith.constant dense<0.000000e+00> : vector<64x128xf32>
    %41 = tpu.matmul %39, %40, %cst_32 {dimension_numbers = #tpu.dot_dimension_numbers<[1], [0], [0], [1], [0, 0, 1, 1], [], []>} : vector<64x64xbf16>, vector<64x128xbf16>, vector<64x128xf32> -> vector<64x128xf32>
    %c0_33 = arith.constant 0 : index
    %c0_34 = arith.constant 0 : index
    %c0_35 = arith.constant 0 : index
    %42 = vector.load %arg14[%c0_33, %c0_34, %c0_35] : memref<3x64x1xf32, #tpu.memory_space<vmem>>, vector<1x64x1xf32>
    %43 = vector.shape_cast %42 : vector<1x64x1xf32> to vector<64x1xf32>
    %44 = vector.broadcast %43 : vector<64x1xf32> to vector<64x128xf32>
    %45 = arith.addf %41, %44 : vector<64x128xf32>
    %cst_36 = arith.constant 0.000000e+00 : f32
    %46 = vector.broadcast %cst_36 : f32 to vector<64x128xf32>
    %47 = arith.maximumf %45, %46 : vector<64x128xf32>
    %c1 = arith.constant 1 : index
    %c0_37 = arith.constant 0 : index
    %c0_38 = arith.constant 0 : index
    %48 = vector.load %arg13[%c1, %c0_37, %c0_38] : memref<3x64x64xbf16, #tpu.memory_space<vmem>>, vector<1x64x64xbf16>
    %49 = vector.shape_cast %48 : vector<1x64x64xbf16> to vector<64x64xbf16>
    %50 = arith.truncf %47 : vector<64x128xf32> to vector<64x128xbf16>
    %cst_39 = arith.constant dense<0.000000e+00> : vector<64x128xf32>
    %51 = tpu.matmul %49, %50, %cst_39 {dimension_numbers = #tpu.dot_dimension_numbers<[1], [0], [0], [1], [0, 0, 1, 1], [], []>} : vector<64x64xbf16>, vector<64x128xbf16>, vector<64x128xf32> -> vector<64x128xf32>
    %c1_40 = arith.constant 1 : index
    %c0_41 = arith.constant 0 : index
    %c0_42 = arith.constant 0 : index
    %52 = vector.load %arg14[%c1_40, %c0_41, %c0_42] : memref<3x64x1xf32, #tpu.memory_space<vmem>>, vector<1x64x1xf32>
    %53 = vector.shape_cast %52 : vector<1x64x1xf32> to vector<64x1xf32>
    %54 = vector.broadcast %53 : vector<64x1xf32> to vector<64x128xf32>
    %55 = arith.addf %51, %54 : vector<64x128xf32>
    %cst_43 = arith.constant 0.000000e+00 : f32
    %56 = vector.broadcast %cst_43 : f32 to vector<64x128xf32>
    %57 = arith.maximumf %55, %56 : vector<64x128xf32>
    %c2 = arith.constant 2 : index
    %c0_44 = arith.constant 0 : index
    %c0_45 = arith.constant 0 : index
    %58 = vector.load %arg13[%c2, %c0_44, %c0_45] : memref<3x64x64xbf16, #tpu.memory_space<vmem>>, vector<1x64x64xbf16>
    %59 = vector.shape_cast %58 : vector<1x64x64xbf16> to vector<64x64xbf16>
    %60 = arith.truncf %57 : vector<64x128xf32> to vector<64x128xbf16>
    %cst_46 = arith.constant dense<0.000000e+00> : vector<64x128xf32>
    %61 = tpu.matmul %59, %60, %cst_46 {dimension_numbers = #tpu.dot_dimension_numbers<[1], [0], [0], [1], [0, 0, 1, 1], [], []>} : vector<64x64xbf16>, vector<64x128xbf16>, vector<64x128xf32> -> vector<64x128xf32>
    %c2_47 = arith.constant 2 : index
    %c0_48 = arith.constant 0 : index
    %c0_49 = arith.constant 0 : index
    %62 = vector.load %arg14[%c2_47, %c0_48, %c0_49] : memref<3x64x1xf32, #tpu.memory_space<vmem>>, vector<1x64x1xf32>
    %63 = vector.shape_cast %62 : vector<1x64x1xf32> to vector<64x1xf32>
    %64 = vector.broadcast %63 : vector<64x1xf32> to vector<64x128xf32>
    %65 = arith.addf %61, %64 : vector<64x128xf32>
    %cst_50 = arith.constant 0.000000e+00 : f32
    %66 = vector.broadcast %cst_50 : f32 to vector<64x128xf32>
    %67 = arith.maximumf %65, %66 : vector<64x128xf32>
    %c0_51 = arith.constant 0 : index
    %c0_52 = arith.constant 0 : index
    %68 = vector.load %arg15[%c0_51, %c0_52] : memref<3x64xbf16, #tpu.memory_space<vmem>>, vector<3x64xbf16>
    %69 = arith.truncf %67 : vector<64x128xf32> to vector<64x128xbf16>
    %cst_53 = arith.constant dense<0.000000e+00> : vector<3x128xf32>
    %70 = tpu.matmul %68, %69, %cst_53 {dimension_numbers = #tpu.dot_dimension_numbers<[1], [0], [0], [1], [0, 0, 1, 1], [], []>} : vector<3x64xbf16>, vector<64x128xbf16>, vector<3x128xf32> -> vector<3x128xf32>
    %c0_54 = arith.constant 0 : index
    %c0_55 = arith.constant 0 : index
    %71 = vector.load %arg16[%c0_54, %c0_55] : memref<3x1xf32, #tpu.memory_space<vmem>>, vector<3x1xf32>
    %72 = vector.broadcast %71 : vector<3x1xf32> to vector<3x128xf32>
    %73 = arith.addf %70, %72 : vector<3x128xf32>
    %74 = arith.negf %73 : vector<3x128xf32>
    %75 = math.exp %74 : vector<3x128xf32>
    %cst_56 = arith.constant 1.000000e+00 : f32
    %76 = vector.broadcast %cst_56 : f32 to vector<3x128xf32>
    %77 = arith.addf %76, %75 : vector<3x128xf32>
    %78 = arith.divf %76, %77 : vector<3x128xf32>
    %c0_57 = arith.constant 0 : index
    %c0_58 = arith.constant 0 : index
    %79 = vector.load %arg17[%c0_57, %c0_58] : memref<3x128xf32, #tpu.memory_space<vmem>>, vector<3x128xf32>
    tpu.vector_store %arg17[%c0_57, %c0_58], %78 {strides = array<i32>} : memref<3x128xf32, #tpu.memory_space<vmem>>, vector<3x128xf32>,
    return
  }
  func.func @transform_0(%arg0: i32) -> (i32, i32) {
    %c0_i32 = arith.constant 0 : i32
    %c0_i32_0 = arith.constant 0 : i32
    return %arg0, %c0_i32 : i32, i32
  }
  func.func @transform_1(%arg0: i32) -> (i32, i32) {
    %c0_i32 = arith.constant 0 : i32
    %c0_i32_0 = arith.constant 0 : i32
    return %arg0, %c0_i32 : i32, i32
  }
  func.func @transform_2(%arg0: i32) -> (i32, i32) {
    %c0_i32 = arith.constant 0 : i32
    %c0_i32_0 = arith.constant 0 : i32
    return %arg0, %c0_i32 : i32, i32
  }
  func.func @transform_3(%arg0: i32) -> (i32, i32) {
    %c0_i32 = arith.constant 0 : i32
    %c0_i32_0 = arith.constant 0 : i32
    return %arg0, %c0_i32 : i32, i32
  }
  func.func @transform_4(%arg0: i32) -> (i32, i32) {
    %c0_i32 = arith.constant 0 : i32
    %c0_i32_0 = arith.constant 0 : i32
    %c0_i32_1 = arith.constant 0 : i32
    return %c0_i32, %c0_i32_0 : i32, i32
  }
  func.func @transform_5(%arg0: i32) -> (i32, i32) {
    %c0_i32 = arith.constant 0 : i32
    %c0_i32_0 = arith.constant 0 : i32
    %c0_i32_1 = arith.constant 0 : i32
    return %c0_i32, %c0_i32_0 : i32, i32
  }
  func.func @transform_6(%arg0: i32) -> (i32, i32) {
    %c0_i32 = arith.constant 0 : i32
    %c0_i32_0 = arith.constant 0 : i32
    %c0_i32_1 = arith.constant 0 : i32
    return %c0_i32, %c0_i32_0 : i32, i32
  }
  func.func @transform_7(%arg0: i32) -> (i32, i32) {
    %c0_i32 = arith.constant 0 : i32
    %c0_i32_0 = arith.constant 0 : i32
    %c0_i32_1 = arith.constant 0 : i32
    return %c0_i32, %c0_i32_0 : i32, i32
  }
  func.func @transform_8(%arg0: i32) -> (i32, i32) {
    %c0_i32 = arith.constant 0 : i32
    %c0_i32_0 = arith.constant 0 : i32
    %c0_i32_1 = arith.constant 0 : i32
    return %c0_i32, %c0_i32_0 : i32, i32
  }
  func.func @transform_9(%arg0: i32) -> (i32, i32) {
    %c0_i32 = arith.constant 0 : i32
    %c0_i32_0 = arith.constant 0 : i32
    %c0_i32_1 = arith.constant 0 : i32
    return %c0_i32, %c0_i32_0 : i32, i32
  }
  func.func @transform_10(%arg0: i32) -> (i32, i32) {
    %c0_i32 = arith.constant 0 : i32
    %c0_i32_0 = arith.constant 0 : i32
    %c0_i32_1 = arith.constant 0 : i32
    return %c0_i32, %c0_i32_0 : i32, i32
  }
  func.func @transform_11(%arg0: i32) -> (i32, i32) {
    %c0_i32 = arith.constant 0 : i32
    %c0_i32_0 = arith.constant 0 : i32
    %c0_i32_1 = arith.constant 0 : i32
    return %c0_i32, %c0_i32_0 : i32, i32
  }
  func.func @transform_12(%arg0: i32) -> (i32, i32, i32) {
    %c0_i32 = arith.constant 0 : i32
    %c0_i32_0 = arith.constant 0 : i32
    %c0_i32_1 = arith.constant 0 : i32
    %c0_i32_2 = arith.constant 0 : i32
    return %c0_i32, %c0_i32_0, %c0_i32_1 : i32, i32, i32
  }
  func.func @transform_13(%arg0: i32) -> (i32, i32, i32) {
    %c0_i32 = arith.constant 0 : i32
    %c0_i32_0 = arith.constant 0 : i32
    %c0_i32_1 = arith.constant 0 : i32
    %c0_i32_2 = arith.constant 0 : i32
    return %c0_i32, %c0_i32_0, %c0_i32_1 : i32, i32, i32
  }
  func.func @transform_14(%arg0: i32) -> (i32, i32) {
    %c0_i32 = arith.constant 0 : i32
    %c0_i32_0 = arith.constant 0 : i32
    %c0_i32_1 = arith.constant 0 : i32
    return %c0_i32, %c0_i32_0 : i32, i32
  }
  func.func @transform_15(%arg0: i32) -> (i32, i32) {
    %c0_i32 = arith.constant 0 : i32
    %c0_i32_0 = arith.constant 0 : i32
    %c0_i32_1 = arith.constant 0 : i32
    return %c0_i32, %c0_i32_0 : i32, i32
  }
  func.func @transform_16(%arg0: i32) -> (i32, i32) {
    %c0_i32 = arith.constant 0 : i32
    %c0_i32_0 = arith.constant 0 : i32
    return %c0_i32, %arg0 : i32, i32
  }
}

</mosaic_0001>

<llo_original>
// kernel: tpu_custom_call.1
$region0: #{tpu_custom_call.1}
  #allocation0 [shape = 'u32[]', space=smem, size = 0x4, offset = 0x4, fixed_abs, tag = 'smem constant byte address 0x4 - core index']
  #allocation1 [shape = 'u32[144,128]{1,0:T(1,128)}', space=vmem, size = 0x12000, scoped, tag = 'internal scratch']
  %s0 = inlined_call_operand.vmem [shape: f32[1000,3], index: 0, kind: input, shape index: {}]
  %s1 = inlined_call_operand.vmem [shape: f32[1000,3], index: 1, kind: input, shape index: {}]
  %s2 = inlined_call_operand.vmem [shape: f32[1000,3], index: 2, kind: input, shape index: {}]
  %s3 = inlined_call_operand.vmem [shape: f32[1000,32], index: 3, kind: input, shape index: {}]
  %s4 = inlined_call_operand.vmem [shape: bf16[64,3], index: 4, kind: input, shape index: {}]
  %s5 = inlined_call_operand.vmem [shape: bf16[64,3], index: 5, kind: input, shape index: {}]
  %s6 = inlined_call_operand.vmem [shape: bf16[64,3], index: 6, kind: input, shape index: {}]
  %s7 = inlined_call_operand.vmem [shape: bf16[64,32], index: 7, kind: input, shape index: {}]
  %s8 = inlined_call_operand.vmem [shape: bf16[64,24], index: 8, kind: input, shape index: {}]
  %s9 = inlined_call_operand.vmem [shape: f32[64,1], index: 9, kind: input, shape index: {}]
  %s10 = inlined_call_operand.vmem [shape: f32[24,3], index: 10, kind: input, shape index: {}]
  %s11 = inlined_call_operand.vmem [shape: f32[24,1], index: 11, kind: input, shape index: {}]
  %s12 = inlined_call_operand.vmem [shape: bf16[3,64,64], index: 12, kind: input, shape index: {}]
  %s13 = inlined_call_operand.vmem [shape: f32[3,64,1], index: 13, kind: input, shape index: {}]
  %s14 = inlined_call_operand.vmem [shape: bf16[3,64], index: 14, kind: input, shape index: {}]
  %s15 = inlined_call_operand.vmem [shape: f32[3,1], index: 15, kind: input, shape index: {}]
  %s16 = inlined_call_operand.hbm [shape: f32[3,1000], index: 16, kind: output, shape index: {}]
  %s17 = sld [smem:[#allocation0]]
  $region97: #{tpu_custom_call.1} parent=0
    _
  %s19 = ssub.s32 1, %s17
  %s20 = scalar_select 0, %s19, %s17
  $region1: #{tpu_custom_call.1} parent=0
    #allocation2 [shape = 'u8[4096]{0}', space=vmem, size = 0x1000, scoped, tag = 'output window, operand 0']
    #allocation3 [shape = 's32[2]{0}', space=sflag, size = 0x8, scoped, tag = 'scoped memory for tpu_custom_call.1']
    %21 = vsyncpa [#allocation3], 0
    %s22 = scalar_lea.sflag [#allocation3], 1
    %23 = vsyncpa %s22, 0
    loop: start=0, step=1, limit=10
    $region2: #{tpu_custom_call.1} parent=1 // loop_pre_header
      _
    $region3: #{tpu_custom_call.1} parent=1 // loop_header
      %s25 = sphi 0, %s29
      %p26 = scmp.ge.s32.totalorder %s25, 10
      %s35 = sphi 0, %s37
      %s38 = sphi 0, %s35
      %s39 = sphi 0, %s38
      %s55 = sphi 0, %s39
      %s61 = sphi 0, %s63
      %s64 = sphi 0, %s61
      %s65 = sphi 0, %s64
      %s81 = sphi 0, %s65
      %s87 = sphi 0, %s89
      %s90 = sphi 0, %s87
      %s91 = sphi 0, %s90
      %s107 = sphi 0, %s91
      %s113 = sphi 0, %s115
      %s116 = sphi 0, %s113
      %s117 = sphi 0, %s116
      %s133 = sphi 0, %s117
      %s137 = sphi 0, %s137
      %s139 = sphi 0, %s137
      %s140 = sphi 0, %s139
      %s154 = sphi 0, %s140
      %s158 = sphi 0, %s158
      %s160 = sphi 0, %s158
      %s161 = sphi 0, %s160
      %s175 = sphi 0, %s161
      %s179 = sphi 0, %s179
      %s181 = sphi 0, %s179
      %s182 = sphi 0, %s181
      %s196 = sphi 0, %s182
      %s200 = sphi 0, %s200
      %s202 = sphi 0, %s200
      %s203 = sphi 0, %s202
      %s217 = sphi 0, %s203
      %s221 = sphi 0, %s221
      %s223 = sphi 0, %s221
      %s224 = sphi 0, %s223
      %s238 = sphi 0, %s224
      %s242 = sphi 0, %s242
      %s244 = sphi 0, %s242
      %s245 = sphi 0, %s244
      %s259 = sphi 0, %s245
      %s263 = sphi 0, %s263
      %s265 = sphi 0, %s263
      %s266 = sphi 0, %s265
      %s280 = sphi 0, %s266
      %s284 = sphi 0, %s284
      %s286 = sphi 0, %s284
      %s287 = sphi 0, %s286
      %s301 = sphi 0, %s287
      %s305 = sphi 0, %s305
      %s307 = sphi 0, %s305
      %s308 = sphi 0, %s307
      %s322 = sphi 0, %s308
      %s326 = sphi 0, %s326
      %s328 = sphi 0, %s326
      %s329 = sphi 0, %s328
      %s343 = sphi 0, %s329
      %s347 = sphi 0, %s347
      %s349 = sphi 0, %s347
      %s350 = sphi 0, %s349
      %s364 = sphi 0, %s350
      %s368 = sphi 0, %s368
      %s370 = sphi 0, %s368
      %s371 = sphi 0, %s370
      %s385 = sphi 0, %s371
      %s391 = sphi 0, %s393
      %s394 = sphi 0, %s391
      %s395 = sphi 0, %s394
      %s411 = sphi 0, %s395
    $region4: #{tpu_custom_call.1} parent=1 // loop_header_branch
      %28 = sbr.rel (%p26) target = $region8
    $region5: #{tpu_custom_call.1} parent=1 // loop_body
      %s30 = ssub.s32 %s25, 1
      %s31 = ssub.s32 %s25, 2
      %s32 = sadd.s32 %s25, 1
      %s33 = ssub.s32 %s25, %s32
      %p34 = scmp.eq.s32.totalorder %s33, 0
      %s36 = sadd.s32 %s35, 1
      %s37 = scalar_select %p34, %s35, %s36
      %p40 = pneg %p34
      %p41 = scmp.eq.s32.totalorder %s25, 7
      %p42 = por %p40, %p41
      %p43 = scmp.ne.s32.totalorder %s35, %s38
      %p44 = scmp.eq.s32.totalorder %s25, 0
      %p45 = por %p43, %p44
      %p46 = scmp.ne.s32.totalorder %s35, %s38
      %p47 = scmp.eq.s32.totalorder %s30, 7
      %p48 = por %p46, %p47
      %p49 = scmp.ne.s32.totalorder %s38, %s39
      %p50 = scmp.eq.s32.totalorder %s30, 0
      %p51 = por %p49, %p50
      %p52 = scmp.ne.s32.totalorder %s38, %s39
      %p53 = scmp.eq.s32.totalorder %s31, 7
      %p54 = por %p52, %p53
      %p56 = scmp.ne.s32.totalorder %s39, %s55
      %p57 = scmp.eq.s32.totalorder %s31, 0
      %p58 = por %p56, %p57
      %s59 = ssub.s32 %s25, %s32
      %p60 = scmp.eq.s32.totalorder %s59, 0
      %s62 = sadd.s32 %s61, 1
      %s63 = scalar_select %p60, %s61, %s62
      %p66 = pneg %p60
      %p67 = scmp.eq.s32.totalorder %s25, 7
      %p68 = por %p66, %p67
      %p69 = scmp.ne.s32.totalorder %s61, %s64
      %p70 = scmp.eq.s32.totalorder %s25, 0
      %p71 = por %p69, %p70
      %p72 = scmp.ne.s32.totalorder %s61, %s64
      %p73 = scmp.eq.s32.totalorder %s30, 7
      %p74 = por %p72, %p73
      %p75 = scmp.ne.s32.totalorder %s64, %s65
      %p76 = scmp.eq.s32.totalorder %s30, 0
      %p77 = por %p75, %p76
      %p78 = scmp.ne.s32.totalorder %s64, %s65
      %p79 = scmp.eq.s32.totalorder %s31, 7
      %p80 = por %p78, %p79
      %p82 = scmp.ne.s32.totalorder %s65, %s81
      %p83 = scmp.eq.s32.totalorder %s31, 0
      %p84 = por %p82, %p83
      %s85 = ssub.s32 %s25, %s32
      %p86 = scmp.eq.s32.totalorder %s85, 0
      %s88 = sadd.s32 %s87, 1
      %s89 = scalar_select %p86, %s87, %s88
      %p92 = pneg %p86
      %p93 = scmp.eq.s32.totalorder %s25, 7
      %p94 = por %p92, %p93
      %p95 = scmp.ne.s32.totalorder %s87, %s90
      %p96 = scmp.eq.s32.totalorder %s25, 0
      %p97 = por %p95, %p96
      %p98 = scmp.ne.s32.totalorder %s87, %s90
      %p99 = scmp.eq.s32.totalorder %s30, 7
      %p100 = por %p98, %p99
      %p101 = scmp.ne.s32.totalorder %s90, %s91
      %p102 = scmp.eq.s32.totalorder %s30, 0
      %p103 = por %p101, %p102
      %p104 = scmp.ne.s32.totalorder %s90, %s91
      %p105 = scmp.eq.s32.totalorder %s31, 7
      %p106 = por %p104, %p105
      %p108 = scmp.ne.s32.totalorder %s91, %s107
      %p109 = scmp.eq.s32.totalorder %s31, 0
      %p110 = por %p108, %p109
      %s111 = ssub.s32 %s25, %s32
      %p112 = scmp.eq.s32.totalorder %s111, 0
      %s114 = sadd.s32 %s113, 1
      %s115 = scalar_select %p112, %s113, %s114
      %p118 = pneg %p112
      %p119 = scmp.eq.s32.totalorder %s25, 7
      %p120 = por %p118, %p119
      %p121 = scmp.ne.s32.totalorder %s113, %s116
      %p122 = scmp.eq.s32.totalorder %s25, 0
      %p123 = por %p121, %p122
      %p124 = scmp.ne.s32.totalorder %s113, %s116
      %p125 = scmp.eq.s32.totalorder %s30, 7
      %p126 = por %p124, %p125
      %p127 = scmp.ne.s32.totalorder %s116, %s117
      %p128 = scmp.eq.s32.totalorder %s30, 0
      %p129 = por %p127, %p128
      %p130 = scmp.ne.s32.totalorder %s116, %s117
      %p131 = scmp.eq.s32.totalorder %s31, 7
      %p132 = por %p130, %p131
      %p134 = scmp.ne.s32.totalorder %s117, %s133
      %p135 = scmp.eq.s32.totalorder %s31, 0
      %p136 = por %p134, %p135
      %s138 = sadd.s32 %s137, 1
      %p141 = scmp.eq.s32.totalorder %s25, 7
      %p142 = scmp.ne.s32.totalorder %s137, %s139
      %p143 = scmp.eq.s32.totalorder %s25, 0
      %p144 = por %p142, %p143
      %p145 = scmp.ne.s32.totalorder %s137, %s139
      %p146 = scmp.eq.s32.totalorder %s30, 7
      %p147 = por %p145, %p146
      %p148 = scmp.ne.s32.totalorder %s139, %s140
      %p149 = scmp.eq.s32.totalorder %s30, 0
      %p150 = por %p148, %p149
      %p151 = scmp.ne.s32.totalorder %s139, %s140
      %p152 = scmp.eq.s32.totalorder %s31, 7
      %p153 = por %p151, %p152
      %p155 = scmp.ne.s32.totalorder %s140, %s154
      %p156 = scmp.eq.s32.totalorder %s31, 0
      %p157 = por %p155, %p156
      %s159 = sadd.s32 %s158, 1
      %p162 = scmp.eq.s32.totalorder %s25, 7
      %p163 = scmp.ne.s32.totalorder %s158, %s160
      %p164 = scmp.eq.s32.totalorder %s25, 0
      %p165 = por %p163, %p164
      %p166 = scmp.ne.s32.totalorder %s158, %s160
      %p167 = scmp.eq.s32.totalorder %s30, 7
      %p168 = por %p166, %p167
      %p169 = scmp.ne.s32.totalorder %s160, %s161
      %p170 = scmp.eq.s32.totalorder %s30, 0
      %p171 = por %p169, %p170
      %p172 = scmp.ne.s32.totalorder %s160, %s161
      %p173 = scmp.eq.s32.totalorder %s31, 7
      %p174 = por %p172, %p173
      %p176 = scmp.ne.s32.totalorder %s161, %s175
      %p177 = scmp.eq.s32.totalorder %s31, 0
      %p178 = por %p176, %p177
      %s180 = sadd.s32 %s179, 1
      %p183 = scmp.eq.s32.totalorder %s25, 7
      %p184 = scmp.ne.s32.totalorder %s179, %s181
      %p185 = scmp.eq.s32.totalorder %s25, 0
      %p186 = por %p184, %p185
      %p187 = scmp.ne.s32.totalorder %s179, %s181
      %p188 = scmp.eq.s32.totalorder %s30, 7
      %p189 = por %p187, %p188
      %p190 = scmp.ne.s32.totalorder %s181, %s182
      %p191 = scmp.eq.s32.totalorder %s30, 0
      %p192 = por %p190, %p191
      %p193 = scmp.ne.s32.totalorder %s181, %s182
      %p194 = scmp.eq.s32.totalorder %s31, 7
      %p195 = por %p193, %p194
      %p197 = scmp.ne.s32.totalorder %s182, %s196
      %p198 = scmp.eq.s32.totalorder %s31, 0
      %p199 = por %p197, %p198
      %s201 = sadd.s32 %s200, 1
      %p204 = scmp.eq.s32.totalorder %s25, 7
      %p205 = scmp.ne.s32.totalorder %s200, %s202
      %p206 = scmp.eq.s32.totalorder %s25, 0
      %p207 = por %p205, %p206
      %p208 = scmp.ne.s32.totalorder %s200, %s202
      %p209 = scmp.eq.s32.totalorder %s30, 7
      %p210 = por %p208, %p209
      %p211 = scmp.ne.s32.totalorder %s202, %s203
      %p212 = scmp.eq.s32.totalorder %s30, 0
      %p213 = por %p211, %p212
      %p214 = scmp.ne.s32.totalorder %s202, %s203
      %p215 = scmp.eq.s32.totalorder %s31, 7
      %p216 = por %p214, %p215
      %p218 = scmp.ne.s32.totalorder %s203, %s217
      %p219 = scmp.eq.s32.totalorder %s31, 0
      %p220 = por %p218, %p219
      %s222 = sadd.s32 %s221, 1
      %p225 = scmp.eq.s32.totalorder %s25, 7
      %p226 = scmp.ne.s32.totalorder %s221, %s223
      %p227 = scmp.eq.s32.totalorder %s25, 0
      %p228 = por %p226, %p227
      %p229 = scmp.ne.s32.totalorder %s221, %s223
      %p230 = scmp.eq.s32.totalorder %s30, 7
      %p231 = por %p229, %p230
      %p232 = scmp.ne.s32.totalorder %s223, %s224
      %p233 = scmp.eq.s32.totalorder %s30, 0
      %p234 = por %p232, %p233
      %p235 = scmp.ne.s32.totalorder %s223, %s224
      %p236 = scmp.eq.s32.totalorder %s31, 7
      %p237 = por %p235, %p236
      %p239 = scmp.ne.s32.totalorder %s224, %s238
      %p240 = scmp.eq.s32.totalorder %s31, 0
      %p241 = por %p239, %p240
      %s243 = sadd.s32 %s242, 1
      %p246 = scmp.eq.s32.totalorder %s25, 7
      %p247 = scmp.ne.s32.totalorder %s242, %s244
      %p248 = scmp.eq.s32.totalorder %s25, 0
      %p249 = por %p247, %p248
      %p250 = scmp.ne.s32.totalorder %s242, %s244
      %p251 = scmp.eq.s32.totalorder %s30, 7
      %p252 = por %p250, %p251
      %p253 = scmp.ne.s32.totalorder %s244, %s245
      %p254 = scmp.eq.s32.totalorder %s30, 0
      %p255 = por %p253, %p254
      %p256 = scmp.ne.s32.totalorder %s244, %s245
      %p257 = scmp.eq.s32.totalorder %s31, 7
      %p258 = por %p256, %p257
      %p260 = scmp.ne.s32.totalorder %s245, %s259
      %p261 = scmp.eq.s32.totalorder %s31, 0
      %p262 = por %p260, %p261
      %s264 = sadd.s32 %s263, 1
      %p267 = scmp.eq.s32.totalorder %s25, 7
      %p268 = scmp.ne.s32.totalorder %s263, %s265
      %p269 = scmp.eq.s32.totalorder %s25, 0
      %p270 = por %p268, %p269
      %p271 = scmp.ne.s32.totalorder %s263, %s265
      %p272 = scmp.eq.s32.totalorder %s30, 7
      %p273 = por %p271, %p272
      %p274 = scmp.ne.s32.totalorder %s265, %s266
      %p275 = scmp.eq.s32.totalorder %s30, 0
      %p276 = por %p274, %p275
      %p277 = scmp.ne.s32.totalorder %s265, %s266
      %p278 = scmp.eq.s32.totalorder %s31, 7
      %p279 = por %p277, %p278
      %p281 = scmp.ne.s32.totalorder %s266, %s280
      %p282 = scmp.eq.s32.totalorder %s31, 0
      %p283 = por %p281, %p282
      %s285 = sadd.s32 %s284, 1
      %p288 = scmp.eq.s32.totalorder %s25, 7
      %p289 = scmp.ne.s32.totalorder %s284, %s286
      %p290 = scmp.eq.s32.totalorder %s25, 0
      %p291 = por %p289, %p290
      %p292 = scmp.ne.s32.totalorder %s284, %s286
      %p293 = scmp.eq.s32.totalorder %s30, 7
      %p294 = por %p292, %p293
      %p295 = scmp.ne.s32.totalorder %s286, %s287
      %p296 = scmp.eq.s32.totalorder %s30, 0
      %p297 = por %p295, %p296
      %p298 = scmp.ne.s32.totalorder %s286, %s287
      %p299 = scmp.eq.s32.totalorder %s31, 7
      %p300 = por %p298, %p299
      %p302 = scmp.ne.s32.totalorder %s287, %s301
      %p303 = scmp.eq.s32.totalorder %s31, 0
      %p304 = por %p302, %p303
      %s306 = sadd.s32 %s305, 1
      %p309 = scmp.eq.s32.totalorder %s25, 7
      %p310 = scmp.ne.s32.totalorder %s305, %s307
      %p311 = scmp.eq.s32.totalorder %s25, 0
      %p312 = por %p310, %p311
      %p313 = scmp.ne.s32.totalorder %s305, %s307
      %p314 = scmp.eq.s32.totalorder %s30, 7
      %p315 = por %p313, %p314
      %p316 = scmp.ne.s32.totalorder %s307, %s308
      %p317 = scmp.eq.s32.totalorder %s30, 0
      %p318 = por %p316, %p317
      %p319 = scmp.ne.s32.totalorder %s307, %s308
      %p320 = scmp.eq.s32.totalorder %s31, 7
      %p321 = por %p319, %p320
      %p323 = scmp.ne.s32.totalorder %s308, %s322
      %p324 = scmp.eq.s32.totalorder %s31, 0
      %p325 = por %p323, %p324
      %s327 = sadd.s32 %s326, 1
      %p330 = scmp.eq.s32.totalorder %s25, 7
      %p331 = scmp.ne.s32.totalorder %s326, %s328
      %p332 = scmp.eq.s32.totalorder %s25, 0
      %p333 = por %p331, %p332
      %p334 = scmp.ne.s32.totalorder %s326, %s328
      %p335 = scmp.eq.s32.totalorder %s30, 7
      %p336 = por %p334, %p335
      %p337 = scmp.ne.s32.totalorder %s328, %s329
      %p338 = scmp.eq.s32.totalorder %s30, 0
      %p339 = por %p337, %p338
      %p340 = scmp.ne.s32.totalorder %s328, %s329
      %p341 = scmp.eq.s32.totalorder %s31, 7
      %p342 = por %p340, %p341
      %p344 = scmp.ne.s32.totalorder %s329, %s343
      %p345 = scmp.eq.s32.totalorder %s31, 0
      %p346 = por %p344, %p345
      %s348 = sadd.s32 %s347, 1
      %p351 = scmp.eq.s32.totalorder %s25, 7
      %p352 = scmp.ne.s32.totalorder %s347, %s349
      %p353 = scmp.eq.s32.totalorder %s25, 0
      %p354 = por %p352, %p353
      %p355 = scmp.ne.s32.totalorder %s347, %s349
      %p356 = scmp.eq.s32.totalorder %s30, 7
      %p357 = por %p355, %p356
      %p358 = scmp.ne.s32.totalorder %s349, %s350
      %p359 = scmp.eq.s32.totalorder %s30, 0
      %p360 = por %p358, %p359
      %p361 = scmp.ne.s32.totalorder %s349, %s350
      %p362 = scmp.eq.s32.totalorder %s31, 7
      %p363 = por %p361, %p362
      %p365 = scmp.ne.s32.totalorder %s350, %s364
      %p366 = scmp.eq.s32.totalorder %s31, 0
      %p367 = por %p365, %p366
      %s369 = sadd.s32 %s368, 1
      %p372 = scmp.eq.s32.totalorder %s25, 7
      %p373 = scmp.ne.s32.totalorder %s368, %s370
      %p374 = scmp.eq.s32.totalorder %s25, 0
      %p375 = por %p373, %p374
      %p376 = scmp.ne.s32.totalorder %s368, %s370
      %p377 = scmp.eq.s32.totalorder %s30, 7
      %p378 = por %p376, %p377
      %p379 = scmp.ne.s32.totalorder %s370, %s371
      %p380 = scmp.eq.s32.totalorder %s30, 0
      %p381 = por %p379, %p380
      %p382 = scmp.ne.s32.totalorder %s370, %s371
      %p383 = scmp.eq.s32.totalorder %s31, 7
      %p384 = por %p382, %p383
      %p386 = scmp.ne.s32.totalorder %s371, %s385
      %p387 = scmp.eq.s32.totalorder %s31, 0
      %p388 = por %p386, %p387
      %s389 = ssub.s32 %s25, %s32
      %p390 = scmp.eq.s32.totalorder %s389, 0
      %s392 = sadd.s32 %s391, 1
      %s393 = scalar_select %p390, %s391, %s392
      %p396 = pneg %p390
      %p397 = scmp.eq.s32.totalorder %s25, 7
      %p398 = por %p396, %p397
      %p399 = scmp.ne.s32.totalorder %s391, %s394
      %p400 = scmp.eq.s32.totalorder %s25, 0
      %p401 = por %p399, %p400
      %p402 = scmp.ne.s32.totalorder %s391, %s394
      %p403 = scmp.eq.s32.totalorder %s30, 7
      %p404 = por %p402, %p403
      %p405 = scmp.ne.s32.totalorder %s394, %s395
      %p406 = scmp.eq.s32.totalorder %s30, 0
      %p407 = por %p405, %p406
      %p408 = scmp.ne.s32.totalorder %s394, %s395
      %p409 = scmp.eq.s32.totalorder %s31, 7
      %p410 = por %p408, %p409
      %p412 = scmp.ne.s32.totalorder %s395, %s411
      %p413 = scmp.eq.s32.totalorder %s31, 0
      %p414 = por %p412, %p413
      %p415 = scmp.le.s32.totalorder 1, %s25
      %p416 = scmp.lt.s32.totalorder %s25, 9
      %p417 = pnand %p415, %p416
      %p418 = pneg %p417
      // Predicated region
      $region9: #{tpu_custom_call.1} parent=5 // pred_check
        _
      $region10: #{tpu_custom_call.1} parent=5 // pred_check_branch
        %420 = sbr.rel (%p417) target = $region12
      $region11: #{tpu_custom_call.1} parent=5 // pred_region
        %s421 = ssub.s32 %s25, 1
        // Predicated region
        $region13: #{tpu_custom_call.1} parent=11 // pred_check
          %p422 = pneg %p150
        $region14: #{tpu_custom_call.1} parent=11 // pred_check_branch
          %424 = sbr.rel (%p422) target = $region16
        $region15: #{tpu_custom_call.1} parent=11 // pred_region
          _
        $region16: #{tpu_custom_call.1} parent=11 // pred_fallthru
          _
        // Predicated region
        $region17: #{tpu_custom_call.1} parent=11 // pred_check
          %p425 = pneg %p171
        $region18: #{tpu_custom_call.1} parent=11 // pred_check_branch
          %427 = sbr.rel (%p425) target = $region20
        $region19: #{tpu_custom_call.1} parent=11 // pred_region
          _
        $region20: #{tpu_custom_call.1} parent=11 // pred_fallthru
          _
        // Predicated region
        $region21: #{tpu_custom_call.1} parent=11 // pred_check
          %p428 = pneg %p192
        $region22: #{tpu_custom_call.1} parent=11 // pred_check_branch
          %430 = sbr.rel (%p428) target = $region24
        $region23: #{tpu_custom_call.1} parent=11 // pred_region
          _
        $region24: #{tpu_custom_call.1} parent=11 // pred_fallthru
          _
        // Predicated region
        $region25: #{tpu_custom_call.1} parent=11 // pred_check
          %p431 = pneg %p213
        $region26: #{tpu_custom_call.1} parent=11 // pred_check_branch
          %433 = sbr.rel (%p431) target = $region28
        $region27: #{tpu_custom_call.1} parent=11 // pred_region
          _
        $region28: #{tpu_custom_call.1} parent=11 // pred_fallthru
          _
        // Predicated region
        $region29: #{tpu_custom_call.1} parent=11 // pred_check
          %p434 = pneg %p234
        $region30: #{tpu_custom_call.1} parent=11 // pred_check_branch
          %436 = sbr.rel (%p434) target = $region32
        $region31: #{tpu_custom_call.1} parent=11 // pred_region
          _
        $region32: #{tpu_custom_call.1} parent=11 // pred_fallthru
          _
        // Predicated region
        $region33: #{tpu_custom_call.1} parent=11 // pred_check
          %p437 = pneg %p255
        $region34: #{tpu_custom_call.1} parent=11 // pred_check_branch
          %439 = sbr.rel (%p437) target = $region36
        $region35: #{tpu_custom_call.1} parent=11 // pred_region
          _
        $region36: #{tpu_custom_call.1} parent=11 // pred_fallthru
          _
        // Predicated region
        $region37: #{tpu_custom_call.1} parent=11 // pred_check
          %p440 = pneg %p276
        $region38: #{tpu_custom_call.1} parent=11 // pred_check_branch
          %442 = sbr.rel (%p440) target = $region40
        $region39: #{tpu_custom_call.1} parent=11 // pred_region
          _
        $region40: #{tpu_custom_call.1} parent=11 // pred_fallthru
          _
        // Predicated region
        $region41: #{tpu_custom_call.1} parent=11 // pred_check
          %p443 = pneg %p297
        $region42: #{tpu_custom_call.1} parent=11 // pred_check_branch
          %445 = sbr.rel (%p443) target = $region44
        $region43: #{tpu_custom_call.1} parent=11 // pred_region
          _
        $region44: #{tpu_custom_call.1} parent=11 // pred_fallthru
          _
        // Predicated region
        $region45: #{tpu_custom_call.1} parent=11 // pred_check
          %p446 = pneg %p318
        $region46: #{tpu_custom_call.1} parent=11 // pred_check_branch
          %448 = sbr.rel (%p446) target = $region48
        $region47: #{tpu_custom_call.1} parent=11 // pred_region
          _
        $region48: #{tpu_custom_call.1} parent=11 // pred_fallthru
          _
        // Predicated region
        $region49: #{tpu_custom_call.1} parent=11 // pred_check
          %p449 = pneg %p339
        $region50: #{tpu_custom_call.1} parent=11 // pred_check_branch
          %451 = sbr.rel (%p449) target = $region52
        $region51: #{tpu_custom_call.1} parent=11 // pred_region
          _
        $region52: #{tpu_custom_call.1} parent=11 // pred_fallthru
          _
        // Predicated region
        $region53: #{tpu_custom_call.1} parent=11 // pred_check
          %p452 = pneg %p360
        $region54: #{tpu_custom_call.1} parent=11 // pred_check_branch
          %454 = sbr.rel (%p452) target = $region56
        $region55: #{tpu_custom_call.1} parent=11 // pred_region
          _
        $region56: #{tpu_custom_call.1} parent=11 // pred_fallthru
          _
        // Predicated region
        $region57: #{tpu_custom_call.1} parent=11 // pred_check
          %p455 = pneg %p381
        $region58: #{tpu_custom_call.1} parent=11 // pred_check_branch
          %457 = sbr.rel (%p455) target = $region60
        $region59: #{tpu_custom_call.1} parent=11 // pred_region
          _
        $region60: #{tpu_custom_call.1} parent=11 // pred_fallthru
          _
      $region12: #{tpu_custom_call.1} parent=5 // pred_fallthru
        _
      %p458 = scmp.lt.s32.totalorder %s25, 8
      // Predicated region
      $region61: #{tpu_custom_call.1} parent=5 // pred_check
        %p459 = pneg %p458
      $region62: #{tpu_custom_call.1} parent=5 // pred_check_branch
        %461 = sbr.rel (%p459) target = $region64
      $region63: #{tpu_custom_call.1} parent=5 // pred_region
        // Predicated region
        $region65: #{tpu_custom_call.1} parent=63 // pred_check
          %p462 = pneg %p45
        $region66: #{tpu_custom_call.1} parent=63 // pred_check_branch
          %464 = sbr.rel (%p462) target = $region68
        $region67: #{tpu_custom_call.1} parent=63 // pred_region
          %s465 = smul.u32 16, %s25
          %s466 = ssub.s32 125, %s465
          %p467 = scmp.lt.s32.totalorder %s466, 16
          %s468 = scalar_select %p467, %s466, 16
          %s469 = smul.u32 128, %s468
          %p470 = scmp.lt.s32.totalorder %s465, 124
          %s471 = scalar_select %p470, %s465, 124
          %s472 = smul.addr %s471, 8
          %s473 = scalar_lea.vmem %s0, %s472
          %s474 = smul.u32 16, %s25
          %s475 = ssub.s32 125, %s474
          %p476 = scmp.lt.s32.totalorder %s475, 16
          %s477 = scalar_select %p476, %s475, 16
          %s478 = smul.u32 128, %s477
        $region68: #{tpu_custom_call.1} parent=63 // pred_fallthru
          _
        // Predicated region
        $region69: #{tpu_custom_call.1} parent=63 // pred_check
          %p479 = pneg %p71
        $region70: #{tpu_custom_call.1} parent=63 // pred_check_branch
          %481 = sbr.rel (%p479) target = $region72
        $region71: #{tpu_custom_call.1} parent=63 // pred_region
          %s482 = smul.u32 16, %s25
          %s483 = ssub.s32 125, %s482
          %p484 = scmp.lt.s32.totalorder %s483, 16
          %s485 = scalar_select %p484, %s483, 16
          %s486 = smul.u32 128, %s485
          %p487 = scmp.lt.s32.totalorder %s482, 124
          %s488 = scalar_select %p487, %s482, 124
          %s489 = smul.addr %s488, 8
          %s490 = scalar_lea.vmem %s1, %s489
          %s491 = smul.u32 16, %s25
          %s492 = ssub.s32 125, %s491
          %p493 = scmp.lt.s32.totalorder %s492, 16
          %s494 = scalar_select %p493, %s492, 16
          %s495 = smul.u32 128, %s494
        $region72: #{tpu_custom_call.1} parent=63 // pred_fallthru
          _
        // Predicated region
        $region73: #{tpu_custom_call.1} parent=63 // pred_check
          %p496 = pneg %p97
        $region74: #{tpu_custom_call.1} parent=63 // pred_check_branch
          %498 = sbr.rel (%p496) target = $region76
        $region75: #{tpu_custom_call.1} parent=63 // pred_region
          %s499 = smul.u32 16, %s25
          %s500 = ssub.s32 125, %s499
          %p501 = scmp.lt.s32.totalorder %s500, 16
          %s502 = scalar_select %p501, %s500, 16
          %s503 = smul.u32 128, %s502
          %p504 = scmp.lt.s32.totalorder %s499, 124
          %s505 = scalar_select %p504, %s499, 124
          %s506 = smul.addr %s505, 8
          %s507 = scalar_lea.vmem %s2, %s506
          %s508 = smul.u32 16, %s25
          %s509 = ssub.s32 125, %s508
          %p510 = scmp.lt.s32.totalorder %s509, 16
          %s511 = scalar_select %p510, %s509, 16
          %s512 = smul.u32 128, %s511
        $region76: #{tpu_custom_call.1} parent=63 // pred_fallthru
          _
        // Predicated region
        $region77: #{tpu_custom_call.1} parent=63 // pred_check
          %p513 = pneg %p123
        $region78: #{tpu_custom_call.1} parent=63 // pred_check_branch
          %515 = sbr.rel (%p513) target = $region80
        $region79: #{tpu_custom_call.1} parent=63 // pred_region
          %s516 = smul.u32 16, %s25
          %s517 = ssub.s32 125, %s516
          %p518 = scmp.lt.s32.totalorder %s517, 16
          %s519 = scalar_select %p518, %s517, 16
          %s520 = smul.u32 128, %s519
          %p521 = scmp.lt.s32.totalorder %s516, 124
          %s522 = scalar_select %p521, %s516, 124
          %s523 = smul.addr %s522, 8
          %s524 = scalar_lea.vmem %s3, %s523
          %s525 = smul.u32 16, %s25
          %s526 = ssub.s32 125, %s525
          %p527 = scmp.lt.s32.totalorder %s526, 16
          %s528 = scalar_select %p527, %s526, 16
          %s529 = smul.u32 128, %s528
        $region80: #{tpu_custom_call.1} parent=63 // pred_fallthru
          _
      $region64: #{tpu_custom_call.1} parent=5 // pred_fallthru
        _
      %p530 = scmp.le.s32.totalorder 1, %s25
      %p531 = scmp.lt.s32.totalorder %s25, 9
      %p532 = pnand %p530, %p531
      %p533 = pneg %p532
      // Predicated region
      $region81: #{tpu_custom_call.1} parent=5 // pred_check
        _
      $region82: #{tpu_custom_call.1} parent=5 // pred_check_branch
        %535 = sbr.rel (%p532) target = $region84
      $region83: #{tpu_custom_call.1} parent=5 // pred_region
        %s536 = ssub.s32 %s25, 1
        %s537 = smul.u32 16, %s30
        %s538 = ssub.s32 125, %s537
        %p539 = scmp.lt.s32.totalorder %s538, 16
        %s540 = scalar_select %p539, %s538, 16
        %s541 = smul.u32 128, %s540
        %p542 = scmp.lt.s32.totalorder %s537, 124
        %s543 = scalar_select %p542, %s537, 124
        %s544 = smul.addr %s543, 8
        %s545 = scalar_lea.vmem %s0, %s544
        %p546 = pneg %p51
        %p547 = pneg %p48
        %s548 = smul.u32 16, %s30
        %s549 = ssub.s32 125, %s548
        %p550 = scmp.lt.s32.totalorder %s549, 16
        %s551 = scalar_select %p550, %s549, 16
        %s552 = smul.u32 128, %s551
        %p553 = scmp.lt.s32.totalorder %s548, 124
        %s554 = scalar_select %p553, %s548, 124
        %s555 = smul.addr %s554, 8
        %s556 = scalar_lea.vmem %s1, %s555
        %p557 = pneg %p77
        %p558 = pneg %p74
        %s559 = smul.u32 16, %s30
        %s560 = ssub.s32 125, %s559
        %p561 = scmp.lt.s32.totalorder %s560, 16
        %s562 = scalar_select %p561, %s560, 16
        %s563 = smul.u32 128, %s562
        %p564 = scmp.lt.s32.totalorder %s559, 124
        %s565 = scalar_select %p564, %s559, 124
        %s566 = smul.addr %s565, 8
        %s567 = scalar_lea.vmem %s2, %s566
        %p568 = pneg %p103
        %p569 = pneg %p100
        %s570 = smul.u32 16, %s30
        %s571 = ssub.s32 125, %s570
        %p572 = scmp.lt.s32.totalorder %s571, 16
        %s573 = scalar_select %p572, %s571, 16
        %s574 = smul.u32 128, %s573
        %p575 = scmp.lt.s32.totalorder %s570, 124
        %s576 = scalar_select %p575, %s570, 124
        %s577 = smul.addr %s576, 8
        %s578 = scalar_lea.vmem %s3, %s577
        %p579 = pneg %p129
        %p580 = pneg %p126
        %p581 = pneg %p150
        %p582 = pneg %p147
        %p583 = pneg %p171
        %p584 = pneg %p168
        %p585 = pneg %p192
        %p586 = pneg %p189
        %p587 = pneg %p213
        %p588 = pneg %p210
        %p589 = pneg %p234
        %p590 = pneg %p231
        %p591 = pneg %p255
        %p592 = pneg %p252
        %p593 = pneg %p276
        %p594 = pneg %p273
        %p595 = pneg %p297
        %p596 = pneg %p294
        %p597 = pneg %p318
        %p598 = pneg %p315
        %p599 = pneg %p339
        %p600 = pneg %p336
        %p601 = pneg %p360
        %p602 = pneg %p357
        %p603 = pneg %p381
        %p604 = pneg %p378
        %p605 = pneg %p407
        %p606 = pneg %p404
        %s607 = sand.u32 %s394, 1
        %s608 = scalar_lea.sflag [#allocation3], %s607
        %s609 = sand.u32 %s394, 1
        %s610 = smul.addr %s609, 4
        %s611 = scalar_lea.vmem [#allocation2], %s610
        %s612 = smul.u32 16, %s30
        %s613 = ssub.s32 125, %s612
        %p614 = scmp.lt.s32.totalorder %s613, 16
        %s615 = scalar_select %p614, %s613, 16
        %s616 = smul.u32 128, %s615
        %p617 = scmp.lt.s32.totalorder %s612, 124
        %s618 = scalar_select %p617, %s612, 124
        %s619 = smul.addr %s618, 8
        %s620 = scalar_lea.vmem %s0, %s619
        %s621 = smul.u32 16, %s30
        %s622 = ssub.s32 125, %s621
        %p623 = scmp.lt.s32.totalorder %s622, 16
        %s624 = scalar_select %p623, %s622, 16
        %s625 = smul.u32 128, %s624
        %s626 = smul.u32 16, %s30
        %s627 = ssub.s32 125, %s626
        %p628 = scmp.lt.s32.totalorder %s627, 16
        %s629 = scalar_select %p628, %s627, 16
        %s630 = smul.u32 128, %s629
        %p631 = scmp.lt.s32.totalorder %s626, 124
        %s632 = scalar_select %p631, %s626, 124
        %s633 = smul.addr %s632, 8
        %s634 = scalar_lea.vmem %s1, %s633
        %s635 = smul.u32 16, %s30
        %s636 = ssub.s32 125, %s635
        %p637 = scmp.lt.s32.totalorder %s636, 16
        %s638 = scalar_select %p637, %s636, 16
        %s639 = smul.u32 128, %s638
        %s640 = smul.u32 16, %s30
        %s641 = ssub.s32 125, %s640
        %p642 = scmp.lt.s32.totalorder %s641, 16
        %s643 = scalar_select %p642, %s641, 16
        %s644 = smul.u32 128, %s643
        %p645 = scmp.lt.s32.totalorder %s640, 124
        %s646 = scalar_select %p645, %s640, 124
        %s647 = smul.addr %s646, 8
        %s648 = scalar_lea.vmem %s2, %s647
        %s649 = smul.u32 16, %s30
        %s650 = ssub.s32 125, %s649
        %p651 = scmp.lt.s32.totalorder %s650, 16
        %s652 = scalar_select %p651, %s650, 16
        %s653 = smul.u32 128, %s652
        %s654 = smul.u32 16, %s30
        %s655 = ssub.s32 125, %s654
        %p656 = scmp.lt.s32.totalorder %s655, 16
        %s657 = scalar_select %p656, %s655, 16
        %s658 = smul.u32 128, %s657
        %p659 = scmp.lt.s32.totalorder %s654, 124
        %s660 = scalar_select %p659, %s654, 124
        %s661 = smul.addr %s660, 8
        %s662 = scalar_lea.vmem %s3, %s661
        %s663 = smul.u32 16, %s30
        %s664 = ssub.s32 125, %s663
        %p665 = scmp.lt.s32.totalorder %s664, 16
        %s666 = scalar_select %p665, %s664, 16
        %s667 = smul.u32 128, %s666
        %v669 = vld [vmem:[%s620] sm:$0xff]
        %v670 = vld [vmem:[%s620 + $0x8] sm:$0xff]
        %v671 = vld [vmem:[%s620 + $0x10] sm:$0xff]
        %v672 = vld [vmem:[%s620 + $0x18] sm:$0xff]
        %v673 = vld [vmem:[%s620 + $0x20] sm:$0xff]
        %v674 = vld [vmem:[%s620 + $0x28] sm:$0xff]
        %v675 = vld [vmem:[%s620 + $0x30] sm:$0xff]
        %v676 = vld [vmem:[%s620 + $0x38] sm:$0xff]
        %v677 = vld [vmem:[%s620 + $0x40] sm:$0xff]
        %v678 = vld [vmem:[%s620 + $0x48] sm:$0xff]
        %v679 = vld [vmem:[%s620 + $0x50] sm:$0xff]
        %v680 = vld [vmem:[%s620 + $0x58] sm:$0xff]
        %v681 = vld [vmem:[%s620 + $0x60] sm:$0xff]
        %v682 = vld [vmem:[%s620 + $0x68] sm:$0xff]
        %v683 = vld [vmem:[%s620 + $0x70] sm:$0xff]
        %v684 = vld [vmem:[%s620 + $0x78] sm:$0xff]
        %685 = vxpose.xlu0.b32.start [1/16] %v669, 128
        %686 = vxpose.xlu0.b32.cont [2/16] %v670, 128
        %687 = vxpose.xlu0.b32.cont [3/16] %v671, 128
        %688 = vxpose.xlu0.b32.cont [4/16] %v672, 128
        %689 = vxpose.xlu0.b32.cont [5/16] %v673, 128
        %690 = vxpose.xlu0.b32.cont [6/16] %v674, 128
        %691 = vxpose.xlu0.b32.cont [7/16] %v675, 128
        %692 = vxpose.xlu0.b32.cont [8/16] %v676, 128
        %693 = vxpose.xlu0.b32.cont [9/16] %v677, 128
        %694 = vxpose.xlu0.b32.cont [10/16] %v678, 128
        %695 = vxpose.xlu0.b32.cont [11/16] %v679, 128
        %696 = vxpose.xlu0.b32.cont [12/16] %v680, 128
        %697 = vxpose.xlu0.b32.cont [13/16] %v681, 128
        %698 = vxpose.xlu0.b32.cont [14/16] %v682, 128
        %699 = vxpose.xlu0.b32.cont [15/16] %v683, 128
        %700 = vxpose.xlu0.b32.end [16/16] %v684, 128
        %v701 = vpop.trf.xlu0
        %v702 = vpop.trf.xlu0
        %v703 = vpop.trf.xlu0
        %v704 = vpop.trf.xlu0
        %v705 = vpop.trf.xlu0
        %v706 = vpop.trf.xlu0
        %v707 = vpop.trf.xlu0
        %v708 = vpop.trf.xlu0
        %v709 = vpop.trf.xlu0
        %v710 = vpop.trf.xlu0
        %v711 = vpop.trf.xlu0
        %v712 = vpop.trf.xlu0
        %v713 = vpop.trf.xlu0
        %v714 = vpop.trf.xlu0
        %v715 = vpop.trf.xlu0
        %v716 = vpop.trf.xlu0
        %v717 = vld [vmem:[%s634] sm:$0xff]
        %v718 = vld [vmem:[%s634 + $0x8] sm:$0xff]
        %v719 = vld [vmem:[%s634 + $0x10] sm:$0xff]
        %v720 = vld [vmem:[%s634 + $0x18] sm:$0xff]
        %v721 = vld [vmem:[%s634 + $0x20] sm:$0xff]
        %v722 = vld [vmem:[%s634 + $0x28] sm:$0xff]
        %v723 = vld [vmem:[%s634 + $0x30] sm:$0xff]
        %v724 = vld [vmem:[%s634 + $0x38] sm:$0xff]
        %v725 = vld [vmem:[%s634 + $0x40] sm:$0xff]
        %v726 = vld [vmem:[%s634 + $0x48] sm:$0xff]
        %v727 = vld [vmem:[%s634 + $0x50] sm:$0xff]
        %v728 = vld [vmem:[%s634 + $0x58] sm:$0xff]
        %v729 = vld [vmem:[%s634 + $0x60] sm:$0xff]
        %v730 = vld [vmem:[%s634 + $0x68] sm:$0xff]
        %v731 = vld [vmem:[%s634 + $0x70] sm:$0xff]
        %v732 = vld [vmem:[%s634 + $0x78] sm:$0xff]
        %733 = vxpose.xlu0.b32.start [1/16] %v717, 128
        %734 = vxpose.xlu0.b32.cont [2/16] %v718, 128
        %735 = vxpose.xlu0.b32.cont [3/16] %v719, 128
        %736 = vxpose.xlu0.b32.cont [4/16] %v720, 128
        %737 = vxpose.xlu0.b32.cont [5/16] %v721, 128
        %738 = vxpose.xlu0.b32.cont [6/16] %v722, 128
        %739 = vxpose.xlu0.b32.cont [7/16] %v723, 128
        %740 = vxpose.xlu0.b32.cont [8/16] %v724, 128
        %741 = vxpose.xlu0.b32.cont [9/16] %v725, 128
        %742 = vxpose.xlu0.b32.cont [10/16] %v726, 128
        %743 = vxpose.xlu0.b32.cont [11/16] %v727, 128
        %744 = vxpose.xlu0.b32.cont [12/16] %v728, 128
        %745 = vxpose.xlu0.b32.cont [13/16] %v729, 128
        %746 = vxpose.xlu0.b32.cont [14/16] %v730, 128
        %747 = vxpose.xlu0.b32.cont [15/16] %v731, 128
        %748 = vxpose.xlu0.b32.end [16/16] %v732, 128
        %v749 = vpop.trf.xlu0
        %v750 = vpop.trf.xlu0
        %v751 = vpop.trf.xlu0
        %v752 = vpop.trf.xlu0
        %v753 = vpop.trf.xlu0
        %v754 = vpop.trf.xlu0
        %v755 = vpop.trf.xlu0
        %v756 = vpop.trf.xlu0
        %v757 = vpop.trf.xlu0
        %v758 = vpop.trf.xlu0
        %v759 = vpop.trf.xlu0
        %v760 = vpop.trf.xlu0
        %v761 = vpop.trf.xlu0
        %v762 = vpop.trf.xlu0
        %v763 = vpop.trf.xlu0
        %v764 = vpop.trf.xlu0
        %v765 = vld [vmem:[%s648] sm:$0xff]
        %v766 = vld [vmem:[%s648 + $0x8] sm:$0xff]
        %v767 = vld [vmem:[%s648 + $0x10] sm:$0xff]
        %v768 = vld [vmem:[%s648 + $0x18] sm:$0xff]
        %v769 = vld [vmem:[%s648 + $0x20] sm:$0xff]
        %v770 = vld [vmem:[%s648 + $0x28] sm:$0xff]
        %v771 = vld [vmem:[%s648 + $0x30] sm:$0xff]
        %v772 = vld [vmem:[%s648 + $0x38] sm:$0xff]
        %v773 = vld [vmem:[%s648 + $0x40] sm:$0xff]
        %v774 = vld [vmem:[%s648 + $0x48] sm:$0xff]
        %v775 = vld [vmem:[%s648 + $0x50] sm:$0xff]
        %v776 = vld [vmem:[%s648 + $0x58] sm:$0xff]
        %v777 = vld [vmem:[%s648 + $0x60] sm:$0xff]
        %v778 = vld [vmem:[%s648 + $0x68] sm:$0xff]
        %v779 = vld [vmem:[%s648 + $0x70] sm:$0xff]
        %v780 = vld [vmem:[%s648 + $0x78] sm:$0xff]
        %781 = vxpose.xlu0.b32.start [1/16] %v765, 128
        %782 = vxpose.xlu0.b32.cont [2/16] %v766, 128
        %783 = vxpose.xlu0.b32.cont [3/16] %v767, 128
        %784 = vxpose.xlu0.b32.cont [4/16] %v768, 128
        %785 = vxpose.xlu0.b32.cont [5/16] %v769, 128
        %786 = vxpose.xlu0.b32.cont [6/16] %v770, 128
        %787 = vxpose.xlu0.b32.cont [7/16] %v771, 128
        %788 = vxpose.xlu0.b32.cont [8/16] %v772, 128
        %789 = vxpose.xlu0.b32.cont [9/16] %v773, 128
        %790 = vxpose.xlu0.b32.cont [10/16] %v774, 128
        %791 = vxpose.xlu0.b32.cont [11/16] %v775, 128
        %792 = vxpose.xlu0.b32.cont [12/16] %v776, 128
        %793 = vxpose.xlu0.b32.cont [13/16] %v777, 128
        %794 = vxpose.xlu0.b32.cont [14/16] %v778, 128
        %795 = vxpose.xlu0.b32.cont [15/16] %v779, 128
        %796 = vxpose.xlu0.b32.end [16/16] %v780, 128
        %v797 = vpop.trf.xlu0
        %v798 = vpop.trf.xlu0
        %v799 = vpop.trf.xlu0
        %v800 = vpop.trf.xlu0
        %v801 = vpop.trf.xlu0
        %v802 = vpop.trf.xlu0
        %v803 = vpop.trf.xlu0
        %v804 = vpop.trf.xlu0
        %v805 = vpop.trf.xlu0
        %v806 = vpop.trf.xlu0
        %v807 = vpop.trf.xlu0
        %v808 = vpop.trf.xlu0
        %v809 = vpop.trf.xlu0
        %v810 = vpop.trf.xlu0
        %v811 = vpop.trf.xlu0
        %v812 = vpop.trf.xlu0
        %v813 = vld [vmem:[%s662] sm:$0xff]
        %v814 = vld [vmem:[%s662 + $0x8] sm:$0xff]
        %v815 = vld [vmem:[%s662 + $0x10] sm:$0xff]
        %v816 = vld [vmem:[%s662 + $0x18] sm:$0xff]
        %v817 = vld [vmem:[%s662 + $0x20] sm:$0xff]
        %v818 = vld [vmem:[%s662 + $0x28] sm:$0xff]
        %v819 = vld [vmem:[%s662 + $0x30] sm:$0xff]
        %v820 = vld [vmem:[%s662 + $0x38] sm:$0xff]
        %v821 = vld [vmem:[%s662 + $0x40] sm:$0xff]
        %v822 = vld [vmem:[%s662 + $0x48] sm:$0xff]
        %v823 = vld [vmem:[%s662 + $0x50] sm:$0xff]
        %v824 = vld [vmem:[%s662 + $0x58] sm:$0xff]
        %v825 = vld [vmem:[%s662 + $0x60] sm:$0xff]
        %v826 = vld [vmem:[%s662 + $0x68] sm:$0xff]
        %v827 = vld [vmem:[%s662 + $0x70] sm:$0xff]
        %v828 = vld [vmem:[%s662 + $0x78] sm:$0xff]
        %829 = vxpose.xlu0.b32.start [1/16] %v813, 128
        %830 = vxpose.xlu0.b32.cont [2/16] %v814, 128
        %831 = vxpose.xlu0.b32.cont [3/16] %v815, 128
        %832 = vxpose.xlu0.b32.cont [4/16] %v816, 128
        %833 = vxpose.xlu0.b32.cont [5/16] %v817, 128
        %834 = vxpose.xlu0.b32.cont [6/16] %v818, 128
        %835 = vxpose.xlu0.b32.cont [7/16] %v819, 128
        %836 = vxpose.xlu0.b32.cont [8/16] %v820, 128
        %837 = vxpose.xlu0.b32.cont [9/16] %v821, 128
        %838 = vxpose.xlu0.b32.cont [10/16] %v822, 128
        %839 = vxpose.xlu0.b32.cont [11/16] %v823, 128
        %840 = vxpose.xlu0.b32.cont [12/16] %v824, 128
        %841 = vxpose.xlu0.b32.cont [13/16] %v825, 128
        %842 = vxpose.xlu0.b32.cont [14/16] %v826, 128
        %843 = vxpose.xlu0.b32.cont [15/16] %v827, 128
        %844 = vxpose.xlu0.b32.end [16/16] %v828, 128
        %v845 = vpop.trf.xlu0
        %v846 = vpop.trf.xlu0
        %v847 = vpop.trf.xlu0
        %v848 = vpop.trf.xlu0
        %v849 = vpop.trf.xlu0
        %v850 = vpop.trf.xlu0
        %v851 = vpop.trf.xlu0
        %v852 = vpop.trf.xlu0
        %v853 = vpop.trf.xlu0
        %v854 = vpop.trf.xlu0
        %v855 = vpop.trf.xlu0
        %v856 = vpop.trf.xlu0
        %v857 = vpop.trf.xlu0
        %v858 = vpop.trf.xlu0
        %v859 = vpop.trf.xlu0
        %v860 = vpop.trf.xlu0
        %v861 = vld [vmem:[%s10] sm:$0xff]
        %v862 = vld [vmem:[%s10 + $0x8] sm:$0xff]
        %v863 = vld [vmem:[%s10 + $0x10] sm:$0xff]
        %v864 = vld [vmem:[%s11] sm:$0xff]
        %v865 = vld [vmem:[%s11 + $0x8] sm:$0xff]
        %v866 = vld [vmem:[%s11 + $0x10] sm:$0xff]
        %868 = vset.pattern.permute.xlu0 0
        %869 = vperm.xlu0 %868, %v864
        %v870 = vpop.permute.xlu0 %869
        %873 = vset.pattern.permute.xlu0 0
        %874 = vperm.xlu0 %873, %v865
        %v875 = vpop.permute.xlu0 %874
        %878 = vset.pattern.permute.xlu0 0
        %879 = vperm.xlu0 %878, %v866
        %v880 = vpop.permute.xlu0 %879
        %vm882 = vcmask 23552
        %v884 = vsel %vm882, %v861, 0
        %v887 = vsel %vm882, %v862, 0
        %v890 = vsel %vm882, %v863, 0
        %vm892 = vcmask 1042432
        %v894 = vsel %vm892, %v749, 0
        %896 = vmatprep.subr.mxu0 0.0
        %v897 = vand.u32 %v894, 4294901760
        %898 = vmatpush1.msra.mxu0 %v897
        %899 = vmatprep.subr.mxu0 0.0
        %900 = vmatpush1.msra.mxu0 0.0
        %901 = vmatprep.subr.mxu0 0.0
        %902 = vmatpush1.msra.mxu0 0.0
        %903 = vmatprep.subr.mxu0 0.0
        %904 = vmatpush1.msra.mxu0 0.0
        %905 = vmatprep.subr.mxu0 0.0
        %906 = vmatpush1.msra.mxu0 0.0
        %907 = vmatprep.subr.mxu0 0.0
        %908 = vmatpush1.msra.mxu0 0.0
        %909 = vmatprep.subr.mxu0 0.0
        %910 = vmatpush1.msra.mxu0 0.0
        %911 = vmatprep.subr.mxu0 0.0
        %912 = vmatpush1.msra.mxu0 0.0
        %913 = vmatprep.subr.mxu0 0.0
        %914 = vmatpush1.msra.mxu0 0.0
        %915 = vmatprep.subr.mxu0 0.0
        %916 = vmatpush1.msra.mxu0 0.0
        %917 = vmatprep.subr.mxu0 0.0
        %918 = vmatpush1.msra.mxu0 0.0
        %919 = vmatprep.subr.mxu0 0.0
        %920 = vmatpush1.msra.mxu0 0.0
        %921 = vmatprep.subr.mxu0 0.0
        %922 = vmatpush1.msra.mxu0 0.0
        %923 = vmatprep.subr.mxu0 0.0
        %924 = vmatpush1.msra.mxu0 0.0
        %925 = vmatprep.subr.mxu0 0.0
        %926 = vmatpush1.msra.mxu0 0.0
        %927 = vmatprep.subr.mxu0 0.0
        %928 = vmatpush1.msra.mxu0 0.0
        %929 = vmatprep.subr.mxu0 0.0
        %930 = vmatpush1.msra.mxu0 0.0
        %931 = vmatprep.subr.mxu0 0.0
        %932 = vmatpush1.msra.mxu0 0.0
        %933 = vmatprep.subr.mxu0 0.0
        %934 = vmatpush1.msra.mxu0 0.0
        %935 = vmatprep.subr.mxu0 0.0
        %936 = vmatpush1.msra.mxu0 0.0
        %937 = vmatprep.subr.mxu0 0.0
        %938 = vmatpush1.msra.mxu0 0.0
        %939 = vmatprep.subr.mxu0 0.0
        %940 = vmatpush1.msra.mxu0 0.0
        %941 = vmatprep.subr.mxu0 0.0
        %942 = vmatpush1.msra.mxu0 0.0
        %943 = vmatprep.subr.mxu0 0.0
        %944 = vmatpush1.msra.mxu0 0.0
        %945 = vmatprep.subr.mxu0 0.0
        %946 = vmatpush1.msra.mxu0 0.0
        %947 = vmatprep.subr.mxu0 0.0
        %948 = vmatpush1.msra.mxu0 0.0
        %949 = vmatprep.subr.mxu0 0.0
        %950 = vmatpush1.msra.mxu0 0.0
        %951 = vmatprep.subr.mxu0 0.0
        %952 = vmatpush1.msra.mxu0 0.0
        %953 = vmatprep.subr.mxu0 0.0
        %954 = vmatpush1.msra.mxu0 0.0
        %955 = vmatprep.subr.mxu0 0.0
        %956 = vmatpush1.msra.mxu0 0.0
        %957 = vmatprep.subr.mxu0 0.0
        %958 = vmatpush1.msra.mxu0 0.0
        %959 = vmatprep.subr.mxu0 0.0
        %960 = vmatpush1.msra.mxu0 0.0
        %961 = vmatprep.mubr.f32.mxu0 0.0
        %v962 = vand.u32 %v884, 4294901760
        %v963 = vsub.f32 %v884, %v962
        %v964 = vand.u32 %v963, 4294901760
        %v965 = vsub.f32 %v963, %v964
        %v966 = vand.u32 %v965, 4294901760
        %967 = vmatmul.mubr.f32.gmra.mrb[0].mxu0 %v966
        %v968 = vpop.f32.mrb[0].mxu0
        %v969 = vadd.f32 %v870, %v968
        %v970 = vpop.f32.mrb[0].mxu0
        %971 = vmatprep.mubr.f32.mxu0 0.0
        %v972 = vand.u32 %v887, 4294901760
        %v973 = vsub.f32 %v887, %v972
        %v974 = vand.u32 %v973, 4294901760
        %v975 = vsub.f32 %v973, %v974
        %v976 = vand.u32 %v975, 4294901760
        %977 = vmatmul.mubr.f32.gmra.mrb[0].mxu0 %v976
        %v978 = vpop.f32.mrb[0].mxu0
        %v979 = vadd.f32 %v875, %v978
        %v980 = vpop.f32.mrb[0].mxu0
        %981 = vmatprep.mubr.f32.mxu0 0.0
        %v982 = vand.u32 %v890, 4294901760
        %v983 = vsub.f32 %v890, %v982
        %v984 = vand.u32 %v983, 4294901760
        %v985 = vsub.f32 %v983, %v984
        %v986 = vand.u32 %v985, 4294901760
        %987 = vmatmul.mubr.f32.gmra.mrb[0].mxu0 %v986
        %v988 = vpop.f32.mrb[0].mxu0
        %v989 = vadd.f32 %v880, %v988
        %v990 = vpop.f32.mrb[0].mxu0
        %991 = vdwg.mxu0
        %992 = vmatprep.subr.mxu0 0.0
        %v993 = vand.u32 %v894, 4294901760
        %v994 = vsub.f32 %v894, %v993
        %v995 = vand.u32 %v994, 4294901760
        %v996 = vsub.f32 %v994, %v995
        %v997 = vand.u32 %v996, 4294901760
        %998 = vmatpush1.msra.mxu0 %v997
        %999 = vmatprep.subr.mxu0 0.0
        %1000 = vmatpush1.msra.mxu0 0.0
        %1001 = vmatprep.subr.mxu0 0.0
        %1002 = vmatpush1.msra.mxu0 0.0
        %1003 = vmatprep.subr.mxu0 0.0
        %1004 = vmatpush1.msra.mxu0 0.0
        %1005 = vmatprep.subr.mxu0 0.0
        %1006 = vmatpush1.msra.mxu0 0.0
        %1007 = vmatprep.subr.mxu0 0.0
        %1008 = vmatpush1.msra.mxu0 0.0
        %1009 = vmatprep.subr.mxu0 0.0
        %1010 = vmatpush1.msra.mxu0 0.0
        %1011 = vmatprep.subr.mxu0 0.0
        %1012 = vmatpush1.msra.mxu0 0.0
        %1013 = vmatprep.subr.mxu0 0.0
        %1014 = vmatpush1.msra.mxu0 0.0
        %1015 = vmatprep.subr.mxu0 0.0
        %1016 = vmatpush1.msra.mxu0 0.0
        %1017 = vmatprep.subr.mxu0 0.0
        %1018 = vmatpush1.msra.mxu0 0.0
        %1019 = vmatprep.subr.mxu0 0.0
        %1020 = vmatpush1.msra.mxu0 0.0
        %1021 = vmatprep.subr.mxu0 0.0
        %1022 = vmatpush1.msra.mxu0 0.0
        %1023 = vmatprep.subr.mxu0 0.0
        %1024 = vmatpush1.msra.mxu0 0.0
        %1025 = vmatprep.subr.mxu0 0.0
        %1026 = vmatpush1.msra.mxu0 0.0
        %1027 = vmatprep.subr.mxu0 0.0
        %1028 = vmatpush1.msra.mxu0 0.0
        %1029 = vmatprep.subr.mxu0 0.0
        %1030 = vmatpush1.msra.mxu0 0.0
        %1031 = vmatprep.subr.mxu0 0.0
        %1032 = vmatpush1.msra.mxu0 0.0
        %1033 = vmatprep.subr.mxu0 0.0
        %1034 = vmatpush1.msra.mxu0 0.0
        %1035 = vmatprep.subr.mxu0 0.0
        %1036 = vmatpush1.msra.mxu0 0.0
        %1037 = vmatprep.subr.mxu0 0.0
        %1038 = vmatpush1.msra.mxu0 0.0
        %1039 = vmatprep.subr.mxu0 0.0
        %1040 = vmatpush1.msra.mxu0 0.0
        %1041 = vmatprep.subr.mxu0 0.0
        %1042 = vmatpush1.msra.mxu0 0.0
        %1043 = vmatprep.subr.mxu0 0.0
        %1044 = vmatpush1.msra.mxu0 0.0
        %1045 = vmatprep.subr.mxu0 0.0
        %1046 = vmatpush1.msra.mxu0 0.0
        %1047 = vmatprep.subr.mxu0 0.0
        %1048 = vmatpush1.msra.mxu0 0.0
        %1049 = vmatprep.subr.mxu0 0.0
        %1050 = vmatpush1.msra.mxu0 0.0
        %1051 = vmatprep.subr.mxu0 0.0
        %1052 = vmatpush1.msra.mxu0 0.0
        %1053 = vmatprep.subr.mxu0 0.0
        %1054 = vmatpush1.msra.mxu0 0.0
        %1055 = vmatprep.subr.mxu0 0.0
        %1056 = vmatpush1.msra.mxu0 0.0
        %1057 = vmatprep.subr.mxu0 0.0
        %1058 = vmatpush1.msra.mxu0 0.0
        %1059 = vmatprep.subr.mxu0 0.0
        %1060 = vmatpush1.msra.mxu0 0.0
        %1061 = vmatprep.mubr.f32.mxu0 0.0
        %v1062 = vand.u32 %v884, 4294901760
        %1063 = vmatmul.mubr.f32.gmra.mrb[0].mxu0 %v1062
        %v1064 = vpop.f32.mrb[0].mxu0
        %v1065 = vadd.f32 %v969, %v1064
        %v1066 = vpop.f32.mrb[0].mxu0
        %1067 = vmatprep.mubr.f32.mxu0 0.0
        %v1068 = vand.u32 %v887, 4294901760
        %1069 = vmatmul.mubr.f32.gmra.mrb[0].mxu0 %v1068
        %v1070 = vpop.f32.mrb[0].mxu0
        %v1071 = vadd.f32 %v979, %v1070
        %v1072 = vpop.f32.mrb[0].mxu0
        %1073 = vmatprep.mubr.f32.mxu0 0.0
        %v1074 = vand.u32 %v890, 4294901760
        %1075 = vmatmul.mubr.f32.gmra.mrb[0].mxu0 %v1074
        %v1076 = vpop.f32.mrb[0].mxu0
        %v1077 = vadd.f32 %v989, %v1076
        %v1078 = vpop.f32.mrb[0].mxu0
        %1079 = vdwg.mxu0
        %1080 = vmatprep.subr.mxu0 0.0
        %v1081 = vand.u32 %v894, 4294901760
        %v1082 = vsub.f32 %v894, %v1081
        %1083 = vmatpush1.msra.mxu0 %v1082
        %1084 = vmatprep.subr.mxu0 0.0
        %1085 = vmatpush1.msra.mxu0 0.0
        %1086 = vmatprep.subr.mxu0 0.0
        %1087 = vmatpush1.msra.mxu0 0.0
        %1088 = vmatprep.subr.mxu0 0.0
        %1089 = vmatpush1.msra.mxu0 0.0
        %1090 = vmatprep.subr.mxu0 0.0
        %1091 = vmatpush1.msra.mxu0 0.0
        %1092 = vmatprep.subr.mxu0 0.0
        %1093 = vmatpush1.msra.mxu0 0.0
        %1094 = vmatprep.subr.mxu0 0.0
        %1095 = vmatpush1.msra.mxu0 0.0
        %1096 = vmatprep.subr.mxu0 0.0
        %1097 = vmatpush1.msra.mxu0 0.0
        %1098 = vmatprep.subr.mxu0 0.0
        %1099 = vmatpush1.msra.mxu0 0.0
        %1100 = vmatprep.subr.mxu0 0.0
        %1101 = vmatpush1.msra.mxu0 0.0
        %1102 = vmatprep.subr.mxu0 0.0
        %1103 = vmatpush1.msra.mxu0 0.0
        %1104 = vmatprep.subr.mxu0 0.0
        %1105 = vmatpush1.msra.mxu0 0.0
        %1106 = vmatprep.subr.mxu0 0.0
        %1107 = vmatpush1.msra.mxu0 0.0
        %1108 = vmatprep.subr.mxu0 0.0
        %1109 = vmatpush1.msra.mxu0 0.0
        %1110 = vmatprep.subr.mxu0 0.0
        %1111 = vmatpush1.msra.mxu0 0.0
        %1112 = vmatprep.subr.mxu0 0.0
        %1113 = vmatpush1.msra.mxu0 0.0
        %1114 = vmatprep.subr.mxu0 0.0
        %1115 = vmatpush1.msra.mxu0 0.0
        %1116 = vmatprep.subr.mxu0 0.0
        %1117 = vmatpush1.msra.mxu0 0.0
        %1118 = vmatprep.subr.mxu0 0.0
        %1119 = vmatpush1.msra.mxu0 0.0
        %1120 = vmatprep.subr.mxu0 0.0
        %1121 = vmatpush1.msra.mxu0 0.0
        %1122 = vmatprep.subr.mxu0 0.0
        %1123 = vmatpush1.msra.mxu0 0.0
        %1124 = vmatprep.subr.mxu0 0.0
        %1125 = vmatpush1.msra.mxu0 0.0
        %1126 = vmatprep.subr.mxu0 0.0
        %1127 = vmatpush1.msra.mxu0 0.0
        %1128 = vmatprep.subr.mxu0 0.0
        %1129 = vmatpush1.msra.mxu0 0.0
        %1130 = vmatprep.subr.mxu0 0.0
        %1131 = vmatpush1.msra.mxu0 0.0
        %1132 = vmatprep.subr.mxu0 0.0
        %1133 = vmatpush1.msra.mxu0 0.0
        %1134 = vmatprep.subr.mxu0 0.0
        %1135 = vmatpush1.msra.mxu0 0.0
        %1136 = vmatprep.subr.mxu0 0.0
        %1137 = vmatpush1.msra.mxu0 0.0
        %1138 = vmatprep.subr.mxu0 0.0
        %1139 = vmatpush1.msra.mxu0 0.0
        %1140 = vmatprep.subr.mxu0 0.0
        %1141 = vmatpush1.msra.mxu0 0.0
        %1142 = vmatprep.subr.mxu0 0.0
        %1143 = vmatpush1.msra.mxu0 0.0
        %1144 = vmatprep.subr.mxu0 0.0
        %1145 = vmatpush1.msra.mxu0 0.0
        %1146 = vmatprep.mubr.f32.mxu0 0.0
        %v1147 = vand.u32 %v884, 4294901760
        %v1148 = vsub.f32 %v884, %v1147
        %1149 = vmatmul.mubr.f32.gmra.mrb[0].mxu0 %v1148
        %v1150 = vpop.f32.mrb[0].mxu0
        %v1151 = vadd.f32 %v1065, %v1150
        %v1152 = vpop.f32.mrb[0].mxu0
        %1153 = vmatprep.mubr.f32.mxu0 0.0
        %v1154 = vand.u32 %v887, 4294901760
        %v1155 = vsub.f32 %v887, %v1154
        %1156 = vmatmul.mubr.f32.gmra.mrb[0].mxu0 %v1155
        %v1157 = vpop.f32.mrb[0].mxu0
        %v1158 = vadd.f32 %v1071, %v1157
        %v1159 = vpop.f32.mrb[0].mxu0
        %1160 = vmatprep.mubr.f32.mxu0 0.0
        %v1161 = vand.u32 %v890, 4294901760
        %v1162 = vsub.f32 %v890, %v1161
        %1163 = vmatmul.mubr.f32.gmra.mrb[0].mxu0 %v1162
        %v1164 = vpop.f32.mrb[0].mxu0
        %v1165 = vadd.f32 %v1077, %v1164
        %v1166 = vpop.f32.mrb[0].mxu0
        %1167 = vdwg.mxu0
        %1168 = vmatprep.subr.mxu0 0.0
        %v1169 = vand.u32 %v894, 4294901760
        %1170 = vmatpush1.msra.mxu0 %v1169
        %1171 = vmatprep.subr.mxu0 0.0
        %1172 = vmatpush1.msra.mxu0 0.0
        %1173 = vmatprep.subr.mxu0 0.0
        %1174 = vmatpush1.msra.mxu0 0.0
        %1175 = vmatprep.subr.mxu0 0.0
        %1176 = vmatpush1.msra.mxu0 0.0
        %1177 = vmatprep.subr.mxu0 0.0
        %1178 = vmatpush1.msra.mxu0 0.0
        %1179 = vmatprep.subr.mxu0 0.0
        %1180 = vmatpush1.msra.mxu0 0.0
        %1181 = vmatprep.subr.mxu0 0.0
        %1182 = vmatpush1.msra.mxu0 0.0
        %1183 = vmatprep.subr.mxu0 0.0
        %1184 = vmatpush1.msra.mxu0 0.0
        %1185 = vmatprep.subr.mxu0 0.0
        %1186 = vmatpush1.msra.mxu0 0.0
        %1187 = vmatprep.subr.mxu0 0.0
        %1188 = vmatpush1.msra.mxu0 0.0
        %1189 = vmatprep.subr.mxu0 0.0
        %1190 = vmatpush1.msra.mxu0 0.0
        %1191 = vmatprep.subr.mxu0 0.0
        %1192 = vmatpush1.msra.mxu0 0.0
        %1193 = vmatprep.subr.mxu0 0.0
        %1194 = vmatpush1.msra.mxu0 0.0
        %1195 = vmatprep.subr.mxu0 0.0
        %1196 = vmatpush1.msra.mxu0 0.0
        %1197 = vmatprep.subr.mxu0 0.0
        %1198 = vmatpush1.msra.mxu0 0.0
        %1199 = vmatprep.subr.mxu0 0.0
        %1200 = vmatpush1.msra.mxu0 0.0
        %1201 = vmatprep.subr.mxu0 0.0
        %1202 = vmatpush1.msra.mxu0 0.0
        %1203 = vmatprep.subr.mxu0 0.0
        %1204 = vmatpush1.msra.mxu0 0.0
        %1205 = vmatprep.subr.mxu0 0.0
        %1206 = vmatpush1.msra.mxu0 0.0
        %1207 = vmatprep.subr.mxu0 0.0
        %1208 = vmatpush1.msra.mxu0 0.0
        %1209 = vmatprep.subr.mxu0 0.0
        %1210 = vmatpush1.msra.mxu0 0.0
        %1211 = vmatprep.subr.mxu0 0.0
        %1212 = vmatpush1.msra.mxu0 0.0
        %1213 = vmatprep.subr.mxu0 0.0
        %1214 = vmatpush1.msra.mxu0 0.0
        %1215 = vmatprep.subr.mxu0 0.0
        %1216 = vmatpush1.msra.mxu0 0.0
        %1217 = vmatprep.subr.mxu0 0.0
        %1218 = vmatpush1.msra.mxu0 0.0
        %1219 = vmatprep.subr.mxu0 0.0
        %1220 = vmatpush1.msra.mxu0 0.0
        %1221 = vmatprep.subr.mxu0 0.0
        %1222 = vmatpush1.msra.mxu0 0.0
        %1223 = vmatprep.subr.mxu0 0.0
        %1224 = vmatpush1.msra.mxu0 0.0
        %1225 = vmatprep.subr.mxu0 0.0
        %1226 = vmatpush1.msra.mxu0 0.0
        %1227 = vmatprep.subr.mxu0 0.0
        %1228 = vmatpush1.msra.mxu0 0.0
        %1229 = vmatprep.subr.mxu0 0.0
        %1230 = vmatpush1.msra.mxu0 0.0
        %1231 = vmatprep.subr.mxu0 0.0
        %1232 = vmatpush1.msra.mxu0 0.0
        %1233 = vmatprep.mubr.f32.mxu0 0.0
        %v1234 = vand.u32 %v884, 4294901760
        %v1235 = vsub.f32 %v884, %v1234
        %v1236 = vand.u32 %v1235, 4294901760
        %1237 = vmatmul.mubr.f32.gmra.mrb[0].mxu0 %v1236
        %v1238 = vpop.f32.mrb[0].mxu0
        %v1239 = vadd.f32 %v1151, %v1238
        %v1240 = vpop.f32.mrb[0].mxu0
        %1241 = vmatprep.mubr.f32.mxu0 0.0
        %v1242 = vand.u32 %v887, 4294901760
        %v1243 = vsub.f32 %v887, %v1242
        %v1244 = vand.u32 %v1243, 4294901760
        %1245 = vmatmul.mubr.f32.gmra.mrb[0].mxu0 %v1244
        %v1246 = vpop.f32.mrb[0].mxu0
        %v1247 = vadd.f32 %v1158, %v1246
        %v1248 = vpop.f32.mrb[0].mxu0
        %1249 = vmatprep.mubr.f32.mxu0 0.0
        %v1250 = vand.u32 %v890, 4294901760
        %v1251 = vsub.f32 %v890, %v1250
        %v1252 = vand.u32 %v1251, 4294901760
        %1253 = vmatmul.mubr.f32.gmra.mrb[0].mxu0 %v1252
        %v1254 = vpop.f32.mrb[0].mxu0
        %v1255 = vadd.f32 %v1165, %v1254
        %v1256 = vpop.f32.mrb[0].mxu0
        %1257 = vdwg.mxu0
        %1258 = vmatprep.subr.mxu0 0.0
        %v1259 = vand.u32 %v894, 4294901760
        %v1260 = vsub.f32 %v894, %v1259
        %v1261 = vand.u32 %v1260, 4294901760
        %1262 = vmatpush1.msra.mxu0 %v1261
        %1263 = vmatprep.subr.mxu0 0.0
        %1264 = vmatpush1.msra.mxu0 0.0
        %1265 = vmatprep.subr.mxu0 0.0
        %1266 = vmatpush1.msra.mxu0 0.0
        %1267 = vmatprep.subr.mxu0 0.0
        %1268 = vmatpush1.msra.mxu0 0.0
        %1269 = vmatprep.subr.mxu0 0.0
        %1270 = vmatpush1.msra.mxu0 0.0
        %1271 = vmatprep.subr.mxu0 0.0
        %1272 = vmatpush1.msra.mxu0 0.0
        %1273 = vmatprep.subr.mxu0 0.0
        %1274 = vmatpush1.msra.mxu0 0.0
        %1275 = vmatprep.subr.mxu0 0.0
        %1276 = vmatpush1.msra.mxu0 0.0
        %1277 = vmatprep.subr.mxu0 0.0
        %1278 = vmatpush1.msra.mxu0 0.0
        %1279 = vmatprep.subr.mxu0 0.0
        %1280 = vmatpush1.msra.mxu0 0.0
        %1281 = vmatprep.subr.mxu0 0.0
        %1282 = vmatpush1.msra.mxu0 0.0
        %1283 = vmatprep.subr.mxu0 0.0
        %1284 = vmatpush1.msra.mxu0 0.0
        %1285 = vmatprep.subr.mxu0 0.0
        %1286 = vmatpush1.msra.mxu0 0.0
        %1287 = vmatprep.subr.mxu0 0.0
        %1288 = vmatpush1.msra.mxu0 0.0
        %1289 = vmatprep.subr.mxu0 0.0
        %1290 = vmatpush1.msra.mxu0 0.0
        %1291 = vmatprep.subr.mxu0 0.0
        %1292 = vmatpush1.msra.mxu0 0.0
        %1293 = vmatprep.subr.mxu0 0.0
        %1294 = vmatpush1.msra.mxu0 0.0
        %1295 = vmatprep.subr.mxu0 0.0
        %1296 = vmatpush1.msra.mxu0 0.0
        %1297 = vmatprep.subr.mxu0 0.0
        %1298 = vmatpush1.msra.mxu0 0.0
        %1299 = vmatprep.subr.mxu0 0.0
        %1300 = vmatpush1.msra.mxu0 0.0
        %1301 = vmatprep.subr.mxu0 0.0
        %1302 = vmatpush1.msra.mxu0 0.0
        %1303 = vmatprep.subr.mxu0 0.0
        %1304 = vmatpush1.msra.mxu0 0.0
        %1305 = vmatprep.subr.mxu0 0.0
        %1306 = vmatpush1.msra.mxu0 0.0
        %1307 = vmatprep.subr.mxu0 0.0
        %1308 = vmatpush1.msra.mxu0 0.0
        %1309 = vmatprep.subr.mxu0 0.0
        %1310 = vmatpush1.msra.mxu0 0.0
        %1311 = vmatprep.subr.mxu0 0.0
        %1312 = vmatpush1.msra.mxu0 0.0
        %1313 = vmatprep.subr.mxu0 0.0
        %1314 = vmatpush1.msra.mxu0 0.0
        %1315 = vmatprep.subr.mxu0 0.0
        %1316 = vmatpush1.msra.mxu0 0.0
        %1317 = vmatprep.subr.mxu0 0.0
        %1318 = vmatpush1.msra.mxu0 0.0
        %1319 = vmatprep.subr.mxu0 0.0
        %1320 = vmatpush1.msra.mxu0 0.0
        %1321 = vmatprep.subr.mxu0 0.0
        %1322 = vmatpush1.msra.mxu0 0.0
        %1323 = vmatprep.subr.mxu0 0.0
        %1324 = vmatpush1.msra.mxu0 0.0
        %1325 = vmatprep.mubr.f32.mxu0 0.0
        %v1326 = vand.u32 %v884, 4294901760
        %1327 = vmatmul.mubr.f32.gmra.mrb[0].mxu0 %v1326
        %v1328 = vpop.f32.mrb[0].mxu0
        %v1329 = vadd.f32 %v1239, %v1328
        %v1330 = vpop.f32.mrb[0].mxu0
        %1331 = vmatprep.mubr.f32.mxu0 0.0
        %v1332 = vand.u32 %v887, 4294901760
        %1333 = vmatmul.mubr.f32.gmra.mrb[0].mxu0 %v1332
        %v1334 = vpop.f32.mrb[0].mxu0
        %v1335 = vadd.f32 %v1247, %v1334
        %v1336 = vpop.f32.mrb[0].mxu0
        %1337 = vmatprep.mubr.f32.mxu0 0.0
        %v1338 = vand.u32 %v890, 4294901760
        %1339 = vmatmul.mubr.f32.gmra.mrb[0].mxu0 %v1338
        %v1340 = vpop.f32.mrb[0].mxu0
        %v1341 = vadd.f32 %v1255, %v1340
        %v1342 = vpop.f32.mrb[0].mxu0
        %1343 = vdwg.mxu0
        %1344 = vmatprep.subr.mxu0 0.0
        %v1345 = vand.u32 %v894, 4294901760
        %1346 = vmatpush1.msra.mxu0 %v1345
        %1347 = vmatprep.subr.mxu0 0.0
        %1348 = vmatpush1.msra.mxu0 0.0
        %1349 = vmatprep.subr.mxu0 0.0
        %1350 = vmatpush1.msra.mxu0 0.0
        %1351 = vmatprep.subr.mxu0 0.0
        %1352 = vmatpush1.msra.mxu0 0.0
        %1353 = vmatprep.subr.mxu0 0.0
        %1354 = vmatpush1.msra.mxu0 0.0
        %1355 = vmatprep.subr.mxu0 0.0
        %1356 = vmatpush1.msra.mxu0 0.0
        %1357 = vmatprep.subr.mxu0 0.0
        %1358 = vmatpush1.msra.mxu0 0.0
        %1359 = vmatprep.subr.mxu0 0.0
        %1360 = vmatpush1.msra.mxu0 0.0
        %1361 = vmatprep.subr.mxu0 0.0
        %1362 = vmatpush1.msra.mxu0 0.0
        %1363 = vmatprep.subr.mxu0 0.0
        %1364 = vmatpush1.msra.mxu0 0.0
        %1365 = vmatprep.subr.mxu0 0.0
        %1366 = vmatpush1.msra.mxu0 0.0
        %1367 = vmatprep.subr.mxu0 0.0
        %1368 = vmatpush1.msra.mxu0 0.0
        %1369 = vmatprep.subr.mxu0 0.0
        %1370 = vmatpush1.msra.mxu0 0.0
        %1371 = vmatprep.subr.mxu0 0.0
        %1372 = vmatpush1.msra.mxu0 0.0
        %1373 = vmatprep.subr.mxu0 0.0
        %1374 = vmatpush1.msra.mxu0 0.0
        %1375 = vmatprep.subr.mxu0 0.0
        %1376 = vmatpush1.msra.mxu0 0.0
        %1377 = vmatprep.subr.mxu0 0.0
        %1378 = vmatpush1.msra.mxu0 0.0
        %1379 = vmatprep.subr.mxu0 0.0
        %1380 = vmatpush1.msra.mxu0 0.0
        %1381 = vmatprep.subr.mxu0 0.0
        %1382 = vmatpush1.msra.mxu0 0.0
        %1383 = vmatprep.subr.mxu0 0.0
        %1384 = vmatpush1.msra.mxu0 0.0
        %1385 = vmatprep.subr.mxu0 0.0
        %1386 = vmatpush1.msra.mxu0 0.0
        %1387 = vmatprep.subr.mxu0 0.0
        %1388 = vmatpush1.msra.mxu0 0.0
        %1389 = vmatprep.subr.mxu0 0.0
        %1390 = vmatpush1.msra.mxu0 0.0
        %1391 = vmatprep.subr.mxu0 0.0
        %1392 = vmatpush1.msra.mxu0 0.0
        %1393 = vmatprep.subr.mxu0 0.0
        %1394 = vmatpush1.msra.mxu0 0.0
        %1395 = vmatprep.subr.mxu0 0.0
        %1396 = vmatpush1.msra.mxu0 0.0
        %1397 = vmatprep.subr.mxu0 0.0
        %1398 = vmatpush1.msra.mxu0 0.0
        %1399 = vmatprep.subr.mxu0 0.0
        %1400 = vmatpush1.msra.mxu0 0.0
        %1401 = vmatprep.subr.mxu0 0.0
        %1402 = vmatpush1.msra.mxu0 0.0
        %1403 = vmatprep.subr.mxu0 0.0
        %1404 = vmatpush1.msra.mxu0 0.0
        %1405 = vmatprep.subr.mxu0 0.0
        %1406 = vmatpush1.msra.mxu0 0.0
        %1407 = vmatprep.subr.mxu0 0.0
        %1408 = vmatpush1.msra.mxu0 0.0
        %1409 = vmatprep.mubr.f32.mxu0 0.0
        %v1410 = vand.u32 %v884, 4294901760
        %1411 = vmatmul.mubr.f32.gmra.mrb[0].mxu0 %v1410
        %v1412 = vpop.f32.mrb[0].mxu0
        %v1413 = vadd.f32 %v1329, %v1412
        %v1414 = vpop.f32.mrb[0].mxu0
        %1415 = vmatprep.mubr.f32.mxu0 0.0
        %v1416 = vand.u32 %v887, 4294901760
        %1417 = vmatmul.mubr.f32.gmra.mrb[0].mxu0 %v1416
        %v1418 = vpop.f32.mrb[0].mxu0
        %v1419 = vadd.f32 %v1335, %v1418
        %v1420 = vpop.f32.mrb[0].mxu0
        %1421 = vmatprep.mubr.f32.mxu0 0.0
        %v1422 = vand.u32 %v890, 4294901760
        %1423 = vmatmul.mubr.f32.gmra.mrb[0].mxu0 %v1422
        %v1424 = vpop.f32.mrb[0].mxu0
        %v1425 = vadd.f32 %v1341, %v1424
        %v1426 = vpop.f32.mrb[0].mxu0
        %1427 = vdwg.mxu0
        %v1428 = vand.u32 2147483647, %v1413
        %vm1429 = vcmp.le.f32.partialorder %v1428, 0.7853982
        %vm1430 = vcmp.lt.s32.totalorder %v1413, 0
        %v1431 = vand.u32 %v1413, 2139095040
        %v1432 = vshrl.u32 %v1431, 23
        %v1433 = vsub.s32 %v1432, 127
        %v1434 = vand.u32 2147483647, %v1413
        %v1435 = vand.u32 %v1434, 8388607
        %v1436 = vor.u32 %v1435, 8388608
        %v1437 = vsub.s32 0, %v1436
        %v1438 = vadd.s32 %v1433, 1
        %vm1439 = vcmp.gt.s32.totalorder %v1438, 0
        %v1440 = vsel %vm1439, %v1438, 0
        %v1441 = vshrl.u32 %v1440, 5
        %v1442 = vand.u32 %v1440, 31
        %v1443 = vsub.s32 32, %v1442
        %v1444 = vshrl.u32 683565275, %v1443
        %v1445 = vshll.u32 683565275, %v1442
        %v1446 = vshrl.u32 2475754826, %v1443
        %v1447 = vor.u32 %v1445, %v1446
        %v1448 = vshll.u32 2475754826, %v1442
        %v1449 = vshrl.u32 2131351028, %v1443
        %v1450 = vor.u32 %v1448, %v1449
        %v1451 = vshll.u32 2131351028, %v1442
        %v1452 = vshrl.u32 2102212464, %v1443
        %v1453 = vor.u32 %v1451, %v1452
        %v1454 = vshll.u32 2102212464, %v1442
        %v1455 = vshrl.u32 920167782, %v1443
        %v1456 = vor.u32 %v1454, %v1455
        %v1457 = vshll.u32 920167782, %v1442
        %v1458 = vshrl.u32 1326507024, %v1443
        %v1459 = vor.u32 %v1457, %v1458
        %vm1460 = vcmp.lt.s32.totalorder %v1441, 1
        %vm1461 = vcmp.lt.s32.totalorder %v1441, 2
        %vm1462 = vcmp.lt.s32.totalorder %v1441, 3
        %vm1463 = vcmp.lt.s32.totalorder %v1441, 4
        %v1464 = vsel %vm1460, %v1444, %v1447
        %v1465 = vsel %vm1463, %v1453, 2102212464
        %v1466 = vsel %vm1462, %v1450, %v1465
        %v1467 = vsel %vm1461, %v1464, %v1466
        %v1468 = vsel %vm1460, %v1447, %v1450
        %v1469 = vsel %vm1463, %v1456, 920167782
        %v1470 = vsel %vm1462, %v1453, %v1469
        %v1471 = vsel %vm1461, %v1468, %v1470
        %v1472 = vsel %vm1460, %v1450, %v1453
        %v1473 = vsel %vm1463, %v1459, 1326507024
        %v1474 = vsel %vm1462, %v1456, %v1473
        %v1475 = vsel %vm1461, %v1472, %v1474
        %v1476 = vshll.u32 %v1436, 8
        %v1477 = vmul.u32.u64.compose %v1476, %v1475
        %v1478 = vextract.low.u32 %v1477
        %v1479 = vextract.high.u32 %v1477
        %v1480 = vmul.u32.u64.compose %v1476, %v1471
        %v1481 = vextract.low.u32 %v1480
        %v1482 = vextract.high.u32 %v1480
        %v1483 = vmul.u32 %v1476, %v1467
        %v1484 = vadd.s32 %v1479, %v1481
        %vm1485 = vc.u32 %v1479, %v1481
        %v1486 = vadd.s32 %v1482, 1
        %v1487 = vsel %vm1485, %v1486, %v1482
        %v1488 = vadd.s32 %v1483, %v1487
        %v1489 = vadd.s32 %v1488, 536870912
        %v1490 = vshrl.u32 %v1489, 30
        %v1491 = vshll.u32 %v1490, 30
        %v1492 = vsub.s32 %v1488, %v1491
        %vm1493 = vcmp.lt.s32.totalorder %v1492, 0
        %v1494 = vsub.s32 0, %v1492
        %v1495 = vsel %vm1493, %v1494, %v1492
        %v1496 = vclz %v1495
        %v1497 = vsub.s32 %v1496, 2
        %vm1498 = vcmp.gt.s32.totalorder 0, %v1497
        %v1499 = vsel %vm1498, 0, %v1497
        %v1500 = vsub.s32 32, %v1499
        %v1501 = vshll.u32 %v1492, %v1499
        %v1502 = vshrl.u32 %v1484, %v1500
        %v1503 = vor.u32 %v1501, %v1502
        %v1504 = vsub.s32 4294967266, %v1499
        %v1505 = vadd.s32 %v1504, 127
        %v1506 = vshll.u32 %v1505, 23
        %v1507 = vor.u32 4788187, %v1506
        %v1508 = vand.u32 2147483647, %v1507
        %v1510 = vcvt.s32.f32 %v1503
        %v1511 = vmul.f32 %v1510, %v1508
        %v1512 = vxor.u32 %v1511, 2147483648
        %v1513 = vsel %vm1430, %v1512, %v1511
        %v1514 = vsub.s32 4, %v1490
        %v1515 = vsel %vm1430, %v1514, %v1490
        %v1516 = vsel %vm1429, %v1413, %v1513
        %v1517 = vsel %vm1429, 0, %v1515
        %v1518 = vcosq.f32.pop %v1516
        %v1519 = vsinq.f32.pop %v1516
        %vm1520 = vweird.f32 %v1413
        %v1521 = vadd.s32 %v1517, 3
        %v1522 = vand.u32 %v1521, 3
        %vm1523 = vcmp.lt.s32.totalorder %v1522, 2
        %vm1524 = vcmp.eq.s32.totalorder %v1522, 0
        %v1525 = vxor.u32 %v1519, 2147483648
        %v1526 = vsel %vm1524, %v1518, %v1525
        %vm1527 = vcmp.eq.s32.totalorder %v1522, 2
        %v1528 = vxor.u32 %v1518, 2147483648
        %v1529 = vsel %vm1527, %v1528, %v1519
        %v1530 = vsel %vm1523, %v1526, %v1529
        %v1531 = vsel %vm1520, nan, %v1530
        %v1532 = vand.u32 2147483647, %v1419
        %vm1533 = vcmp.le.f32.partialorder %v1532, 0.7853982
        %vm1534 = vcmp.lt.s32.totalorder %v1419, 0
        %v1535 = vand.u32 %v1419, 2139095040
        %v1536 = vshrl.u32 %v1535, 23
        %v1537 = vsub.s32 %v1536, 127
        %v1538 = vand.u32 2147483647, %v1419
        %v1539 = vand.u32 %v1538, 8388607
        %v1540 = vor.u32 %v1539, 8388608
        %v1541 = vsub.s32 0, %v1540
        %v1542 = vadd.s32 %v1537, 1
        %vm1543 = vcmp.gt.s32.totalorder %v1542, 0
        %v1544 = vsel %vm1543, %v1542, 0
        %v1545 = vshrl.u32 %v1544, 5
        %v1546 = vand.u32 %v1544, 31
        %v1547 = vsub.s32 32, %v1546
        %v1548 = vshrl.u32 683565275, %v1547
        %v1549 = vshll.u32 683565275, %v1546
        %v1550 = vshrl.u32 2475754826, %v1547
        %v1551 = vor.u32 %v1549, %v1550
        %v1552 = vshll.u32 2475754826, %v1546
        %v1553 = vshrl.u32 2131351028, %v1547
        %v1554 = vor.u32 %v1552, %v1553
        %v1555 = vshll.u32 2131351028, %v1546
        %v1556 = vshrl.u32 2102212464, %v1547
        %v1557 = vor.u32 %v1555, %v1556
        %v1558 = vshll.u32 2102212464, %v1546
        %v1559 = vshrl.u32 920167782, %v1547
        %v1560 = vor.u32 %v1558, %v1559
        %v1561 = vshll.u32 920167782, %v1546
        %v1562 = vshrl.u32 1326507024, %v1547
        %v1563 = vor.u32 %v1561, %v1562
        %vm1564 = vcmp.lt.s32.totalorder %v1545, 1
        %vm1565 = vcmp.lt.s32.totalorder %v1545, 2
        %vm1566 = vcmp.lt.s32.totalorder %v1545, 3
        %vm1567 = vcmp.lt.s32.totalorder %v1545, 4
        %v1568 = vsel %vm1564, %v1548, %v1551
        %v1569 = vsel %vm1567, %v1557, 2102212464
        %v1570 = vsel %vm1566, %v1554, %v1569
        %v1571 = vsel %vm1565, %v1568, %v1570
        %v1572 = vsel %vm1564, %v1551, %v1554
        %v1573 = vsel %vm1567, %v1560, 920167782
        %v1574 = vsel %vm1566, %v1557, %v1573
        %v1575 = vsel %vm1565, %v1572, %v1574
        %v1576 = vsel %vm1564, %v1554, %v1557
        %v1577 = vsel %vm1567, %v1563, 1326507024
        %v1578 = vsel %vm1566, %v1560, %v1577
        %v1579 = vsel %vm1565, %v1576, %v1578
        %v1580 = vshll.u32 %v1540, 8
        %v1581 = vmul.u32.u64.compose %v1580, %v1579
        %v1582 = vextract.low.u32 %v1581
        %v1583 = vextract.high.u32 %v1581
        %v1584 = vmul.u32.u64.compose %v1580, %v1575
        %v1585 = vextract.low.u32 %v1584
        %v1586 = vextract.high.u32 %v1584
        %v1587 = vmul.u32 %v1580, %v1571
        %v1588 = vadd.s32 %v1583, %v1585
        %vm1589 = vc.u32 %v1583, %v1585
        %v1590 = vadd.s32 %v1586, 1
        %v1591 = vsel %vm1589, %v1590, %v1586
        %v1592 = vadd.s32 %v1587, %v1591
        %v1593 = vadd.s32 %v1592, 536870912
        %v1594 = vshrl.u32 %v1593, 30
        %v1595 = vshll.u32 %v1594, 30
        %v1596 = vsub.s32 %v1592, %v1595
        %vm1597 = vcmp.lt.s32.totalorder %v1596, 0
        %v1598 = vsub.s32 0, %v1596
        %v1599 = vsel %vm1597, %v1598, %v1596
        %v1600 = vclz %v1599
        %v1601 = vsub.s32 %v1600, 2
        %vm1602 = vcmp.gt.s32.totalorder 0, %v1601
        %v1603 = vsel %vm1602, 0, %v1601
        %v1604 = vsub.s32 32, %v1603
        %v1605 = vshll.u32 %v1596, %v1603
        %v1606 = vshrl.u32 %v1588, %v1604
        %v1607 = vor.u32 %v1605, %v1606
        %v1608 = vsub.s32 4294967266, %v1603
        %v1609 = vadd.s32 %v1608, 127
        %v1610 = vshll.u32 %v1609, 23
        %v1611 = vor.u32 4788187, %v1610
        %v1612 = vand.u32 2147483647, %v1611
        %v1614 = vcvt.s32.f32 %v1607
        %v1615 = vmul.f32 %v1614, %v1612
        %v1616 = vxor.u32 %v1615, 2147483648
        %v1617 = vsel %vm1534, %v1616, %v1615
        %v1618 = vsub.s32 4, %v1594
        %v1619 = vsel %vm1534, %v1618, %v1594
        %v1620 = vsel %vm1533, %v1419, %v1617
        %v1621 = vsel %vm1533, 0, %v1619
        %v1622 = vcosq.f32.pop %v1620
        %v1623 = vsinq.f32.pop %v1620
        %vm1624 = vweird.f32 %v1419
        %v1625 = vadd.s32 %v1621, 3
        %v1626 = vand.u32 %v1625, 3
        %vm1627 = vcmp.lt.s32.totalorder %v1626, 2
        %vm1628 = vcmp.eq.s32.totalorder %v1626, 0
        %v1629 = vxor.u32 %v1623, 2147483648
        %v1630 = vsel %vm1628, %v1622, %v1629
        %vm1631 = vcmp.eq.s32.totalorder %v1626, 2
        %v1632 = vxor.u32 %v1622, 2147483648
        %v1633 = vsel %vm1631, %v1632, %v1623
        %v1634 = vsel %vm1627, %v1630, %v1633
        %v1635 = vsel %vm1624, nan, %v1634
        %v1636 = vand.u32 2147483647, %v1425
        %vm1637 = vcmp.le.f32.partialorder %v1636, 0.7853982
        %vm1638 = vcmp.lt.s32.totalorder %v1425, 0
        %v1639 = vand.u32 %v1425, 2139095040
        %v1640 = vshrl.u32 %v1639, 23
        %v1641 = vsub.s32 %v1640, 127
        %v1642 = vand.u32 2147483647, %v1425
        %v1643 = vand.u32 %v1642, 8388607
        %v1644 = vor.u32 %v1643, 8388608
        %v1645 = vsub.s32 0, %v1644
        %v1646 = vadd.s32 %v1641, 1
        %vm1647 = vcmp.gt.s32.totalorder %v1646, 0
        %v1648 = vsel %vm1647, %v1646, 0
        %v1649 = vshrl.u32 %v1648, 5
        %v1650 = vand.u32 %v1648, 31
        %v1651 = vsub.s32 32, %v1650
        %v1652 = vshrl.u32 683565275, %v1651
        %v1653 = vshll.u32 683565275, %v1650
        %v1654 = vshrl.u32 2475754826, %v1651
        %v1655 = vor.u32 %v1653, %v1654
        %v1656 = vshll.u32 2475754826, %v1650
        %v1657 = vshrl.u32 2131351028, %v1651
        %v1658 = vor.u32 %v1656, %v1657
        %v1659 = vshll.u32 2131351028, %v1650
        %v1660 = vshrl.u32 2102212464, %v1651
        %v1661 = vor.u32 %v1659, %v1660
        %v1662 = vshll.u32 2102212464, %v1650
        %v1663 = vshrl.u32 920167782, %v1651
        %v1664 = vor.u32 %v1662, %v1663
        %v1665 = vshll.u32 920167782, %v1650
        %v1666 = vshrl.u32 1326507024, %v1651
        %v1667 = vor.u32 %v1665, %v1666
        %vm1668 = vcmp.lt.s32.totalorder %v1649, 1
        %vm1669 = vcmp.lt.s32.totalorder %v1649, 2
        %vm1670 = vcmp.lt.s32.totalorder %v1649, 3
        %vm1671 = vcmp.lt.s32.totalorder %v1649, 4
        %v1672 = vsel %vm1668, %v1652, %v1655
        %v1673 = vsel %vm1671, %v1661, 2102212464
        %v1674 = vsel %vm1670, %v1658, %v1673
        %v1675 = vsel %vm1669, %v1672, %v1674
        %v1676 = vsel %vm1668, %v1655, %v1658
        %v1677 = vsel %vm1671, %v1664, 920167782
        %v1678 = vsel %vm1670, %v1661, %v1677
        %v1679 = vsel %vm1669, %v1676, %v1678
        %v1680 = vsel %vm1668, %v1658, %v1661
        %v1681 = vsel %vm1671, %v1667, 1326507024
        %v1682 = vsel %vm1670, %v1664, %v1681
        %v1683 = vsel %vm1669, %v1680, %v1682
        %v1684 = vshll.u32 %v1644, 8
        %v1685 = vmul.u32.u64.compose %v1684, %v1683
        %v1686 = vextract.low.u32 %v1685
        %v1687 = vextract.high.u32 %v1685
        %v1688 = vmul.u32.u64.compose %v1684, %v1679
        %v1689 = vextract.low.u32 %v1688
        %v1690 = vextract.high.u32 %v1688
        %v1691 = vmul.u32 %v1684, %v1675
        %v1692 = vadd.s32 %v1687, %v1689
        %vm1693 = vc.u32 %v1687, %v1689
        %v1694 = vadd.s32 %v1690, 1
        %v1695 = vsel %vm1693, %v1694, %v1690
        %v1696 = vadd.s32 %v1691, %v1695
        %v1697 = vadd.s32 %v1696, 536870912
        %v1698 = vshrl.u32 %v1697, 30
        %v1699 = vshll.u32 %v1698, 30
        %v1700 = vsub.s32 %v1696, %v1699
        %vm1701 = vcmp.lt.s32.totalorder %v1700, 0
        %v1702 = vsub.s32 0, %v1700
        %v1703 = vsel %vm1701, %v1702, %v1700
        %v1704 = vclz %v1703
        %v1705 = vsub.s32 %v1704, 2
        %vm1706 = vcmp.gt.s32.totalorder 0, %v1705
        %v1707 = vsel %vm1706, 0, %v1705
        %v1708 = vsub.s32 32, %v1707
        %v1709 = vshll.u32 %v1700, %v1707
        %v1710 = vshrl.u32 %v1692, %v1708
        %v1711 = vor.u32 %v1709, %v1710
        %v1712 = vsub.s32 4294967266, %v1707
        %v1713 = vadd.s32 %v1712, 127
        %v1714 = vshll.u32 %v1713, 23
        %v1715 = vor.u32 4788187, %v1714
        %v1716 = vand.u32 2147483647, %v1715
        %v1718 = vcvt.s32.f32 %v1711
        %v1719 = vmul.f32 %v1718, %v1716
        %v1720 = vxor.u32 %v1719, 2147483648
        %v1721 = vsel %vm1638, %v1720, %v1719
        %v1722 = vsub.s32 4, %v1698
        %v1723 = vsel %vm1638, %v1722, %v1698
        %v1724 = vsel %vm1637, %v1425, %v1721
        %v1725 = vsel %vm1637, 0, %v1723
        %v1726 = vcosq.f32.pop %v1724
        %v1727 = vsinq.f32.pop %v1724
        %vm1728 = vweird.f32 %v1425
        %v1729 = vadd.s32 %v1725, 3
        %v1730 = vand.u32 %v1729, 3
        %vm1731 = vcmp.lt.s32.totalorder %v1730, 2
        %vm1732 = vcmp.eq.s32.totalorder %v1730, 0
        %v1733 = vxor.u32 %v1727, 2147483648
        %v1734 = vsel %vm1732, %v1726, %v1733
        %vm1735 = vcmp.eq.s32.totalorder %v1730, 2
        %v1736 = vxor.u32 %v1726, 2147483648
        %v1737 = vsel %vm1735, %v1736, %v1727
        %v1738 = vsel %vm1731, %v1734, %v1737
        %v1739 = vsel %vm1728, nan, %v1738
        %v1740 = vpack.c.bf16 %v1635, %v1531
        %v1741 = vpack.c.bf16 %v1739, %v1739
        %v1742 = vld [vmem:[%s7] sm:$0xf]
        %v1743 = vld [vmem:[%s7 + $0x4] sm:$0xf]
        %v1744 = vld [vmem:[%s7 + $0x8] sm:$0xf]
        %v1745 = vld [vmem:[%s7 + $0xc] sm:$0xf]
        %v1746 = vld [vmem:[%s7 + $0x10] sm:$0xf]
        %v1747 = vld [vmem:[%s7 + $0x14] sm:$0xf]
        %v1748 = vld [vmem:[%s7 + $0x18] sm:$0xf]
        %v1749 = vld [vmem:[%s7 + $0x1c] sm:$0xf]
        %v1750 = vpack.c.bf16 %v846, %v845
        %v1751 = vpack.c.bf16 %v848, %v847
        %v1752 = vld [vmem:[%s8] sm:$0xf]
        %v1753 = vld [vmem:[%s8 + $0x4] sm:$0xf]
        %v1754 = vld [vmem:[%s8 + $0x8] sm:$0xf]
        %v1755 = vld [vmem:[%s8 + $0xc] sm:$0xf]
        %v1756 = vld [vmem:[%s8 + $0x10] sm:$0xf]
        %v1757 = vld [vmem:[%s8 + $0x14] sm:$0xf]
        %v1758 = vld [vmem:[%s8 + $0x18] sm:$0xf]
        %v1759 = vld [vmem:[%s8 + $0x1c] sm:$0xf]
        %v1768 = vunpack.c.l.b16 %v1752
        %v1769 = vunpack.c.l.b16 %v1753
        %v1770 = vunpack.c.l.b16 %v1754
        %v1771 = vunpack.c.l.b16 %v1755
        %v1772 = vunpack.c.l.b16 %v1756
        %v1773 = vunpack.c.l.b16 %v1757
        %v1774 = vunpack.c.l.b16 %v1758
        %v1775 = vunpack.c.l.b16 %v1759
        %v1776 = vpack.c.b16 %v1769, %v1768
        %v1777 = vpack.c.b16 %v1771, %v1770
        %v1778 = vpack.c.b16 %v1773, %v1772
        %v1779 = vpack.c.b16 %v1775, %v1774
        %vm1780 = vcmask 195584
        %v1782 = vsel %vm1780, %v1776, 0
        %v1785 = vsel %vm1780, %v1777, 0
        %v1788 = vsel %vm1780, %v1778, 0
        %v1791 = vsel %vm1780, %v1779, 0
        %vm1793 = vcmask 1043456
        %v1795 = vsel %vm1793, %v1741, 0
        %1797 = vmatprep.subr.bf16.mxu0 0
        %1798 = vmatpush1.bf16.msra.mxu0 %v1740
        %1799 = vmatprep.subr.bf16.mxu0 0
        %1800 = vmatpush1.bf16.msra.mxu0 %v1795
        %1801 = vmatprep.subr.bf16.mxu0 0
        %1802 = vmatpush1.bf16.msra.mxu0 0
        %1803 = vmatprep.subr.bf16.mxu0 0
        %1804 = vmatpush1.bf16.msra.mxu0 0
        %1805 = vmatprep.subr.bf16.mxu0 0
        %1806 = vmatpush1.bf16.msra.mxu0 0
        %1807 = vmatprep.subr.bf16.mxu0 0
        %1808 = vmatpush1.bf16.msra.mxu0 0
        %1809 = vmatprep.subr.bf16.mxu0 0
        %1810 = vmatpush1.bf16.msra.mxu0 0
        %1811 = vmatprep.subr.bf16.mxu0 0
        %1812 = vmatpush1.bf16.msra.mxu0 0
        %1813 = vmatprep.subr.bf16.mxu0 0
        %1814 = vmatpush1.bf16.msra.mxu0 0
        %1815 = vmatprep.subr.bf16.mxu0 0
        %1816 = vmatpush1.bf16.msra.mxu0 0
        %1817 = vmatprep.subr.bf16.mxu0 0
        %1818 = vmatpush1.bf16.msra.mxu0 0
        %1819 = vmatprep.subr.bf16.mxu0 0
        %1820 = vmatpush1.bf16.msra.mxu0 0
        %1821 = vmatprep.subr.bf16.mxu0 0
        %1822 = vmatpush1.bf16.msra.mxu0 0
        %1823 = vmatprep.subr.bf16.mxu0 0
        %1824 = vmatpush1.bf16.msra.mxu0 0
        %1825 = vmatprep.subr.bf16.mxu0 0
        %1826 = vmatpush1.bf16.msra.mxu0 0
        %1827 = vmatprep.subr.bf16.mxu0 0
        %1828 = vmatpush1.bf16.msra.mxu0 0
        %1829 = vmatprep.mubr.bf16.mxu0 0
        %1830 = vmatmul.mubr.bf16.gmra.mrb[0].mxu0 %v1782
        %v1831 = vpop.f32.mrb[0].mxu0
        %v1832 = vadd.f32 0.0, %v1831
        %v1833 = vpop.f32.mrb[0].mxu0
        %v1834 = vpop.f32.mrb[0].mxu0
        %v1835 = vadd.f32 0.0, %v1834
        %v1836 = vpop.f32.mrb[0].mxu0
        %1837 = vmatprep.mubr.bf16.mxu0 0
        %1838 = vmatmul.mubr.bf16.gmra.mrb[0].mxu0 %v1785
        %v1839 = vpop.f32.mrb[0].mxu0
        %v1840 = vadd.f32 0.0, %v1839
        %v1841 = vpop.f32.mrb[0].mxu0
        %v1842 = vpop.f32.mrb[0].mxu0
        %v1843 = vadd.f32 0.0, %v1842
        %v1844 = vpop.f32.mrb[0].mxu0
        %1845 = vmatprep.mubr.bf16.mxu0 0
        %1846 = vmatmul.mubr.bf16.gmra.mrb[0].mxu0 %v1788
        %v1847 = vpop.f32.mrb[0].mxu0
        %v1848 = vadd.f32 0.0, %v1847
        %v1849 = vpop.f32.mrb[0].mxu0
        %v1850 = vpop.f32.mrb[0].mxu0
        %v1851 = vadd.f32 0.0, %v1850
        %v1852 = vpop.f32.mrb[0].mxu0
        %1853 = vmatprep.mubr.bf16.mxu0 0
        %1854 = vmatmul.mubr.bf16.gmra.mrb[0].mxu0 %v1791
        %v1855 = vpop.f32.mrb[0].mxu0
        %v1856 = vadd.f32 0.0, %v1855
        %v1857 = vpop.f32.mrb[0].mxu0
        %v1858 = vpop.f32.mrb[0].mxu0
        %v1859 = vadd.f32 0.0, %v1858
        %v1860 = vpop.f32.mrb[0].mxu0
        %1861 = vdwg.mxu0
        %v1870 = vunpack.c.l.b16 %v1742
        %v1871 = vunpack.c.l.b16 %v1743
        %v1872 = vunpack.c.l.b16 %v1744
        %v1873 = vunpack.c.l.b16 %v1745
        %v1874 = vunpack.c.l.b16 %v1746
        %v1875 = vunpack.c.l.b16 %v1747
        %v1876 = vunpack.c.l.b16 %v1748
        %v1877 = vunpack.c.l.b16 %v1749
        %v1878 = vpack.c.b16 %v1871, %v1870
        %v1879 = vpack.c.b16 %v1873, %v1872
        %v1880 = vpack.c.b16 %v1875, %v1874
        %v1881 = vpack.c.b16 %v1877, %v1876
        %vm1882 = vcmask 261120
        %v1884 = vsel %vm1882, %v1878, 0
        %v1887 = vsel %vm1882, %v1879, 0
        %v1890 = vsel %vm1882, %v1880, 0
        %v1893 = vsel %vm1882, %v1881, 0
        %1895 = vmatprep.subr.bf16.mxu0 0
        %1896 = vmatpush1.bf16.msra.mxu0 %v1750
        %1897 = vmatprep.subr.bf16.mxu0 0
        %1898 = vmatpush1.bf16.msra.mxu0 %v1751
        %1899 = vmatprep.subr.bf16.mxu0 0
        %1900 = vmatpush1.bf16.msra.mxu0 0
        %1901 = vmatprep.subr.bf16.mxu0 0
        %1902 = vmatpush1.bf16.msra.mxu0 0
        %1903 = vmatprep.subr.bf16.mxu0 0
        %1904 = vmatpush1.bf16.msra.mxu0 0
        %1905 = vmatprep.subr.bf16.mxu0 0
        %1906 = vmatpush1.bf16.msra.mxu0 0
        %1907 = vmatprep.subr.bf16.mxu0 0
        %1908 = vmatpush1.bf16.msra.mxu0 0
        %1909 = vmatprep.subr.bf16.mxu0 0
        %1910 = vmatpush1.bf16.msra.mxu0 0
        %1911 = vmatprep.subr.bf16.mxu0 0
        %1912 = vmatpush1.bf16.msra.mxu0 0
        %1913 = vmatprep.subr.bf16.mxu0 0
        %1914 = vmatpush1.bf16.msra.mxu0 0
        %1915 = vmatprep.subr.bf16.mxu0 0
        %1916 = vmatpush1.bf16.msra.mxu0 0
        %1917 = vmatprep.subr.bf16.mxu0 0
        %1918 = vmatpush1.bf16.msra.mxu0 0
        %1919 = vmatprep.subr.bf16.mxu0 0
        %1920 = vmatpush1.bf16.msra.mxu0 0
        %1921 = vmatprep.subr.bf16.mxu0 0
        %1922 = vmatpush1.bf16.msra.mxu0 0
        %1923 = vmatprep.subr.bf16.mxu0 0
        %1924 = vmatpush1.bf16.msra.mxu0 0
        %1925 = vmatprep.subr.bf16.mxu0 0
        %1926 = vmatpush1.bf16.msra.mxu0 0
        %1927 = vmatprep.mubr.bf16.mxu0 0
        %1928 = vmatmul.mubr.bf16.gmra.mrb[0].mxu0 %v1884
        %v1929 = vpop.f32.mrb[0].mxu0
        %v1930 = vadd.f32 %v1832, %v1929
        %v1931 = vpop.f32.mrb[0].mxu0
        %v1932 = vpop.f32.mrb[0].mxu0
        %v1933 = vadd.f32 %v1835, %v1932
        %v1934 = vpop.f32.mrb[0].mxu0
        %1935 = vmatprep.mubr.bf16.mxu0 0
        %1936 = vmatmul.mubr.bf16.gmra.mrb[0].mxu0 %v1887
        %v1937 = vpop.f32.mrb[0].mxu0
        %v1938 = vadd.f32 %v1840, %v1937
        %v1939 = vpop.f32.mrb[0].mxu0
        %v1940 = vpop.f32.mrb[0].mxu0
        %v1941 = vadd.f32 %v1843, %v1940
        %v1942 = vpop.f32.mrb[0].mxu0
        %1943 = vmatprep.mubr.bf16.mxu0 0
        %1944 = vmatmul.mubr.bf16.gmra.mrb[0].mxu0 %v1890
        %v1945 = vpop.f32.mrb[0].mxu0
        %v1946 = vadd.f32 %v1848, %v1945
        %v1947 = vpop.f32.mrb[0].mxu0
        %v1948 = vpop.f32.mrb[0].mxu0
        %v1949 = vadd.f32 %v1851, %v1948
        %v1950 = vpop.f32.mrb[0].mxu0
        %1951 = vmatprep.mubr.bf16.mxu0 0
        %1952 = vmatmul.mubr.bf16.gmra.mrb[0].mxu0 %v1893
        %v1953 = vpop.f32.mrb[0].mxu0
        %v1954 = vadd.f32 %v1856, %v1953
        %v1955 = vpop.f32.mrb[0].mxu0
        %v1956 = vpop.f32.mrb[0].mxu0
        %v1957 = vadd.f32 %v1859, %v1956
        %v1958 = vpop.f32.mrb[0].mxu0
        %1959 = vdwg.mxu0
        %v1960 = vld [vmem:[%s4] sm:$0xf]
        %v1961 = vld [vmem:[%s4 + $0x4] sm:$0xf]
        %v1962 = vld [vmem:[%s4 + $0x8] sm:$0xf]
        %v1963 = vld [vmem:[%s4 + $0xc] sm:$0xf]
        %v1964 = vld [vmem:[%s4 + $0x10] sm:$0xf]
        %v1965 = vld [vmem:[%s4 + $0x14] sm:$0xf]
        %v1966 = vld [vmem:[%s4 + $0x18] sm:$0xf]
        %v1967 = vld [vmem:[%s4 + $0x1c] sm:$0xf]
        %v1968 = vpack.c.bf16 %v701, %v701
        %v1977 = vunpack.c.l.b16 %v1960
        %v1978 = vunpack.c.l.b16 %v1961
        %v1979 = vunpack.c.l.b16 %v1962
        %v1980 = vunpack.c.l.b16 %v1963
        %v1981 = vunpack.c.l.b16 %v1964
        %v1982 = vunpack.c.l.b16 %v1965
        %v1983 = vunpack.c.l.b16 %v1966
        %v1984 = vunpack.c.l.b16 %v1967
        %v1985 = vpack.c.b16 %v1978, %v1977
        %v1986 = vpack.c.b16 %v1980, %v1979
        %v1987 = vpack.c.b16 %v1982, %v1981
        %v1988 = vpack.c.b16 %v1984, %v1983
        %v1990 = vsel %vm882, %v1985, 0
        %v1993 = vsel %vm882, %v1986, 0
        %v1996 = vsel %vm882, %v1987, 0
        %v1999 = vsel %vm882, %v1988, 0
        %vm2001 = vcmask 1040384
        %vm2002 = vcmask 1041408
        %v2003 = vsel %vm2001, 4294967295, 65535
        %v2004 = vsel %vm2002, %v2003, 0
        %v2006 = vand.u32 %v1968, %v2004
        %2008 = vmatprep.subr.bf16.mxu0 0
        %2009 = vmatpush1.bf16.msra.mxu0 %v2006
        %2010 = vmatprep.subr.bf16.mxu0 0
        %2011 = vmatpush1.bf16.msra.mxu0 0
        %2012 = vmatprep.subr.bf16.mxu0 0
        %2013 = vmatpush1.bf16.msra.mxu0 0
        %2014 = vmatprep.subr.bf16.mxu0 0
        %2015 = vmatpush1.bf16.msra.mxu0 0
        %2016 = vmatprep.subr.bf16.mxu0 0
        %2017 = vmatpush1.bf16.msra.mxu0 0
        %2018 = vmatprep.subr.bf16.mxu0 0
        %2019 = vmatpush1.bf16.msra.mxu0 0
        %2020 = vmatprep.subr.bf16.mxu0 0
        %2021 = vmatpush1.bf16.msra.mxu0 0
        %2022 = vmatprep.subr.bf16.mxu0 0
        %2023 = vmatpush1.bf16.msra.mxu0 0
        %2024 = vmatprep.subr.bf16.mxu0 0
        %2025 = vmatpush1.bf16.msra.mxu0 0
        %2026 = vmatprep.subr.bf16.mxu0 0
        %2027 = vmatpush1.bf16.msra.mxu0 0
        %2028 = vmatprep.subr.bf16.mxu0 0
        %2029 = vmatpush1.bf16.msra.mxu0 0
        %2030 = vmatprep.subr.bf16.mxu0 0
        %2031 = vmatpush1.bf16.msra.mxu0 0
        %2032 = vmatprep.subr.bf16.mxu0 0
        %2033 = vmatpush1.bf16.msra.mxu0 0
        %2034 = vmatprep.subr.bf16.mxu0 0
        %2035 = vmatpush1.bf16.msra.mxu0 0
        %2036 = vmatprep.subr.bf16.mxu0 0
        %2037 = vmatpush1.bf16.msra.mxu0 0
        %2038 = vmatprep.subr.bf16.mxu0 0
        %2039 = vmatpush1.bf16.msra.mxu0 0
        %2040 = vmatprep.mubr.bf16.mxu0 0
        %2041 = vmatmul.mubr.bf16.gmra.mrb[0].mxu0 %v1990
        %v2042 = vpop.f32.mrb[0].mxu0
        %v2043 = vadd.f32 0.0, %v2042
        %v2044 = vpop.f32.mrb[0].mxu0
        %v2045 = vpop.f32.mrb[0].mxu0
        %v2046 = vadd.f32 0.0, %v2045
        %v2047 = vpop.f32.mrb[0].mxu0
        %2048 = vmatprep.mubr.bf16.mxu0 0
        %2049 = vmatmul.mubr.bf16.gmra.mrb[0].mxu0 %v1993
        %v2050 = vpop.f32.mrb[0].mxu0
        %v2051 = vadd.f32 0.0, %v2050
        %v2052 = vpop.f32.mrb[0].mxu0
        %v2053 = vpop.f32.mrb[0].mxu0
        %v2054 = vadd.f32 0.0, %v2053
        %v2055 = vpop.f32.mrb[0].mxu0
        %2056 = vmatprep.mubr.bf16.mxu0 0
        %2057 = vmatmul.mubr.bf16.gmra.mrb[0].mxu0 %v1996
        %v2058 = vpop.f32.mrb[0].mxu0
        %v2059 = vadd.f32 0.0, %v2058
        %v2060 = vpop.f32.mrb[0].mxu0
        %v2061 = vpop.f32.mrb[0].mxu0
        %v2062 = vadd.f32 0.0, %v2061
        %v2063 = vpop.f32.mrb[0].mxu0
        %2064 = vmatprep.mubr.bf16.mxu0 0
        %2065 = vmatmul.mubr.bf16.gmra.mrb[0].mxu0 %v1999
        %v2066 = vpop.f32.mrb[0].mxu0
        %v2067 = vadd.f32 0.0, %v2066
        %v2068 = vpop.f32.mrb[0].mxu0
        %v2069 = vpop.f32.mrb[0].mxu0
        %v2070 = vadd.f32 0.0, %v2069
        %v2071 = vpop.f32.mrb[0].mxu0
        %2072 = vdwg.mxu0
        %v2073 = vadd.f32 %v1930, %v2043
        %v2074 = vadd.f32 %v1933, %v2046
        %v2075 = vadd.f32 %v1938, %v2051
        %v2076 = vadd.f32 %v1941, %v2054
        %v2077 = vadd.f32 %v1946, %v2059
        %v2078 = vadd.f32 %v1949, %v2062
        %v2079 = vadd.f32 %v1954, %v2067
        %v2080 = vadd.f32 %v1957, %v2070
        %v2081 = vld [vmem:[%s5] sm:$0xf]
        %v2082 = vld [vmem:[%s5 + $0x4] sm:$0xf]
        %v2083 = vld [vmem:[%s5 + $0x8] sm:$0xf]
        %v2084 = vld [vmem:[%s5 + $0xc] sm:$0xf]
        %v2085 = vld [vmem:[%s5 + $0x10] sm:$0xf]
        %v2086 = vld [vmem:[%s5 + $0x14] sm:$0xf]
        %v2087 = vld [vmem:[%s5 + $0x18] sm:$0xf]
        %v2088 = vld [vmem:[%s5 + $0x1c] sm:$0xf]
        %v2089 = vpack.c.bf16 %v749, %v749
        %v2098 = vunpack.c.l.b16 %v2081
        %v2099 = vunpack.c.l.b16 %v2082
        %v2100 = vunpack.c.l.b16 %v2083
        %v2101 = vunpack.c.l.b16 %v2084
        %v2102 = vunpack.c.l.b16 %v2085
        %v2103 = vunpack.c.l.b16 %v2086
        %v2104 = vunpack.c.l.b16 %v2087
        %v2105 = vunpack.c.l.b16 %v2088
        %v2106 = vpack.c.b16 %v2099, %v2098
        %v2107 = vpack.c.b16 %v2101, %v2100
        %v2108 = vpack.c.b16 %v2103, %v2102
        %v2109 = vpack.c.b16 %v2105, %v2104
        %v2111 = vsel %vm882, %v2106, 0
        %v2114 = vsel %vm882, %v2107, 0
        %v2117 = vsel %vm882, %v2108, 0
        %v2120 = vsel %vm882, %v2109, 0
        %v2123 = vand.u32 %v2089, %v2004
        %2125 = vmatprep.subr.bf16.mxu0 0
        %2126 = vmatpush1.bf16.msra.mxu0 %v2123
        %2127 = vmatprep.subr.bf16.mxu0 0
        %2128 = vmatpush1.bf16.msra.mxu0 0
        %2129 = vmatprep.subr.bf16.mxu0 0
        %2130 = vmatpush1.bf16.msra.mxu0 0
        %2131 = vmatprep.subr.bf16.mxu0 0
        %2132 = vmatpush1.bf16.msra.mxu0 0
        %2133 = vmatprep.subr.bf16.mxu0 0
        %2134 = vmatpush1.bf16.msra.mxu0 0
        %2135 = vmatprep.subr.bf16.mxu0 0
        %2136 = vmatpush1.bf16.msra.mxu0 0
        %2137 = vmatprep.subr.bf16.mxu0 0
        %2138 = vmatpush1.bf16.msra.mxu0 0
        %2139 = vmatprep.subr.bf16.mxu0 0
        %2140 = vmatpush1.bf16.msra.mxu0 0
        %2141 = vmatprep.subr.bf16.mxu0 0
        %2142 = vmatpush1.bf16.msra.mxu0 0
        %2143 = vmatprep.subr.bf16.mxu0 0
        %2144 = vmatpush1.bf16.msra.mxu0 0
        %2145 = vmatprep.subr.bf16.mxu0 0
        %2146 = vmatpush1.bf16.msra.mxu0 0
        %2147 = vmatprep.subr.bf16.mxu0 0
        %2148 = vmatpush1.bf16.msra.mxu0 0
        %2149 = vmatprep.subr.bf16.mxu0 0
        %2150 = vmatpush1.bf16.msra.mxu0 0
        %2151 = vmatprep.subr.bf16.mxu0 0
        %2152 = vmatpush1.bf16.msra.mxu0 0
        %2153 = vmatprep.subr.bf16.mxu0 0
        %2154 = vmatpush1.bf16.msra.mxu0 0
        %2155 = vmatprep.subr.bf16.mxu0 0
        %2156 = vmatpush1.bf16.msra.mxu0 0
        %2157 = vmatprep.mubr.bf16.mxu0 0
        %2158 = vmatmul.mubr.bf16.gmra.mrb[0].mxu0 %v2111
        %v2159 = vpop.f32.mrb[0].mxu0
        %v2160 = vadd.f32 0.0, %v2159
        %v2161 = vpop.f32.mrb[0].mxu0
        %v2162 = vpop.f32.mrb[0].mxu0
        %v2163 = vadd.f32 0.0, %v2162
        %v2164 = vpop.f32.mrb[0].mxu0
        %2165 = vmatprep.mubr.bf16.mxu0 0
        %2166 = vmatmul.mubr.bf16.gmra.mrb[0].mxu0 %v2114
        %v2167 = vpop.f32.mrb[0].mxu0
        %v2168 = vadd.f32 0.0, %v2167
        %v2169 = vpop.f32.mrb[0].mxu0
        %v2170 = vpop.f32.mrb[0].mxu0
        %v2171 = vadd.f32 0.0, %v2170
        %v2172 = vpop.f32.mrb[0].mxu0
        %2173 = vmatprep.mubr.bf16.mxu0 0
        %2174 = vmatmul.mubr.bf16.gmra.mrb[0].mxu0 %v2117
        %v2175 = vpop.f32.mrb[0].mxu0
        %v2176 = vadd.f32 0.0, %v2175
        %v2177 = vpop.f32.mrb[0].mxu0
        %v2178 = vpop.f32.mrb[0].mxu0
        %v2179 = vadd.f32 0.0, %v2178
        %v2180 = vpop.f32.mrb[0].mxu0
        %2181 = vmatprep.mubr.bf16.mxu0 0
        %2182 = vmatmul.mubr.bf16.gmra.mrb[0].mxu0 %v2120
        %v2183 = vpop.f32.mrb[0].mxu0
        %v2184 = vadd.f32 0.0, %v2183
        %v2185 = vpop.f32.mrb[0].mxu0
        %v2186 = vpop.f32.mrb[0].mxu0
        %v2187 = vadd.f32 0.0, %v2186
        %v2188 = vpop.f32.mrb[0].mxu0
        %2189 = vdwg.mxu0
        %v2190 = vadd.f32 %v2073, %v2160
        %v2191 = vadd.f32 %v2074, %v2163
        %v2192 = vadd.f32 %v2075, %v2168
        %v2193 = vadd.f32 %v2076, %v2171
        %v2194 = vadd.f32 %v2077, %v2176
        %v2195 = vadd.f32 %v2078, %v2179
        %v2196 = vadd.f32 %v2079, %v2184
        %v2197 = vadd.f32 %v2080, %v2187
        %v2198 = vld [vmem:[%s6] sm:$0xf]
        %v2199 = vld [vmem:[%s6 + $0x4] sm:$0xf]
        %v2200 = vld [vmem:[%s6 + $0x8] sm:$0xf]
        %v2201 = vld [vmem:[%s6 + $0xc] sm:$0xf]
        %v2202 = vld [vmem:[%s6 + $0x10] sm:$0xf]
        %v2203 = vld [vmem:[%s6 + $0x14] sm:$0xf]
        %v2204 = vld [vmem:[%s6 + $0x18] sm:$0xf]
        %v2205 = vld [vmem:[%s6 + $0x1c] sm:$0xf]
        %v2206 = vpack.c.bf16 %v797, %v797
        %v2215 = vunpack.c.l.b16 %v2198
        %v2216 = vunpack.c.l.b16 %v2199
        %v2217 = vunpack.c.l.b16 %v2200
        %v2218 = vunpack.c.l.b16 %v2201
        %v2219 = vunpack.c.l.b16 %v2202
        %v2220 = vunpack.c.l.b16 %v2203
        %v2221 = vunpack.c.l.b16 %v2204
        %v2222 = vunpack.c.l.b16 %v2205
        %v2223 = vpack.c.b16 %v2216, %v2215
        %v2224 = vpack.c.b16 %v2218, %v2217
        %v2225 = vpack.c.b16 %v2220, %v2219
        %v2226 = vpack.c.b16 %v2222, %v2221
        %v2228 = vsel %vm882, %v2223, 0
        %v2231 = vsel %vm882, %v2224, 0
        %v2234 = vsel %vm882, %v2225, 0
        %v2237 = vsel %vm882, %v2226, 0
        %v2240 = vand.u32 %v2206, %v2004
        %2242 = vmatprep.subr.bf16.mxu0 0
        %2243 = vmatpush1.bf16.msra.mxu0 %v2240
        %2244 = vmatprep.subr.bf16.mxu0 0
        %2245 = vmatpush1.bf16.msra.mxu0 0
        %2246 = vmatprep.subr.bf16.mxu0 0
        %2247 = vmatpush1.bf16.msra.mxu0 0
        %2248 = vmatprep.subr.bf16.mxu0 0
        %2249 = vmatpush1.bf16.msra.mxu0 0
        %2250 = vmatprep.subr.bf16.mxu0 0
        %2251 = vmatpush1.bf16.msra.mxu0 0
        %2252 = vmatprep.subr.bf16.mxu0 0
        %2253 = vmatpush1.bf16.msra.mxu0 0
        %2254 = vmatprep.subr.bf16.mxu0 0
        %2255 = vmatpush1.bf16.msra.mxu0 0
        %2256 = vmatprep.subr.bf16.mxu0 0
        %2257 = vmatpush1.bf16.msra.mxu0 0
        %2258 = vmatprep.subr.bf16.mxu0 0
        %2259 = vmatpush1.bf16.msra.mxu0 0
        %2260 = vmatprep.subr.bf16.mxu0 0
        %2261 = vmatpush1.bf16.msra.mxu0 0
        %2262 = vmatprep.subr.bf16.mxu0 0
        %2263 = vmatpush1.bf16.msra.mxu0 0
        %2264 = vmatprep.subr.bf16.mxu0 0
        %2265 = vmatpush1.bf16.msra.mxu0 0
        %2266 = vmatprep.subr.bf16.mxu0 0
        %2267 = vmatpush1.bf16.msra.mxu0 0
        %2268 = vmatprep.subr.bf16.mxu0 0
        %2269 = vmatpush1.bf16.msra.mxu0 0
        %2270 = vmatprep.subr.bf16.mxu0 0
        %2271 = vmatpush1.bf16.msra.mxu0 0
        %2272 = vmatprep.subr.bf16.mxu0 0
        %2273 = vmatpush1.bf16.msra.mxu0 0
        %2274 = vmatprep.mubr.bf16.mxu0 0
        %2275 = vmatmul.mubr.bf16.gmra.mrb[0].mxu0 %v2228
        %v2276 = vpop.f32.mrb[0].mxu0
        %v2277 = vadd.f32 0.0, %v2276
        %v2278 = vpop.f32.mrb[0].mxu0
        %v2279 = vpop.f32.mrb[0].mxu0
        %v2280 = vadd.f32 0.0, %v2279
        %v2281 = vpop.f32.mrb[0].mxu0
        %2282 = vmatprep.mubr.bf16.mxu0 0
        %2283 = vmatmul.mubr.bf16.gmra.mrb[0].mxu0 %v2231
        %v2284 = vpop.f32.mrb[0].mxu0
        %v2285 = vadd.f32 0.0, %v2284
        %v2286 = vpop.f32.mrb[0].mxu0
        %v2287 = vpop.f32.mrb[0].mxu0
        %v2288 = vadd.f32 0.0, %v2287
        %v2289 = vpop.f32.mrb[0].mxu0
        %2290 = vmatprep.mubr.bf16.mxu0 0
        %2291 = vmatmul.mubr.bf16.gmra.mrb[0].mxu0 %v2234
        %v2292 = vpop.f32.mrb[0].mxu0
        %v2293 = vadd.f32 0.0, %v2292
        %v2294 = vpop.f32.mrb[0].mxu0
        %v2295 = vpop.f32.mrb[0].mxu0
        %v2296 = vadd.f32 0.0, %v2295
        %v2297 = vpop.f32.mrb[0].mxu0
        %2298 = vmatprep.mubr.bf16.mxu0 0
        %2299 = vmatmul.mubr.bf16.gmra.mrb[0].mxu0 %v2237
        %v2300 = vpop.f32.mrb[0].mxu0
        %v2301 = vadd.f32 0.0, %v2300
        %v2302 = vpop.f32.mrb[0].mxu0
        %v2303 = vpop.f32.mrb[0].mxu0
        %v2304 = vadd.f32 0.0, %v2303
        %v2305 = vpop.f32.mrb[0].mxu0
        %2306 = vdwg.mxu0
        %v2307 = vadd.f32 %v2190, %v2277
        %v2308 = vadd.f32 %v2191, %v2280
        %v2309 = vadd.f32 %v2192, %v2285
        %v2310 = vadd.f32 %v2193, %v2288
        %v2311 = vadd.f32 %v2194, %v2293
        %v2312 = vadd.f32 %v2195, %v2296
        %v2313 = vadd.f32 %v2196, %v2301
        %v2314 = vadd.f32 %v2197, %v2304
        %v2315 = vld [vmem:[%s9] sm:$0xff]
        %v2316 = vld [vmem:[%s9 + $0x8] sm:$0xff]
        %v2317 = vld [vmem:[%s9 + $0x10] sm:$0xff]
        %v2318 = vld [vmem:[%s9 + $0x18] sm:$0xff]
        %v2319 = vld [vmem:[%s9 + $0x20] sm:$0xff]
        %v2320 = vld [vmem:[%s9 + $0x28] sm:$0xff]
        %v2321 = vld [vmem:[%s9 + $0x30] sm:$0xff]
        %v2322 = vld [vmem:[%s9 + $0x38] sm:$0xff]
        %2324 = vset.pattern.permute.xlu0 0
        %2325 = vperm.xlu0 %2324, %v2315
        %v2326 = vpop.permute.xlu0 %2325
        %2329 = vset.pattern.permute.xlu0 0
        %2330 = vperm.xlu0 %2329, %v2316
        %v2331 = vpop.permute.xlu0 %2330
        %2334 = vset.pattern.permute.xlu0 0
        %2335 = vperm.xlu0 %2334, %v2317
        %v2336 = vpop.permute.xlu0 %2335
        %2339 = vset.pattern.permute.xlu0 0
        %2340 = vperm.xlu0 %2339, %v2318
        %v2341 = vpop.permute.xlu0 %2340
        %2344 = vset.pattern.permute.xlu0 0
        %2345 = vperm.xlu0 %2344, %v2319
        %v2346 = vpop.permute.xlu0 %2345
        %2349 = vset.pattern.permute.xlu0 0
        %2350 = vperm.xlu0 %2349, %v2320
        %v2351 = vpop.permute.xlu0 %2350
        %2354 = vset.pattern.permute.xlu0 0
        %2355 = vperm.xlu0 %2354, %v2321
        %v2356 = vpop.permute.xlu0 %2355
        %2359 = vset.pattern.permute.xlu0 0
        %2360 = vperm.xlu0 %2359, %v2322
        %v2361 = vpop.permute.xlu0 %2360
        %v2363 = vadd.f32 %v2307, %v2326
        %v2364 = vadd.f32 %v2308, %v2331
        %v2365 = vadd.f32 %v2309, %v2336
        %v2366 = vadd.f32 %v2310, %v2341
        %v2367 = vadd.f32 %v2311, %v2346
        %v2368 = vadd.f32 %v2312, %v2351
        %v2369 = vadd.f32 %v2313, %v2356
        %v2370 = vadd.f32 %v2314, %v2361
        %v2371 = vmax.f32 %v2363, 0.0
        %v2372 = vmax.f32 %v2364, 0.0
        %v2373 = vmax.f32 %v2365, 0.0
        %v2374 = vmax.f32 %v2366, 0.0
        %v2375 = vmax.f32 %v2367, 0.0
        %v2376 = vmax.f32 %v2368, 0.0
        %v2377 = vmax.f32 %v2369, 0.0
        %v2378 = vmax.f32 %v2370, 0.0
        %v2379 = vld [vmem:[%s12] sm:$0xf]
        %v2380 = vld [vmem:[%s12 + $0x4] sm:$0xf]
        %v2381 = vld [vmem:[%s12 + $0x8] sm:$0xf]
        %v2382 = vld [vmem:[%s12 + $0xc] sm:$0xf]
        %v2383 = vld [vmem:[%s12 + $0x10] sm:$0xf]
        %v2384 = vld [vmem:[%s12 + $0x14] sm:$0xf]
        %v2385 = vld [vmem:[%s12 + $0x18] sm:$0xf]
        %v2386 = vld [vmem:[%s12 + $0x1c] sm:$0xf]
        %v2387 = vpack.c.bf16 %v2372, %v2371
        %v2388 = vpack.c.bf16 %v2374, %v2373
        %v2389 = vpack.c.bf16 %v2376, %v2375
        %v2390 = vpack.c.bf16 %v2378, %v2377
        %v2391 = vld [vmem:[%s13] sm:$0xff]
        %v2392 = vld [vmem:[%s13 + $0x8] sm:$0xff]
        %v2393 = vld [vmem:[%s13 + $0x10] sm:$0xff]
        %v2394 = vld [vmem:[%s13 + $0x18] sm:$0xff]
        %v2395 = vld [vmem:[%s13 + $0x20] sm:$0xff]
        %v2396 = vld [vmem:[%s13 + $0x28] sm:$0xff]
        %v2397 = vld [vmem:[%s13 + $0x30] sm:$0xff]
        %v2398 = vld [vmem:[%s13 + $0x38] sm:$0xff]
        %2400 = vset.pattern.permute.xlu0 0
        %2401 = vperm.xlu0 %2400, %v2391
        %v2402 = vpop.permute.xlu0 %2401
        %2405 = vset.pattern.permute.xlu0 0
        %2406 = vperm.xlu0 %2405, %v2392
        %v2407 = vpop.permute.xlu0 %2406
        %2410 = vset.pattern.permute.xlu0 0
        %2411 = vperm.xlu0 %2410, %v2393
        %v2412 = vpop.permute.xlu0 %2411
        %2415 = vset.pattern.permute.xlu0 0
        %2416 = vperm.xlu0 %2415, %v2394
        %v2417 = vpop.permute.xlu0 %2416
        %2420 = vset.pattern.permute.xlu0 0
        %2421 = vperm.xlu0 %2420, %v2395
        %v2422 = vpop.permute.xlu0 %2421
        %2425 = vset.pattern.permute.xlu0 0
        %2426 = vperm.xlu0 %2425, %v2396
        %v2427 = vpop.permute.xlu0 %2426
        %2430 = vset.pattern.permute.xlu0 0
        %2431 = vperm.xlu0 %2430, %v2397
        %v2432 = vpop.permute.xlu0 %2431
        %2435 = vset.pattern.permute.xlu0 0
        %2436 = vperm.xlu0 %2435, %v2398
        %v2437 = vpop.permute.xlu0 %2436
        %v2447 = vunpack.c.l.b16 %v2379
        %v2448 = vunpack.c.l.b16 %v2380
        %v2449 = vunpack.c.l.b16 %v2381
        %v2450 = vunpack.c.l.b16 %v2382
        %v2451 = vunpack.c.l.b16 %v2383
        %v2452 = vunpack.c.l.b16 %v2384
        %v2453 = vunpack.c.l.b16 %v2385
        %v2454 = vunpack.c.l.b16 %v2386
        %v2455 = vpack.c.b16 %v2448, %v2447
        %v2456 = vpack.c.b16 %v2450, %v2449
        %v2457 = vpack.c.b16 %v2452, %v2451
        %v2458 = vpack.c.b16 %v2454, %v2453
        %vm2459 = vcmask 523264
        %v2461 = vsel %vm2459, %v2455, 0
        %v2464 = vsel %vm2459, %v2456, 0
        %v2467 = vsel %vm2459, %v2457, 0
        %v2470 = vsel %vm2459, %v2458, 0
        %2472 = vmatprep.subr.bf16.mxu0 0
        %2473 = vmatpush1.bf16.msra.mxu0 %v2387
        %2474 = vmatprep.subr.bf16.mxu0 0
        %2475 = vmatpush1.bf16.msra.mxu0 %v2388
        %2476 = vmatprep.subr.bf16.mxu0 0
        %2477 = vmatpush1.bf16.msra.mxu0 %v2389
        %2478 = vmatprep.subr.bf16.mxu0 0
        %2479 = vmatpush1.bf16.msra.mxu0 %v2390
        %2480 = vmatprep.subr.bf16.mxu0 0
        %2481 = vmatpush1.bf16.msra.mxu0 0
        %2482 = vmatprep.subr.bf16.mxu0 0
        %2483 = vmatpush1.bf16.msra.mxu0 0
        %2484 = vmatprep.subr.bf16.mxu0 0
        %2485 = vmatpush1.bf16.msra.mxu0 0
        %2486 = vmatprep.subr.bf16.mxu0 0
        %2487 = vmatpush1.bf16.msra.mxu0 0
        %2488 = vmatprep.subr.bf16.mxu0 0
        %2489 = vmatpush1.bf16.msra.mxu0 0
        %2490 = vmatprep.subr.bf16.mxu0 0
        %2491 = vmatpush1.bf16.msra.mxu0 0
        %2492 = vmatprep.subr.bf16.mxu0 0
        %2493 = vmatpush1.bf16.msra.mxu0 0
        %2494 = vmatprep.subr.bf16.mxu0 0
        %2495 = vmatpush1.bf16.msra.mxu0 0
        %2496 = vmatprep.subr.bf16.mxu0 0
        %2497 = vmatpush1.bf16.msra.mxu0 0
        %2498 = vmatprep.subr.bf16.mxu0 0
        %2499 = vmatpush1.bf16.msra.mxu0 0
        %2500 = vmatprep.subr.bf16.mxu0 0
        %2501 = vmatpush1.bf16.msra.mxu0 0
        %2502 = vmatprep.subr.bf16.mxu0 0
        %2503 = vmatpush1.bf16.msra.mxu0 0
        %2504 = vmatprep.mubr.bf16.mxu0 0
        %2505 = vmatmul.mubr.bf16.gmra.mrb[0].mxu0 %v2461
        %v2506 = vpop.f32.mrb[0].mxu0
        %v2507 = vadd.f32 %v2402, %v2506
        %v2508 = vpop.f32.mrb[0].mxu0
        %v2509 = vpop.f32.mrb[0].mxu0
        %v2510 = vadd.f32 %v2407, %v2509
        %v2511 = vpop.f32.mrb[0].mxu0
        %2512 = vmatprep.mubr.bf16.mxu0 0
        %2513 = vmatmul.mubr.bf16.gmra.mrb[0].mxu0 %v2464
        %v2514 = vpop.f32.mrb[0].mxu0
        %v2515 = vadd.f32 %v2412, %v2514
        %v2516 = vpop.f32.mrb[0].mxu0
        %v2517 = vpop.f32.mrb[0].mxu0
        %v2518 = vadd.f32 %v2417, %v2517
        %v2519 = vpop.f32.mrb[0].mxu0
        %2520 = vmatprep.mubr.bf16.mxu0 0
        %2521 = vmatmul.mubr.bf16.gmra.mrb[0].mxu0 %v2467
        %v2522 = vpop.f32.mrb[0].mxu0
        %v2523 = vadd.f32 %v2422, %v2522
        %v2524 = vpop.f32.mrb[0].mxu0
        %v2525 = vpop.f32.mrb[0].mxu0
        %v2526 = vadd.f32 %v2427, %v2525
        %v2527 = vpop.f32.mrb[0].mxu0
        %2528 = vmatprep.mubr.bf16.mxu0 0
        %2529 = vmatmul.mubr.bf16.gmra.mrb[0].mxu0 %v2470
        %v2530 = vpop.f32.mrb[0].mxu0
        %v2531 = vadd.f32 %v2432, %v2530
        %v2532 = vpop.f32.mrb[0].mxu0
        %v2533 = vpop.f32.mrb[0].mxu0
        %v2534 = vadd.f32 %v2437, %v2533
        %v2535 = vpop.f32.mrb[0].mxu0
        %2536 = vdwg.mxu0
        %v2537 = vmax.f32 %v2507, 0.0
        %v2538 = vmax.f32 %v2510, 0.0
        %v2539 = vmax.f32 %v2515, 0.0
        %v2540 = vmax.f32 %v2518, 0.0
        %v2541 = vmax.f32 %v2523, 0.0
        %v2542 = vmax.f32 %v2526, 0.0
        %v2543 = vmax.f32 %v2531, 0.0
        %v2544 = vmax.f32 %v2534, 0.0
        %s2545 = scalar_lea.vmem %s12, 32
        %v2546 = vld [vmem:[%s2545] sm:$0xf]
        %v2547 = vld [vmem:[%s2545 + $0x4] sm:$0xf]
        %v2548 = vld [vmem:[%s2545 + $0x8] sm:$0xf]
        %v2549 = vld [vmem:[%s2545 + $0xc] sm:$0xf]
        %v2550 = vld [vmem:[%s2545 + $0x10] sm:$0xf]
        %v2551 = vld [vmem:[%s2545 + $0x14] sm:$0xf]
        %v2552 = vld [vmem:[%s2545 + $0x18] sm:$0xf]
        %v2553 = vld [vmem:[%s2545 + $0x1c] sm:$0xf]
        %v2554 = vpack.c.bf16 %v2538, %v2537
        %v2555 = vpack.c.bf16 %v2540, %v2539
        %v2556 = vpack.c.bf16 %v2542, %v2541
        %v2557 = vpack.c.bf16 %v2544, %v2543
        %s2558 = scalar_lea.vmem %s13, 64
        %v2559 = vld [vmem:[%s2558] sm:$0xff]
        %v2560 = vld [vmem:[%s2558 + $0x8] sm:$0xff]
        %v2561 = vld [vmem:[%s2558 + $0x10] sm:$0xff]
        %v2562 = vld [vmem:[%s2558 + $0x18] sm:$0xff]
        %v2563 = vld [vmem:[%s2558 + $0x20] sm:$0xff]
        %v2564 = vld [vmem:[%s2558 + $0x28] sm:$0xff]
        %v2565 = vld [vmem:[%s2558 + $0x30] sm:$0xff]
        %v2566 = vld [vmem:[%s2558 + $0x38] sm:$0xff]
        %2568 = vset.pattern.permute.xlu0 0
        %2569 = vperm.xlu0 %2568, %v2559
        %v2570 = vpop.permute.xlu0 %2569
        %2573 = vset.pattern.permute.xlu0 0
        %2574 = vperm.xlu0 %2573, %v2560
        %v2575 = vpop.permute.xlu0 %2574
        %2578 = vset.pattern.permute.xlu0 0
        %2579 = vperm.xlu0 %2578, %v2561
        %v2580 = vpop.permute.xlu0 %2579
        %2583 = vset.pattern.permute.xlu0 0
        %2584 = vperm.xlu0 %2583, %v2562
        %v2585 = vpop.permute.xlu0 %2584
        %2588 = vset.pattern.permute.xlu0 0
        %2589 = vperm.xlu0 %2588, %v2563
        %v2590 = vpop.permute.xlu0 %2589
        %2593 = vset.pattern.permute.xlu0 0
        %2594 = vperm.xlu0 %2593, %v2564
        %v2595 = vpop.permute.xlu0 %2594
        %2598 = vset.pattern.permute.xlu0 0
        %2599 = vperm.xlu0 %2598, %v2565
        %v2600 = vpop.permute.xlu0 %2599
        %2603 = vset.pattern.permute.xlu0 0
        %2604 = vperm.xlu0 %2603, %v2566
        %v2605 = vpop.permute.xlu0 %2604
        %v2615 = vunpack.c.l.b16 %v2546
        %v2616 = vunpack.c.l.b16 %v2547
        %v2617 = vunpack.c.l.b16 %v2548
        %v2618 = vunpack.c.l.b16 %v2549
        %v2619 = vunpack.c.l.b16 %v2550
        %v2620 = vunpack.c.l.b16 %v2551
        %v2621 = vunpack.c.l.b16 %v2552
        %v2622 = vunpack.c.l.b16 %v2553
        %v2623 = vpack.c.b16 %v2616, %v2615
        %v2624 = vpack.c.b16 %v2618, %v2617
        %v2625 = vpack.c.b16 %v2620, %v2619
        %v2626 = vpack.c.b16 %v2622, %v2621
        %v2628 = vsel %vm2459, %v2623, 0
        %v2631 = vsel %vm2459, %v2624, 0
        %v2634 = vsel %vm2459, %v2625, 0
        %v2637 = vsel %vm2459, %v2626, 0
        %2639 = vmatprep.subr.bf16.mxu0 0
        %2640 = vmatpush1.bf16.msra.mxu0 %v2554
        %2641 = vmatprep.subr.bf16.mxu0 0
        %2642 = vmatpush1.bf16.msra.mxu0 %v2555
        %2643 = vmatprep.subr.bf16.mxu0 0
        %2644 = vmatpush1.bf16.msra.mxu0 %v2556
        %2645 = vmatprep.subr.bf16.mxu0 0
        %2646 = vmatpush1.bf16.msra.mxu0 %v2557
        %2647 = vmatprep.subr.bf16.mxu0 0
        %2648 = vmatpush1.bf16.msra.mxu0 0
        %2649 = vmatprep.subr.bf16.mxu0 0
        %2650 = vmatpush1.bf16.msra.mxu0 0
        %2651 = vmatprep.subr.bf16.mxu0 0
        %2652 = vmatpush1.bf16.msra.mxu0 0
        %2653 = vmatprep.subr.bf16.mxu0 0
        %2654 = vmatpush1.bf16.msra.mxu0 0
        %2655 = vmatprep.subr.bf16.mxu0 0
        %2656 = vmatpush1.bf16.msra.mxu0 0
        %2657 = vmatprep.subr.bf16.mxu0 0
        %2658 = vmatpush1.bf16.msra.mxu0 0
        %2659 = vmatprep.subr.bf16.mxu0 0
        %2660 = vmatpush1.bf16.msra.mxu0 0
        %2661 = vmatprep.subr.bf16.mxu0 0
        %2662 = vmatpush1.bf16.msra.mxu0 0
        %2663 = vmatprep.subr.bf16.mxu0 0
        %2664 = vmatpush1.bf16.msra.mxu0 0
        %2665 = vmatprep.subr.bf16.mxu0 0
        %2666 = vmatpush1.bf16.msra.mxu0 0
        %2667 = vmatprep.subr.bf16.mxu0 0
        %2668 = vmatpush1.bf16.msra.mxu0 0
        %2669 = vmatprep.subr.bf16.mxu0 0
        %2670 = vmatpush1.bf16.msra.mxu0 0
        %2671 = vmatprep.mubr.bf16.mxu0 0
        %2672 = vmatmul.mubr.bf16.gmra.mrb[0].mxu0 %v2628
        %v2673 = vpop.f32.mrb[0].mxu0
        %v2674 = vadd.f32 %v2570, %v2673
        %v2675 = vpop.f32.mrb[0].mxu0
        %v2676 = vpop.f32.mrb[0].mxu0
        %v2677 = vadd.f32 %v2575, %v2676
        %v2678 = vpop.f32.mrb[0].mxu0
        %2679 = vmatprep.mubr.bf16.mxu0 0
        %2680 = vmatmul.mubr.bf16.gmra.mrb[0].mxu0 %v2631
        %v2681 = vpop.f32.mrb[0].mxu0
        %v2682 = vadd.f32 %v2580, %v2681
        %v2683 = vpop.f32.mrb[0].mxu0
        %v2684 = vpop.f32.mrb[0].mxu0
        %v2685 = vadd.f32 %v2585, %v2684
        %v2686 = vpop.f32.mrb[0].mxu0
        %2687 = vmatprep.mubr.bf16.mxu0 0
        %2688 = vmatmul.mubr.bf16.gmra.mrb[0].mxu0 %v2634
        %v2689 = vpop.f32.mrb[0].mxu0
        %v2690 = vadd.f32 %v2590, %v2689
        %v2691 = vpop.f32.mrb[0].mxu0
        %v2692 = vpop.f32.mrb[0].mxu0
        %v2693 = vadd.f32 %v2595, %v2692
        %v2694 = vpop.f32.mrb[0].mxu0
        %2695 = vmatprep.mubr.bf16.mxu0 0
        %2696 = vmatmul.mubr.bf16.gmra.mrb[0].mxu0 %v2637
        %v2697 = vpop.f32.mrb[0].mxu0
        %v2698 = vadd.f32 %v2600, %v2697
        %v2699 = vpop.f32.mrb[0].mxu0
        %v2700 = vpop.f32.mrb[0].mxu0
        %v2701 = vadd.f32 %v2605, %v2700
        %v2702 = vpop.f32.mrb[0].mxu0
        %2703 = vdwg.mxu0
        %v2704 = vmax.f32 %v2674, 0.0
        %v2705 = vmax.f32 %v2677, 0.0
        %v2706 = vmax.f32 %v2682, 0.0
        %v2707 = vmax.f32 %v2685, 0.0
        %v2708 = vmax.f32 %v2690, 0.0
        %v2709 = vmax.f32 %v2693, 0.0
        %v2710 = vmax.f32 %v2698, 0.0
        %v2711 = vmax.f32 %v2701, 0.0
        %s2712 = scalar_lea.vmem %s12, 64
        %v2713 = vld [vmem:[%s2712] sm:$0xf]
        %v2714 = vld [vmem:[%s2712 + $0x4] sm:$0xf]
        %v2715 = vld [vmem:[%s2712 + $0x8] sm:$0xf]
        %v2716 = vld [vmem:[%s2712 + $0xc] sm:$0xf]
        %v2717 = vld [vmem:[%s2712 + $0x10] sm:$0xf]
        %v2718 = vld [vmem:[%s2712 + $0x14] sm:$0xf]
        %v2719 = vld [vmem:[%s2712 + $0x18] sm:$0xf]
        %v2720 = vld [vmem:[%s2712 + $0x1c] sm:$0xf]
        %v2721 = vpack.c.bf16 %v2705, %v2704
        %v2722 = vpack.c.bf16 %v2707, %v2706
        %v2723 = vpack.c.bf16 %v2709, %v2708
        %v2724 = vpack.c.bf16 %v2711, %v2710
        %s2725 = scalar_lea.vmem %s13, 128
        %v2726 = vld [vmem:[%s2725] sm:$0xff]
        %v2727 = vld [vmem:[%s2725 + $0x8] sm:$0xff]
        %v2728 = vld [vmem:[%s2725 + $0x10] sm:$0xff]
        %v2729 = vld [vmem:[%s2725 + $0x18] sm:$0xff]
        %v2730 = vld [vmem:[%s2725 + $0x20] sm:$0xff]
        %v2731 = vld [vmem:[%s2725 + $0x28] sm:$0xff]
        %v2732 = vld [vmem:[%s2725 + $0x30] sm:$0xff]
        %v2733 = vld [vmem:[%s2725 + $0x38] sm:$0xff]
        %2735 = vset.pattern.permute.xlu0 0
        %2736 = vperm.xlu0 %2735, %v2726
        %v2737 = vpop.permute.xlu0 %2736
        %2740 = vset.pattern.permute.xlu0 0
        %2741 = vperm.xlu0 %2740, %v2727
        %v2742 = vpop.permute.xlu0 %2741
        %2745 = vset.pattern.permute.xlu0 0
        %2746 = vperm.xlu0 %2745, %v2728
        %v2747 = vpop.permute.xlu0 %2746
        %2750 = vset.pattern.permute.xlu0 0
        %2751 = vperm.xlu0 %2750, %v2729
        %v2752 = vpop.permute.xlu0 %2751
        %2755 = vset.pattern.permute.xlu0 0
        %2756 = vperm.xlu0 %2755, %v2730
        %v2757 = vpop.permute.xlu0 %2756
        %2760 = vset.pattern.permute.xlu0 0
        %2761 = vperm.xlu0 %2760, %v2731
        %v2762 = vpop.permute.xlu0 %2761
        %2765 = vset.pattern.permute.xlu0 0
        %2766 = vperm.xlu0 %2765, %v2732
        %v2767 = vpop.permute.xlu0 %2766
        %2770 = vset.pattern.permute.xlu0 0
        %2771 = vperm.xlu0 %2770, %v2733
        %v2772 = vpop.permute.xlu0 %2771
        %v2782 = vunpack.c.l.b16 %v2713
        %v2783 = vunpack.c.l.b16 %v2714
        %v2784 = vunpack.c.l.b16 %v2715
        %v2785 = vunpack.c.l.b16 %v2716
        %v2786 = vunpack.c.l.b16 %v2717
        %v2787 = vunpack.c.l.b16 %v2718
        %v2788 = vunpack.c.l.b16 %v2719
        %v2789 = vunpack.c.l.b16 %v2720
        %v2790 = vpack.c.b16 %v2783, %v2782
        %v2791 = vpack.c.b16 %v2785, %v2784
        %v2792 = vpack.c.b16 %v2787, %v2786
        %v2793 = vpack.c.b16 %v2789, %v2788
        %v2795 = vsel %vm2459, %v2790, 0
        %v2798 = vsel %vm2459, %v2791, 0
        %v2801 = vsel %vm2459, %v2792, 0
        %v2804 = vsel %vm2459, %v2793, 0
        %2806 = vmatprep.subr.bf16.mxu0 0
        %2807 = vmatpush1.bf16.msra.mxu0 %v2721
        %2808 = vmatprep.subr.bf16.mxu0 0
        %2809 = vmatpush1.bf16.msra.mxu0 %v2722
        %2810 = vmatprep.subr.bf16.mxu0 0
        %2811 = vmatpush1.bf16.msra.mxu0 %v2723
        %2812 = vmatprep.subr.bf16.mxu0 0
        %2813 = vmatpush1.bf16.msra.mxu0 %v2724
        %2814 = vmatprep.subr.bf16.mxu0 0
        %2815 = vmatpush1.bf16.msra.mxu0 0
        %2816 = vmatprep.subr.bf16.mxu0 0
        %2817 = vmatpush1.bf16.msra.mxu0 0
        %2818 = vmatprep.subr.bf16.mxu0 0
        %2819 = vmatpush1.bf16.msra.mxu0 0
        %2820 = vmatprep.subr.bf16.mxu0 0
        %2821 = vmatpush1.bf16.msra.mxu0 0
        %2822 = vmatprep.subr.bf16.mxu0 0
        %2823 = vmatpush1.bf16.msra.mxu0 0
        %2824 = vmatprep.subr.bf16.mxu0 0
        %2825 = vmatpush1.bf16.msra.mxu0 0
        %2826 = vmatprep.subr.bf16.mxu0 0
        %2827 = vmatpush1.bf16.msra.mxu0 0
        %2828 = vmatprep.subr.bf16.mxu0 0
        %2829 = vmatpush1.bf16.msra.mxu0 0
        %2830 = vmatprep.subr.bf16.mxu0 0
        %2831 = vmatpush1.bf16.msra.mxu0 0
        %2832 = vmatprep.subr.bf16.mxu0 0
        %2833 = vmatpush1.bf16.msra.mxu0 0
        %2834 = vmatprep.subr.bf16.mxu0 0
        %2835 = vmatpush1.bf16.msra.mxu0 0
        %2836 = vmatprep.subr.bf16.mxu0 0
        %2837 = vmatpush1.bf16.msra.mxu0 0
        %2838 = vmatprep.mubr.bf16.mxu0 0
        %2839 = vmatmul.mubr.bf16.gmra.mrb[0].mxu0 %v2795
        %v2840 = vpop.f32.mrb[0].mxu0
        %v2841 = vadd.f32 %v2737, %v2840
        %v2842 = vpop.f32.mrb[0].mxu0
        %v2843 = vpop.f32.mrb[0].mxu0
        %v2844 = vadd.f32 %v2742, %v2843
        %v2845 = vpop.f32.mrb[0].mxu0
        %2846 = vmatprep.mubr.bf16.mxu0 0
        %2847 = vmatmul.mubr.bf16.gmra.mrb[0].mxu0 %v2798
        %v2848 = vpop.f32.mrb[0].mxu0
        %v2849 = vadd.f32 %v2747, %v2848
        %v2850 = vpop.f32.mrb[0].mxu0
        %v2851 = vpop.f32.mrb[0].mxu0
        %v2852 = vadd.f32 %v2752, %v2851
        %v2853 = vpop.f32.mrb[0].mxu0
        %2854 = vmatprep.mubr.bf16.mxu0 0
        %2855 = vmatmul.mubr.bf16.gmra.mrb[0].mxu0 %v2801
        %v2856 = vpop.f32.mrb[0].mxu0
        %v2857 = vadd.f32 %v2757, %v2856
        %v2858 = vpop.f32.mrb[0].mxu0
        %v2859 = vpop.f32.mrb[0].mxu0
        %v2860 = vadd.f32 %v2762, %v2859
        %v2861 = vpop.f32.mrb[0].mxu0
        %2862 = vmatprep.mubr.bf16.mxu0 0
        %2863 = vmatmul.mubr.bf16.gmra.mrb[0].mxu0 %v2804
        %v2864 = vpop.f32.mrb[0].mxu0
        %v2865 = vadd.f32 %v2767, %v2864
        %v2866 = vpop.f32.mrb[0].mxu0
        %v2867 = vpop.f32.mrb[0].mxu0
        %v2868 = vadd.f32 %v2772, %v2867
        %v2869 = vpop.f32.mrb[0].mxu0
        %2870 = vdwg.mxu0
        %v2871 = vmax.f32 %v2841, 0.0
        %v2872 = vmax.f32 %v2844, 0.0
        %v2873 = vmax.f32 %v2849, 0.0
        %v2874 = vmax.f32 %v2852, 0.0
        %v2875 = vmax.f32 %v2857, 0.0
        %v2876 = vmax.f32 %v2860, 0.0
        %v2877 = vmax.f32 %v2865, 0.0
        %v2878 = vmax.f32 %v2868, 0.0
        %v2879 = vld [vmem:[%s14] sm:$0x3]
        %v2880 = vpack.c.bf16 %v2872, %v2871
        %v2881 = vpack.c.bf16 %v2874, %v2873
        %v2882 = vpack.c.bf16 %v2876, %v2875
        %v2883 = vpack.c.bf16 %v2878, %v2877
        %v2884 = vld [vmem:[%s15] sm:$0x7]
        %2886 = vset.pattern.permute.xlu0 0
        %2887 = vperm.xlu0 %2886, %v2884
        %v2888 = vpop.permute.xlu0 %2887
        %v2891 = vsel %vm2459, %v2879, 0
        %2893 = vmatprep.subr.bf16.mxu0 0
        %2894 = vmatpush1.bf16.msra.mxu0 %v2880
        %2895 = vmatprep.subr.bf16.mxu0 0
        %2896 = vmatpush1.bf16.msra.mxu0 %v2881
        %2897 = vmatprep.subr.bf16.mxu0 0
        %2898 = vmatpush1.bf16.msra.mxu0 %v2882
        %2899 = vmatprep.subr.bf16.mxu0 0
        %2900 = vmatpush1.bf16.msra.mxu0 %v2883
        %2901 = vmatprep.subr.bf16.mxu0 0
        %2902 = vmatpush1.bf16.msra.mxu0 0
        %2903 = vmatprep.subr.bf16.mxu0 0
        %2904 = vmatpush1.bf16.msra.mxu0 0
        %2905 = vmatprep.subr.bf16.mxu0 0
        %2906 = vmatpush1.bf16.msra.mxu0 0
        %2907 = vmatprep.subr.bf16.mxu0 0
        %2908 = vmatpush1.bf16.msra.mxu0 0
        %2909 = vmatprep.subr.bf16.mxu0 0
        %2910 = vmatpush1.bf16.msra.mxu0 0
        %2911 = vmatprep.subr.bf16.mxu0 0
        %2912 = vmatpush1.bf16.msra.mxu0 0
        %2913 = vmatprep.subr.bf16.mxu0 0
        %2914 = vmatpush1.bf16.msra.mxu0 0
        %2915 = vmatprep.subr.bf16.mxu0 0
        %2916 = vmatpush1.bf16.msra.mxu0 0
        %2917 = vmatprep.subr.bf16.mxu0 0
        %2918 = vmatpush1.bf16.msra.mxu0 0
        %2919 = vmatprep.subr.bf16.mxu0 0
        %2920 = vmatpush1.bf16.msra.mxu0 0
        %2921 = vmatprep.subr.bf16.mxu0 0
        %2922 = vmatpush1.bf16.msra.mxu0 0
        %2923 = vmatprep.subr.bf16.mxu0 0
        %2924 = vmatpush1.bf16.msra.mxu0 0
        %2925 = vmatprep.mubr.bf16.mxu0 0
        %2926 = vmatmul.mubr.bf16.gmra.mrb[0].mxu0 %v2891
        %v2927 = vpop.f32.mrb[0].mxu0
        %v2928 = vadd.f32 %v2888, %v2927
        %v2929 = vpop.f32.mrb[0].mxu0
        %v2930 = vpop.f32.mrb[0].mxu0
        %v2931 = vpop.f32.mrb[0].mxu0
        %2932 = vdwg.mxu0
        %v2933 = vxor.u32 %v2928, 2147483648
        %v2934 = vmul.f32 %v2933, 1.442695
        %v2935 = vpow.pop %v2934
        %v2936 = vadd.f32 %v2935, 1.0
        %v2937 = vrcp.pop %v2936
        %v2938 = vmul.f32 1.0, %v2937
        %2939 = vst [vmem:[%s611] sm:$0x7] %v2938
        %s2940 = sand.u32 %s394, 1
        %s2941 = scalar_lea.sflag [#allocation3], %s2940
        %s2942 = sand.u32 %s394, 1
        %s2943 = smul.addr %s2942, 4
        %s2944 = scalar_lea.vmem [#allocation2], %s2943
        // Predicated region
        $region85: #{tpu_custom_call.1} parent=83 // pred_check
          %p2945 = pneg %p404
        $region86: #{tpu_custom_call.1} parent=83 // pred_check_branch
          %2947 = sbr.rel (%p2945) target = $region88
        $region87: #{tpu_custom_call.1} parent=83 // pred_region
          %s2949 = ssub.s32 64, 64
          %2950 = vsyncadd %s2941, %s2949
          %s2951 = smul.addr %s30, 64
          %s2952 = scalar_lea.hbm %s16, %s2951
          %s2954 = sshll.u32 %s2944, 4
          %s2955 = int_to_ptr.vmem [resolvable:$true] %s2954
          %2957 = dma.vmem_to_hbm [thread:$0]  %s2955, 64, %s2952, %s2941
        $region88: #{tpu_custom_call.1} parent=83 // pred_fallthru
          _
      $region84: #{tpu_custom_call.1} parent=5 // pred_fallthru
        _
      %p2958 = scmp.le.s32.totalorder 2, %s25
      // Predicated region
      $region89: #{tpu_custom_call.1} parent=5 // pred_check
        %p2959 = pneg %p2958
      $region90: #{tpu_custom_call.1} parent=5 // pred_check_branch
        %2961 = sbr.rel (%p2959) target = $region92
      $region91: #{tpu_custom_call.1} parent=5 // pred_region
        %s2962 = ssub.s32 %s25, 2
        // Predicated region
        $region93: #{tpu_custom_call.1} parent=91 // pred_check
          %p2963 = pneg %p410
        $region94: #{tpu_custom_call.1} parent=91 // pred_check_branch
          %2965 = sbr.rel (%p2963) target = $region96
        $region95: #{tpu_custom_call.1} parent=91 // pred_region
          %s2966 = sand.u32 %s395, 1
          %s2967 = scalar_lea.sflag [#allocation3], %s2966
          %s2968 = sand.u32 %s395, 1
          %s2969 = smul.addr %s2968, 4
          %s2970 = scalar_lea.vmem [#allocation2], %s2969
          %2971 = dma.done %s2967, 64
        $region96: #{tpu_custom_call.1} parent=91 // pred_fallthru
          _
      $region92: #{tpu_custom_call.1} parent=5 // pred_fallthru
        _
    $region6: #{tpu_custom_call.1} parent=1 // loop_footer
      %s29 = sadd.s32 1, %s25
    $region7: #{tpu_custom_call.1} parent=1 // loop_footer_branch
      %24 = sbr.rel target = $region3
    $region8: #{tpu_custom_call.1} parent=1 // loop_exit
      _
    %2972 = vsyncpa [#allocation3], 1
    %s2973 = scalar_lea.sflag [#allocation3], 1
    %2974 = vsyncpa %s2973, 1

</llo_original>
